<compile_context>
chip_gen: v6e
topology: v6e:2x2x1
jax: 0.10.0
libtpu: 0.0.40
codegen_flags: <defaults>
</compile_context>

<pallas_src>
import math

import jax
import jax.numpy as jnp
from jax.experimental import pallas as pl
from jax.experimental.pallas import tpu as pltpu  # noqa: F401


# ---------------------------------------------------------------------------
# The single fused kernel
# ---------------------------------------------------------------------------

def _netal_kernel(p1_ref, w1_ref, b1_ref, w2_ref, b2_ref, w3_ref, b3_ref,
                  w4_ref, b4_ref, w5_ref, b5_ref, w6_ref, b6_ref,
                  out_ref, aux_ref):
    """Full NetAL forward (both branches fused via block-diagonal weights).

    Shapes (n = true batch, m = batch padded to a multiple of 8 sublanes):
      p1 : (144m, 18) conv1 im2col patches; row = p*36m + (h1*6+w1)*m + batch
           (p = 2x2-pool position), cols 0:9 branch-1 taps, 9:18 branch-2 taps.
      w1 : (18, 64) block-diag     b1 : (1, 64)
      w2 : (9, 64, 128) block-diag b2 : (1, 128)
      w3 : (4, 128, 256) block-diag (torch NCHW flatten folded in)  b3 : (1, 256)
      w4 : (256, 20) block-diag    b4 : (1, 20)
      w5 : (20, 128)               b5 : (1, 128)
      w6 : (128, 2)                b6 : (1, 2)
    """
    f32 = jnp.float32
    n = out_ref.shape[0]
    m = p1_ref.shape[0] // 144

    # ---- conv1 (1->32, k=3) for both branches: ONE block-diag GEMM,
    #      then 2x2/2 max-pool (elementwise max over 4 row-bands) + bias + ReLU.
    c = jnp.dot(p1_ref[...], w1_ref[...], preferred_element_type=f32)  # (144m, 64)
    pooled1 = c[0:36 * m]
    for p in range(1, 4):
        pooled1 = jnp.maximum(pooled1, c[p * 36 * m:(p + 1) * 36 * m])
    pooled1 = jnp.maximum(pooled1 + b1_ref[...], 0.0)   # (36m, 64), row=(h*6+w)*m+b

    # ---- conv2 (32->64, k=3) for both branches: 9 shifted block-diag GEMMs on
    #      the 24m-row band actually needed per tap; static row-slice gather/sum.
    bands = [None] * 4                                   # bands[h2]: (4m, 128)
    for di in range(3):
        seg = pooled1[di * 6 * m:(di * 6 + 24) * m]      # rows h in [di, di+4)
        for dj in range(3):
            ck = jnp.dot(seg, w2_ref[di * 3 + dj],
                         preferred_element_type=f32)     # (24m, 128)
            for h2 in range(4):
                start = (h2 * 6 + dj) * m                # 8-aligned
                blk = ck[start:start + 4 * m]
                bands[h2] = blk if bands[h2] is None else bands[h2] + blk

    # ---- 2x2/2 max-pool + bias + ReLU over the 4x4 conv2 map -> 4 (m,128) blocks
    b2b = b2_ref[...]
    blocks = []                                          # index s = hp*2 + wp
    for hp in range(2):
        r0, r1 = bands[2 * hp], bands[2 * hp + 1]
        for wp in range(2):
            lo, hi = (2 * wp) * m, (2 * wp + 1) * m      # 8-aligned
            mx = jnp.maximum(jnp.maximum(r0[lo:lo + m], r0[hi:hi + m]),
                             jnp.maximum(r1[lo:lo + m], r1[hi:hi + m]))
            blocks.append(jnp.maximum(mx + b2b, 0.0))    # (m, 128)

    # ---- fc3 (256->128, both branches): NCHW flatten folded into w3 packing
    acc = jnp.dot(blocks[0], w3_ref[0], preferred_element_type=f32)
    for s in range(1, 4):
        acc = acc + jnp.dot(blocks[s], w3_ref[s], preferred_element_type=f32)
    h = jnp.maximum(acc + b3_ref[...], 0.0)              # (m, 256)

    # ---- fc4 (128->10, both branches): pre-ReLU aux heads, cols 0:10 / 10:20
    aux = jnp.dot(h, w4_ref[...], preferred_element_type=f32) + b4_ref[...]
    aux_ref[...] = aux[:n, :]                            # (n, 20)

    # ---- head: fc5(cat(relu(aux1), relu(aux2))) -> ReLU -> fc6
    #      (the concat is free: aux columns are already [branch1 | branch2])
    g = jnp.maximum(jnp.dot(jnp.maximum(aux, 0.0), w5_ref[...],
                            preferred_element_type=f32) + b5_ref[...], 0.0)
    final = jnp.dot(g, w6_ref[...], preferred_element_type=f32) + b6_ref[...]
    out_ref[...] = final[:n, :]


# ---------------------------------------------------------------------------
# Wrapper: conv1 im2col (raw input only) + one pallas_call
# ---------------------------------------------------------------------------

def _spec(shape):
    nd = len(shape)
    return pl.BlockSpec(shape, lambda i, nd=nd: (0,) * nd)


def _conv1_pool_patches(x, m):
    """x: (n, 2, 14, 14) -> (144*m, 18).
    Row = p*36m + (h1*6+w1)*m + batch, p = 2x2-pool position a*2+b (batch padded
    n->m).  Column ch*9 + (i*3+j) holds x[n, ch, 2*h1+a+i, 2*w1+b+j]."""
    n = x.shape[0]
    cols = [x[:, :, i:i + 12, j:j + 12] for i in range(3) for j in range(3)]
    t = jnp.stack(cols, axis=-1)                         # (n, 2, 12, 12, 9)
    t = t.reshape(n, 2, 6, 2, 6, 2, 9)                   # (n, ch, h1, a, w1, b, k)
    t = t.transpose(3, 5, 2, 4, 0, 1, 6)                 # (a, b, h1, w1, n, ch, k)
    t = t.reshape(4, 36, n, 18)
    if m != n:
        t = jnp.pad(t, ((0, 0), (0, 0), (0, m - n), (0, 0)))
    return t.reshape(144 * m, 18)


def net_al_forward(params, x):
    """x: (N, 2, 14, 14) float32 (same NCHW convention as the PyTorch module)."""
    n = x.shape[0]
    m = -(-n // 8) * 8                                   # pad batch rows to 8 sublanes
    p1 = _conv1_pool_patches(x, m)                       # (144m, 18)

    args = (p1, params["w1"], params["b1"], params["w2"], params["b2"],
            params["w3"], params["b3"], params["w4"], params["b4"],
            params["w5"], params["b5"], params["w6"], params["b6"])
    out_shapes = (jax.ShapeDtypeStruct((n, 2), jnp.float32),
                  jax.ShapeDtypeStruct((n, 20), jnp.float32))

    out, aux = pl.pallas_call(
        _netal_kernel,
        out_shape=out_shapes,
        grid=(1,),
        in_specs=[_spec(a.shape) for a in args],
        out_specs=tuple(_spec(s.shape) for s in out_shapes),
    )(*args)
    return out, aux[:, 0:10], aux[:, 10:20]


# ---------------------------------------------------------------------------
# Parameters: PyTorch-default-style init, then packed ONCE into kernel layouts
# (block-diagonal over the two branches; all transposes / flatten folded in).
# ---------------------------------------------------------------------------

def _blockdiag(a, b):
    za = jnp.zeros(a.shape[:-1] + (b.shape[-1],), a.dtype)
    zb = jnp.zeros(b.shape[:-1] + (a.shape[-1],), b.dtype)
    return jnp.concatenate([jnp.concatenate([a, za], axis=-1),
                            jnp.concatenate([zb, b], axis=-1)], axis=-2)


def _pack_params(r):
    conv1_w = lambda w: w.reshape(32, 9).T                              # (9, 32)
    conv2_w = lambda w: w.transpose(2, 3, 1, 0).reshape(9, 32, 64)      # (k, ci, co)
    # fc3 consumes torch's NCHW flatten f = c*4 + (hp*2+wp); repack as (s, c, o).
    fc3_w = lambda w: w.T.reshape(64, 4, 128).transpose(1, 0, 2)        # (4, 64, 128)
    cat = lambda a, b: jnp.concatenate([a, b], axis=-1)
    return dict(
        w1=_blockdiag(conv1_w(r["conv1_1_w"]), conv1_w(r["conv1_2_w"])),  # (18, 64)
        b1=cat(r["conv1_1_b"], r["conv1_2_b"]).reshape(1, 64),
        w2=_blockdiag(conv2_w(r["conv2_1_w"]), conv2_w(r["conv2_2_w"])),  # (9, 64, 128)
        b2=cat(r["conv2_1_b"], r["conv2_2_b"]).reshape(1, 128),
        w3=_blockdiag(fc3_w(r["fc3_1_w"]), fc3_w(r["fc3_2_w"])),          # (4, 128, 256)
        b3=cat(r["fc3_1_b"], r["fc3_2_b"]).reshape(1, 256),
        w4=_blockdiag(r["fc4_1_w"].T, r["fc4_2_w"].T),                    # (256, 20)
        b4=cat(r["fc4_1_b"], r["fc4_2_b"]).reshape(1, 20),
        w5=r["fc5_w"].T,                                                  # (20, 128)
        b5=r["fc5_b"].reshape(1, 128),
        w6=r["fc6_w"].T,                                                  # (128, 2)
        b6=r["fc6_b"].reshape(1, 2),
    )


def init_params(key):
    specs = {
        "conv1_1": ((32, 1, 3, 3), (32,), 1 * 9),
        "conv1_2": ((32, 1, 3, 3), (32,), 1 * 9),
        "conv2_1": ((64, 32, 3, 3), (64,), 32 * 9),
        "conv2_2": ((64, 32, 3, 3), (64,), 32 * 9),
        "fc3_1": ((128, 256), (128,), 256),
        "fc3_2": ((128, 256), (128,), 256),
        "fc4_1": ((10, 128), (10,), 128),
        "fc4_2": ((10, 128), (10,), 128),
        "fc5": ((128, 20), (128,), 20),
        "fc6": ((2, 128), (2,), 128),
    }
    raw = {}
    keys = jax.random.split(key, 2 * len(specs))
    for i, (name, (wshape, bshape, fan_in)) in enumerate(specs.items()):
        bound = 1.0 / math.sqrt(fan_in)
        raw[name + "_w"] = jax.random.uniform(keys[2 * i], wshape, jnp.float32,
                                              -bound, bound)
        raw[name + "_b"] = jax.random.uniform(keys[2 * i + 1], bshape, jnp.float32,
                                              -bound, bound)
    return _pack_params(raw)


if __name__ == "__main__":
    key = jax.random.PRNGKey(0)
    pkey, xkey = jax.random.split(key)
    params = init_params(pkey)
    x = jax.random.normal(xkey, (2, 2, 14, 14), dtype=jnp.float32)

    fwd = jax.jit(net_al_forward)
    out, x1_aux, x2_aux = fwd(params, x)
    jax.block_until_ready((out, x1_aux, x2_aux))

    assert out.shape == (2, 2)
    assert x1_aux.shape == (2, 10)
    assert x2_aux.shape == (2, 10)
    print("KERNEL_OK")
</pallas_src>

<mosaic_0001>
module attributes {stable_mosaic.version = 11 : i64} {
  func.func @_netal_kernel(%arg0: i32, %arg1: memref<1152x18xf32, #tpu.memory_space<vmem>>, %arg2: memref<18x64xf32, #tpu.memory_space<vmem>>, %arg3: memref<1x64xf32, #tpu.memory_space<vmem>>, %arg4: memref<9x64x128xf32, #tpu.memory_space<vmem>>, %arg5: memref<1x128xf32, #tpu.memory_space<vmem>>, %arg6: memref<4x128x256xf32, #tpu.memory_space<vmem>>, %arg7: memref<1x256xf32, #tpu.memory_space<vmem>>, %arg8: memref<256x20xf32, #tpu.memory_space<vmem>>, %arg9: memref<1x20xf32, #tpu.memory_space<vmem>>, %arg10: memref<20x128xf32, #tpu.memory_space<vmem>>, %arg11: memref<1x128xf32, #tpu.memory_space<vmem>>, %arg12: memref<128x2xf32, #tpu.memory_space<vmem>>, %arg13: memref<1x2xf32, #tpu.memory_space<vmem>>, %arg14: memref<2x2xf32, #tpu.memory_space<vmem>>, %arg15: memref<2x20xf32, #tpu.memory_space<vmem>>) attributes {dimension_semantics = [#tpu.dimension_semantics<arbitrary>], iteration_bounds = array<i64: 1>, scalar_prefetch = 0 : i64, scratch_operands = 0 : i64, tpu.core_type = #tpu.core_type<tc>, window_params = [{pipeline_mode = #tpu.pipeline_mode<synchronous>, transform_indices = @transform_0, window_bounds = array<i64: 1152, 18>}, {pipeline_mode = #tpu.pipeline_mode<synchronous>, transform_indices = @transform_1, window_bounds = array<i64: 18, 64>}, {pipeline_mode = #tpu.pipeline_mode<synchronous>, transform_indices = @transform_2, window_bounds = array<i64: 1, 64>}, {pipeline_mode = #tpu.pipeline_mode<synchronous>, transform_indices = @transform_3, window_bounds = array<i64: 9, 64, 128>}, {pipeline_mode = #tpu.pipeline_mode<synchronous>, transform_indices = @transform_4, window_bounds = array<i64: 1, 128>}, {pipeline_mode = #tpu.pipeline_mode<synchronous>, transform_indices = @transform_5, window_bounds = array<i64: 4, 128, 256>}, {pipeline_mode = #tpu.pipeline_mode<synchronous>, transform_indices = @transform_6, window_bounds = array<i64: 1, 256>}, {pipeline_mode = #tpu.pipeline_mode<synchronous>, transform_indices = @transform_7, window_bounds = array<i64: 256, 20>}, {pipeline_mode = #tpu.pipeline_mode<synchronous>, transform_indices = @transform_8, window_bounds = array<i64: 1, 20>}, {pipeline_mode = #tpu.pipeline_mode<synchronous>, transform_indices = @transform_9, window_bounds = array<i64: 20, 128>}, {pipeline_mode = #tpu.pipeline_mode<synchronous>, transform_indices = @transform_10, window_bounds = array<i64: 1, 128>}, {pipeline_mode = #tpu.pipeline_mode<synchronous>, transform_indices = @transform_11, window_bounds = array<i64: 128, 2>}, {pipeline_mode = #tpu.pipeline_mode<synchronous>, transform_indices = @transform_12, window_bounds = array<i64: 1, 2>}, {pipeline_mode = #tpu.pipeline_mode<synchronous>, transform_indices = @transform_13, window_bounds = array<i64: 2, 2>}, {pipeline_mode = #tpu.pipeline_mode<synchronous>, transform_indices = @transform_14, window_bounds = array<i64: 2, 20>}]} {
    %c0 = arith.constant 0 : index
    %c0_0 = arith.constant 0 : index
    %0 = vector.load %arg1[%c0, %c0_0] : memref<1152x18xf32, #tpu.memory_space<vmem>>, vector<1152x18xf32>
    %c0_1 = arith.constant 0 : index
    %c0_2 = arith.constant 0 : index
    %1 = vector.load %arg2[%c0_1, %c0_2] : memref<18x64xf32, #tpu.memory_space<vmem>>, vector<18x64xf32>
    %cst = arith.constant dense<0.000000e+00> : vector<1152x64xf32>
    %2 = tpu.matmul %0, %1, %cst {dimension_numbers = #tpu.dot_dimension_numbers<[1], [0], [0], [1], [0, 0, 1, 1], [], []>} : vector<1152x18xf32>, vector<18x64xf32>, vector<1152x64xf32> -> vector<1152x64xf32>
    %3 = vector.extract_strided_slice %2 {offsets = [0, 0], sizes = [288, 64], strides = [1, 1]} : vector<1152x64xf32> to vector<288x64xf32>
    %4 = vector.extract_strided_slice %2 {offsets = [288, 0], sizes = [288, 64], strides = [1, 1]} : vector<1152x64xf32> to vector<288x64xf32>
    %5 = arith.maximumf %3, %4 : vector<288x64xf32>
    %6 = vector.extract_strided_slice %2 {offsets = [576, 0], sizes = [288, 64], strides = [1, 1]} : vector<1152x64xf32> to vector<288x64xf32>
    %7 = arith.maximumf %5, %6 : vector<288x64xf32>
    %8 = vector.extract_strided_slice %2 {offsets = [864, 0], sizes = [288, 64], strides = [1, 1]} : vector<1152x64xf32> to vector<288x64xf32>
    %9 = arith.maximumf %7, %8 : vector<288x64xf32>
    %c0_3 = arith.constant 0 : index
    %c0_4 = arith.constant 0 : index
    %10 = vector.load %arg3[%c0_3, %c0_4] : memref<1x64xf32, #tpu.memory_space<vmem>>, vector<1x64xf32>
    %11 = vector.broadcast %10 : vector<1x64xf32> to vector<288x64xf32>
    %12 = arith.addf %9, %11 : vector<288x64xf32>
    %cst_5 = arith.constant 0.000000e+00 : f32
    %13 = vector.broadcast %cst_5 : f32 to vector<288x64xf32>
    %14 = arith.maximumf %12, %13 : vector<288x64xf32>
    %15 = vector.extract_strided_slice %14 {offsets = [0, 0], sizes = [192, 64], strides = [1, 1]} : vector<288x64xf32> to vector<192x64xf32>
    %c0_6 = arith.constant 0 : index
    %c0_7 = arith.constant 0 : index
    %c0_8 = arith.constant 0 : index
    %16 = vector.load %arg4[%c0_6, %c0_7, %c0_8] : memref<9x64x128xf32, #tpu.memory_space<vmem>>, vector<1x64x128xf32>
    %17 = vector.shape_cast %16 : vector<1x64x128xf32> to vector<64x128xf32>
    %cst_9 = arith.constant dense<0.000000e+00> : vector<192x128xf32>
    %18 = tpu.matmul %15, %17, %cst_9 {dimension_numbers = #tpu.dot_dimension_numbers<[1], [0], [0], [1], [0, 0, 1, 1], [], []>} : vector<192x64xf32>, vector<64x128xf32>, vector<192x128xf32> -> vector<192x128xf32>
    %19 = vector.extract_strided_slice %18 {offsets = [0, 0], sizes = [32, 128], strides = [1, 1]} : vector<192x128xf32> to vector<32x128xf32>
    %20 = vector.extract_strided_slice %18 {offsets = [48, 0], sizes = [32, 128], strides = [1, 1]} : vector<192x128xf32> to vector<32x128xf32>
    %21 = vector.extract_strided_slice %18 {offsets = [96, 0], sizes = [32, 128], strides = [1, 1]} : vector<192x128xf32> to vector<32x128xf32>
    %22 = vector.extract_strided_slice %18 {offsets = [144, 0], sizes = [32, 128], strides = [1, 1]} : vector<192x128xf32> to vector<32x128xf32>
    %c1 = arith.constant 1 : index
    %c0_10 = arith.constant 0 : index
    %c0_11 = arith.constant 0 : index
    %23 = vector.load %arg4[%c1, %c0_10, %c0_11] : memref<9x64x128xf32, #tpu.memory_space<vmem>>, vector<1x64x128xf32>
    %24 = vector.shape_cast %23 : vector<1x64x128xf32> to vector<64x128xf32>
    %cst_12 = arith.constant dense<0.000000e+00> : vector<192x128xf32>
    %25 = tpu.matmul %15, %24, %cst_12 {dimension_numbers = #tpu.dot_dimension_numbers<[1], [0], [0], [1], [0, 0, 1, 1], [], []>} : vector<192x64xf32>, vector<64x128xf32>, vector<192x128xf32> -> vector<192x128xf32>
    %26 = vector.extract_strided_slice %25 {offsets = [8, 0], sizes = [32, 128], strides = [1, 1]} : vector<192x128xf32> to vector<32x128xf32>
    %27 = arith.addf %19, %26 : vector<32x128xf32>
    %28 = vector.extract_strided_slice %25 {offsets = [56, 0], sizes = [32, 128], strides = [1, 1]} : vector<192x128xf32> to vector<32x128xf32>
    %29 = arith.addf %20, %28 : vector<32x128xf32>
    %30 = vector.extract_strided_slice %25 {offsets = [104, 0], sizes = [32, 128], strides = [1, 1]} : vector<192x128xf32> to vector<32x128xf32>
    %31 = arith.addf %21, %30 : vector<32x128xf32>
    %32 = vector.extract_strided_slice %25 {offsets = [152, 0], sizes = [32, 128], strides = [1, 1]} : vector<192x128xf32> to vector<32x128xf32>
    %33 = arith.addf %22, %32 : vector<32x128xf32>
    %c2 = arith.constant 2 : index
    %c0_13 = arith.constant 0 : index
    %c0_14 = arith.constant 0 : index
    %34 = vector.load %arg4[%c2, %c0_13, %c0_14] : memref<9x64x128xf32, #tpu.memory_space<vmem>>, vector<1x64x128xf32>
    %35 = vector.shape_cast %34 : vector<1x64x128xf32> to vector<64x128xf32>
    %cst_15 = arith.constant dense<0.000000e+00> : vector<192x128xf32>
    %36 = tpu.matmul %15, %35, %cst_15 {dimension_numbers = #tpu.dot_dimension_numbers<[1], [0], [0], [1], [0, 0, 1, 1], [], []>} : vector<192x64xf32>, vector<64x128xf32>, vector<192x128xf32> -> vector<192x128xf32>
    %37 = vector.extract_strided_slice %36 {offsets = [16, 0], sizes = [32, 128], strides = [1, 1]} : vector<192x128xf32> to vector<32x128xf32>
    %38 = arith.addf %27, %37 : vector<32x128xf32>
    %39 = vector.extract_strided_slice %36 {offsets = [64, 0], sizes = [32, 128], strides = [1, 1]} : vector<192x128xf32> to vector<32x128xf32>
    %40 = arith.addf %29, %39 : vector<32x128xf32>
    %41 = vector.extract_strided_slice %36 {offsets = [112, 0], sizes = [32, 128], strides = [1, 1]} : vector<192x128xf32> to vector<32x128xf32>
    %42 = arith.addf %31, %41 : vector<32x128xf32>
    %43 = vector.extract_strided_slice %36 {offsets = [160, 0], sizes = [32, 128], strides = [1, 1]} : vector<192x128xf32> to vector<32x128xf32>
    %44 = arith.addf %33, %43 : vector<32x128xf32>
    %45 = vector.extract_strided_slice %14 {offsets = [48, 0], sizes = [192, 64], strides = [1, 1]} : vector<288x64xf32> to vector<192x64xf32>
    %c3 = arith.constant 3 : index
    %c0_16 = arith.constant 0 : index
    %c0_17 = arith.constant 0 : index
    %46 = vector.load %arg4[%c3, %c0_16, %c0_17] : memref<9x64x128xf32, #tpu.memory_space<vmem>>, vector<1x64x128xf32>
    %47 = vector.shape_cast %46 : vector<1x64x128xf32> to vector<64x128xf32>
    %cst_18 = arith.constant dense<0.000000e+00> : vector<192x128xf32>
    %48 = tpu.matmul %45, %47, %cst_18 {dimension_numbers = #tpu.dot_dimension_numbers<[1], [0], [0], [1], [0, 0, 1, 1], [], []>} : vector<192x64xf32>, vector<64x128xf32>, vector<192x128xf32> -> vector<192x128xf32>
    %49 = vector.extract_strided_slice %48 {offsets = [0, 0], sizes = [32, 128], strides = [1, 1]} : vector<192x128xf32> to vector<32x128xf32>
    %50 = arith.addf %38, %49 : vector<32x128xf32>
    %51 = vector.extract_strided_slice %48 {offsets = [48, 0], sizes = [32, 128], strides = [1, 1]} : vector<192x128xf32> to vector<32x128xf32>
    %52 = arith.addf %40, %51 : vector<32x128xf32>
    %53 = vector.extract_strided_slice %48 {offsets = [96, 0], sizes = [32, 128], strides = [1, 1]} : vector<192x128xf32> to vector<32x128xf32>
    %54 = arith.addf %42, %53 : vector<32x128xf32>
    %55 = vector.extract_strided_slice %48 {offsets = [144, 0], sizes = [32, 128], strides = [1, 1]} : vector<192x128xf32> to vector<32x128xf32>
    %56 = arith.addf %44, %55 : vector<32x128xf32>
    %c4 = arith.constant 4 : index
    %c0_19 = arith.constant 0 : index
    %c0_20 = arith.constant 0 : index
    %57 = vector.load %arg4[%c4, %c0_19, %c0_20] : memref<9x64x128xf32, #tpu.memory_space<vmem>>, vector<1x64x128xf32>
    %58 = vector.shape_cast %57 : vector<1x64x128xf32> to vector<64x128xf32>
    %cst_21 = arith.constant dense<0.000000e+00> : vector<192x128xf32>
    %59 = tpu.matmul %45, %58, %cst_21 {dimension_numbers = #tpu.dot_dimension_numbers<[1], [0], [0], [1], [0, 0, 1, 1], [], []>} : vector<192x64xf32>, vector<64x128xf32>, vector<192x128xf32> -> vector<192x128xf32>
    %60 = vector.extract_strided_slice %59 {offsets = [8, 0], sizes = [32, 128], strides = [1, 1]} : vector<192x128xf32> to vector<32x128xf32>
    %61 = arith.addf %50, %60 : vector<32x128xf32>
    %62 = vector.extract_strided_slice %59 {offsets = [56, 0], sizes = [32, 128], strides = [1, 1]} : vector<192x128xf32> to vector<32x128xf32>
    %63 = arith.addf %52, %62 : vector<32x128xf32>
    %64 = vector.extract_strided_slice %59 {offsets = [104, 0], sizes = [32, 128], strides = [1, 1]} : vector<192x128xf32> to vector<32x128xf32>
    %65 = arith.addf %54, %64 : vector<32x128xf32>
    %66 = vector.extract_strided_slice %59 {offsets = [152, 0], sizes = [32, 128], strides = [1, 1]} : vector<192x128xf32> to vector<32x128xf32>
    %67 = arith.addf %56, %66 : vector<32x128xf32>
    %c5 = arith.constant 5 : index
    %c0_22 = arith.constant 0 : index
    %c0_23 = arith.constant 0 : index
    %68 = vector.load %arg4[%c5, %c0_22, %c0_23] : memref<9x64x128xf32, #tpu.memory_space<vmem>>, vector<1x64x128xf32>
    %69 = vector.shape_cast %68 : vector<1x64x128xf32> to vector<64x128xf32>
    %cst_24 = arith.constant dense<0.000000e+00> : vector<192x128xf32>
    %70 = tpu.matmul %45, %69, %cst_24 {dimension_numbers = #tpu.dot_dimension_numbers<[1], [0], [0], [1], [0, 0, 1, 1], [], []>} : vector<192x64xf32>, vector<64x128xf32>, vector<192x128xf32> -> vector<192x128xf32>
    %71 = vector.extract_strided_slice %70 {offsets = [16, 0], sizes = [32, 128], strides = [1, 1]} : vector<192x128xf32> to vector<32x128xf32>
    %72 = arith.addf %61, %71 : vector<32x128xf32>
    %73 = vector.extract_strided_slice %70 {offsets = [64, 0], sizes = [32, 128], strides = [1, 1]} : vector<192x128xf32> to vector<32x128xf32>
    %74 = arith.addf %63, %73 : vector<32x128xf32>
    %75 = vector.extract_strided_slice %70 {offsets = [112, 0], sizes = [32, 128], strides = [1, 1]} : vector<192x128xf32> to vector<32x128xf32>
    %76 = arith.addf %65, %75 : vector<32x128xf32>
    %77 = vector.extract_strided_slice %70 {offsets = [160, 0], sizes = [32, 128], strides = [1, 1]} : vector<192x128xf32> to vector<32x128xf32>
    %78 = arith.addf %67, %77 : vector<32x128xf32>
    %79 = vector.extract_strided_slice %14 {offsets = [96, 0], sizes = [192, 64], strides = [1, 1]} : vector<288x64xf32> to vector<192x64xf32>
    %c6 = arith.constant 6 : index
    %c0_25 = arith.constant 0 : index
    %c0_26 = arith.constant 0 : index
    %80 = vector.load %arg4[%c6, %c0_25, %c0_26] : memref<9x64x128xf32, #tpu.memory_space<vmem>>, vector<1x64x128xf32>
    %81 = vector.shape_cast %80 : vector<1x64x128xf32> to vector<64x128xf32>
    %cst_27 = arith.constant dense<0.000000e+00> : vector<192x128xf32>
    %82 = tpu.matmul %79, %81, %cst_27 {dimension_numbers = #tpu.dot_dimension_numbers<[1], [0], [0], [1], [0, 0, 1, 1], [], []>} : vector<192x64xf32>, vector<64x128xf32>, vector<192x128xf32> -> vector<192x128xf32>
    %83 = vector.extract_strided_slice %82 {offsets = [0, 0], sizes = [32, 128], strides = [1, 1]} : vector<192x128xf32> to vector<32x128xf32>
    %84 = arith.addf %72, %83 : vector<32x128xf32>
    %85 = vector.extract_strided_slice %82 {offsets = [48, 0], sizes = [32, 128], strides = [1, 1]} : vector<192x128xf32> to vector<32x128xf32>
    %86 = arith.addf %74, %85 : vector<32x128xf32>
    %87 = vector.extract_strided_slice %82 {offsets = [96, 0], sizes = [32, 128], strides = [1, 1]} : vector<192x128xf32> to vector<32x128xf32>
    %88 = arith.addf %76, %87 : vector<32x128xf32>
    %89 = vector.extract_strided_slice %82 {offsets = [144, 0], sizes = [32, 128], strides = [1, 1]} : vector<192x128xf32> to vector<32x128xf32>
    %90 = arith.addf %78, %89 : vector<32x128xf32>
    %c7 = arith.constant 7 : index
    %c0_28 = arith.constant 0 : index
    %c0_29 = arith.constant 0 : index
    %91 = vector.load %arg4[%c7, %c0_28, %c0_29] : memref<9x64x128xf32, #tpu.memory_space<vmem>>, vector<1x64x128xf32>
    %92 = vector.shape_cast %91 : vector<1x64x128xf32> to vector<64x128xf32>
    %cst_30 = arith.constant dense<0.000000e+00> : vector<192x128xf32>
    %93 = tpu.matmul %79, %92, %cst_30 {dimension_numbers = #tpu.dot_dimension_numbers<[1], [0], [0], [1], [0, 0, 1, 1], [], []>} : vector<192x64xf32>, vector<64x128xf32>, vector<192x128xf32> -> vector<192x128xf32>
    %94 = vector.extract_strided_slice %93 {offsets = [8, 0], sizes = [32, 128], strides = [1, 1]} : vector<192x128xf32> to vector<32x128xf32>
    %95 = arith.addf %84, %94 : vector<32x128xf32>
    %96 = vector.extract_strided_slice %93 {offsets = [56, 0], sizes = [32, 128], strides = [1, 1]} : vector<192x128xf32> to vector<32x128xf32>
    %97 = arith.addf %86, %96 : vector<32x128xf32>
    %98 = vector.extract_strided_slice %93 {offsets = [104, 0], sizes = [32, 128], strides = [1, 1]} : vector<192x128xf32> to vector<32x128xf32>
    %99 = arith.addf %88, %98 : vector<32x128xf32>
    %100 = vector.extract_strided_slice %93 {offsets = [152, 0], sizes = [32, 128], strides = [1, 1]} : vector<192x128xf32> to vector<32x128xf32>
    %101 = arith.addf %90, %100 : vector<32x128xf32>
    %c8 = arith.constant 8 : index
    %c0_31 = arith.constant 0 : index
    %c0_32 = arith.constant 0 : index
    %102 = vector.load %arg4[%c8, %c0_31, %c0_32] : memref<9x64x128xf32, #tpu.memory_space<vmem>>, vector<1x64x128xf32>
    %103 = vector.shape_cast %102 : vector<1x64x128xf32> to vector<64x128xf32>
    %cst_33 = arith.constant dense<0.000000e+00> : vector<192x128xf32>
    %104 = tpu.matmul %79, %103, %cst_33 {dimension_numbers = #tpu.dot_dimension_numbers<[1], [0], [0], [1], [0, 0, 1, 1], [], []>} : vector<192x64xf32>, vector<64x128xf32>, vector<192x128xf32> -> vector<192x128xf32>
    %105 = vector.extract_strided_slice %104 {offsets = [16, 0], sizes = [32, 128], strides = [1, 1]} : vector<192x128xf32> to vector<32x128xf32>
    %106 = arith.addf %95, %105 : vector<32x128xf32>
    %107 = vector.extract_strided_slice %104 {offsets = [64, 0], sizes = [32, 128], strides = [1, 1]} : vector<192x128xf32> to vector<32x128xf32>
    %108 = arith.addf %97, %107 : vector<32x128xf32>
    %109 = vector.extract_strided_slice %104 {offsets = [112, 0], sizes = [32, 128], strides = [1, 1]} : vector<192x128xf32> to vector<32x128xf32>
    %110 = arith.addf %99, %109 : vector<32x128xf32>
    %111 = vector.extract_strided_slice %104 {offsets = [160, 0], sizes = [32, 128], strides = [1, 1]} : vector<192x128xf32> to vector<32x128xf32>
    %112 = arith.addf %101, %111 : vector<32x128xf32>
    %c0_34 = arith.constant 0 : index
    %c0_35 = arith.constant 0 : index
    %113 = vector.load %arg5[%c0_34, %c0_35] : memref<1x128xf32, #tpu.memory_space<vmem>>, vector<1x128xf32>
    %114 = vector.extract_strided_slice %106 {offsets = [0, 0], sizes = [8, 128], strides = [1, 1]} : vector<32x128xf32> to vector<8x128xf32>
    %115 = vector.extract_strided_slice %106 {offsets = [8, 0], sizes = [8, 128], strides = [1, 1]} : vector<32x128xf32> to vector<8x128xf32>
    %116 = arith.maximumf %114, %115 : vector<8x128xf32>
    %117 = vector.extract_strided_slice %108 {offsets = [0, 0], sizes = [8, 128], strides = [1, 1]} : vector<32x128xf32> to vector<8x128xf32>
    %118 = vector.extract_strided_slice %108 {offsets = [8, 0], sizes = [8, 128], strides = [1, 1]} : vector<32x128xf32> to vector<8x128xf32>
    %119 = arith.maximumf %117, %118 : vector<8x128xf32>
    %120 = arith.maximumf %116, %119 : vector<8x128xf32>
    %121 = vector.broadcast %113 : vector<1x128xf32> to vector<8x128xf32>
    %122 = arith.addf %120, %121 : vector<8x128xf32>
    %cst_36 = arith.constant 0.000000e+00 : f32
    %123 = vector.broadcast %cst_36 : f32 to vector<8x128xf32>
    %124 = arith.maximumf %122, %123 : vector<8x128xf32>
    %125 = vector.extract_strided_slice %106 {offsets = [16, 0], sizes = [8, 128], strides = [1, 1]} : vector<32x128xf32> to vector<8x128xf32>
    %126 = vector.extract_strided_slice %106 {offsets = [24, 0], sizes = [8, 128], strides = [1, 1]} : vector<32x128xf32> to vector<8x128xf32>
    %127 = arith.maximumf %125, %126 : vector<8x128xf32>
    %128 = vector.extract_strided_slice %108 {offsets = [16, 0], sizes = [8, 128], strides = [1, 1]} : vector<32x128xf32> to vector<8x128xf32>
    %129 = vector.extract_strided_slice %108 {offsets = [24, 0], sizes = [8, 128], strides = [1, 1]} : vector<32x128xf32> to vector<8x128xf32>
    %130 = arith.maximumf %128, %129 : vector<8x128xf32>
    %131 = arith.maximumf %127, %130 : vector<8x128xf32>
    %132 = vector.broadcast %113 : vector<1x128xf32> to vector<8x128xf32>
    %133 = arith.addf %131, %132 : vector<8x128xf32>
    %cst_37 = arith.constant 0.000000e+00 : f32
    %134 = vector.broadcast %cst_37 : f32 to vector<8x128xf32>
    %135 = arith.maximumf %133, %134 : vector<8x128xf32>
    %136 = vector.extract_strided_slice %110 {offsets = [0, 0], sizes = [8, 128], strides = [1, 1]} : vector<32x128xf32> to vector<8x128xf32>
    %137 = vector.extract_strided_slice %110 {offsets = [8, 0], sizes = [8, 128], strides = [1, 1]} : vector<32x128xf32> to vector<8x128xf32>
    %138 = arith.maximumf %136, %137 : vector<8x128xf32>
    %139 = vector.extract_strided_slice %112 {offsets = [0, 0], sizes = [8, 128], strides = [1, 1]} : vector<32x128xf32> to vector<8x128xf32>
    %140 = vector.extract_strided_slice %112 {offsets = [8, 0], sizes = [8, 128], strides = [1, 1]} : vector<32x128xf32> to vector<8x128xf32>
    %141 = arith.maximumf %139, %140 : vector<8x128xf32>
    %142 = arith.maximumf %138, %141 : vector<8x128xf32>
    %143 = vector.broadcast %113 : vector<1x128xf32> to vector<8x128xf32>
    %144 = arith.addf %142, %143 : vector<8x128xf32>
    %cst_38 = arith.constant 0.000000e+00 : f32
    %145 = vector.broadcast %cst_38 : f32 to vector<8x128xf32>
    %146 = arith.maximumf %144, %145 : vector<8x128xf32>
    %147 = vector.extract_strided_slice %110 {offsets = [16, 0], sizes = [8, 128], strides = [1, 1]} : vector<32x128xf32> to vector<8x128xf32>
    %148 = vector.extract_strided_slice %110 {offsets = [24, 0], sizes = [8, 128], strides = [1, 1]} : vector<32x128xf32> to vector<8x128xf32>
    %149 = arith.maximumf %147, %148 : vector<8x128xf32>
    %150 = vector.extract_strided_slice %112 {offsets = [16, 0], sizes = [8, 128], strides = [1, 1]} : vector<32x128xf32> to vector<8x128xf32>
    %151 = vector.extract_strided_slice %112 {offsets = [24, 0], sizes = [8, 128], strides = [1, 1]} : vector<32x128xf32> to vector<8x128xf32>
    %152 = arith.maximumf %150, %151 : vector<8x128xf32>
    %153 = arith.maximumf %149, %152 : vector<8x128xf32>
    %154 = vector.broadcast %113 : vector<1x128xf32> to vector<8x128xf32>
    %155 = arith.addf %153, %154 : vector<8x128xf32>
    %cst_39 = arith.constant 0.000000e+00 : f32
    %156 = vector.broadcast %cst_39 : f32 to vector<8x128xf32>
    %157 = arith.maximumf %155, %156 : vector<8x128xf32>
    %c0_40 = arith.constant 0 : index
    %c0_41 = arith.constant 0 : index
    %c0_42 = arith.constant 0 : index
    %158 = vector.load %arg6[%c0_40, %c0_41, %c0_42] : memref<4x128x256xf32, #tpu.memory_space<vmem>>, vector<1x128x256xf32>
    %159 = vector.shape_cast %158 : vector<1x128x256xf32> to vector<128x256xf32>
    %cst_43 = arith.constant dense<0.000000e+00> : vector<8x256xf32>
    %160 = tpu.matmul %124, %159, %cst_43 {dimension_numbers = #tpu.dot_dimension_numbers<[1], [0], [0], [1], [0, 0, 1, 1], [], []>} : vector<8x128xf32>, vector<128x256xf32>, vector<8x256xf32> -> vector<8x256xf32>
    %c1_44 = arith.constant 1 : index
    %c0_45 = arith.constant 0 : index
    %c0_46 = arith.constant 0 : index
    %161 = vector.load %arg6[%c1_44, %c0_45, %c0_46] : memref<4x128x256xf32, #tpu.memory_space<vmem>>, vector<1x128x256xf32>
    %162 = vector.shape_cast %161 : vector<1x128x256xf32> to vector<128x256xf32>
    %cst_47 = arith.constant dense<0.000000e+00> : vector<8x256xf32>
    %163 = tpu.matmul %135, %162, %cst_47 {dimension_numbers = #tpu.dot_dimension_numbers<[1], [0], [0], [1], [0, 0, 1, 1], [], []>} : vector<8x128xf32>, vector<128x256xf32>, vector<8x256xf32> -> vector<8x256xf32>
    %164 = arith.addf %160, %163 : vector<8x256xf32>
    %c2_48 = arith.constant 2 : index
    %c0_49 = arith.constant 0 : index
    %c0_50 = arith.constant 0 : index
    %165 = vector.load %arg6[%c2_48, %c0_49, %c0_50] : memref<4x128x256xf32, #tpu.memory_space<vmem>>, vector<1x128x256xf32>
    %166 = vector.shape_cast %165 : vector<1x128x256xf32> to vector<128x256xf32>
    %cst_51 = arith.constant dense<0.000000e+00> : vector<8x256xf32>
    %167 = tpu.matmul %146, %166, %cst_51 {dimension_numbers = #tpu.dot_dimension_numbers<[1], [0], [0], [1], [0, 0, 1, 1], [], []>} : vector<8x128xf32>, vector<128x256xf32>, vector<8x256xf32> -> vector<8x256xf32>
    %168 = arith.addf %164, %167 : vector<8x256xf32>
    %c3_52 = arith.constant 3 : index
    %c0_53 = arith.constant 0 : index
    %c0_54 = arith.constant 0 : index
    %169 = vector.load %arg6[%c3_52, %c0_53, %c0_54] : memref<4x128x256xf32, #tpu.memory_space<vmem>>, vector<1x128x256xf32>
    %170 = vector.shape_cast %169 : vector<1x128x256xf32> to vector<128x256xf32>
    %cst_55 = arith.constant dense<0.000000e+00> : vector<8x256xf32>
    %171 = tpu.matmul %157, %170, %cst_55 {dimension_numbers = #tpu.dot_dimension_numbers<[1], [0], [0], [1], [0, 0, 1, 1], [], []>} : vector<8x128xf32>, vector<128x256xf32>, vector<8x256xf32> -> vector<8x256xf32>
    %172 = arith.addf %168, %171 : vector<8x256xf32>
    %c0_56 = arith.constant 0 : index
    %c0_57 = arith.constant 0 : index
    %173 = vector.load %arg7[%c0_56, %c0_57] : memref<1x256xf32, #tpu.memory_space<vmem>>, vector<1x256xf32>
    %174 = vector.broadcast %173 : vector<1x256xf32> to vector<8x256xf32>
    %175 = arith.addf %172, %174 : vector<8x256xf32>
    %cst_58 = arith.constant 0.000000e+00 : f32
    %176 = vector.broadcast %cst_58 : f32 to vector<8x256xf32>
    %177 = arith.maximumf %175, %176 : vector<8x256xf32>
    %c0_59 = arith.constant 0 : index
    %c0_60 = arith.constant 0 : index
    %178 = vector.load %arg8[%c0_59, %c0_60] : memref<256x20xf32, #tpu.memory_space<vmem>>, vector<256x20xf32>
    %cst_61 = arith.constant dense<0.000000e+00> : vector<8x20xf32>
    %179 = tpu.matmul %177, %178, %cst_61 {dimension_numbers = #tpu.dot_dimension_numbers<[1], [0], [0], [1], [0, 0, 1, 1], [], []>} : vector<8x256xf32>, vector<256x20xf32>, vector<8x20xf32> -> vector<8x20xf32>
    %c0_62 = arith.constant 0 : index
    %c0_63 = arith.constant 0 : index
    %180 = vector.load %arg9[%c0_62, %c0_63] : memref<1x20xf32, #tpu.memory_space<vmem>>, vector<1x20xf32>
    %181 = vector.broadcast %180 : vector<1x20xf32> to vector<8x20xf32>
    %182 = arith.addf %179, %181 : vector<8x20xf32>
    %183 = vector.extract_strided_slice %182 {offsets = [0, 0], sizes = [2, 20], strides = [1, 1]} : vector<8x20xf32> to vector<2x20xf32>
    %c0_64 = arith.constant 0 : index
    %c0_65 = arith.constant 0 : index
    %184 = vector.load %arg15[%c0_64, %c0_65] : memref<2x20xf32, #tpu.memory_space<vmem>>, vector<2x20xf32>
    tpu.vector_store %arg15[%c0_64, %c0_65], %183 {strides = array<i32>} : memref<2x20xf32, #tpu.memory_space<vmem>>, vector<2x20xf32>,
    %cst_66 = arith.constant 0.000000e+00 : f32
    %185 = vector.broadcast %cst_66 : f32 to vector<8x20xf32>
    %186 = arith.maximumf %182, %185 : vector<8x20xf32>
    %c0_67 = arith.constant 0 : index
    %c0_68 = arith.constant 0 : index
    %187 = vector.load %arg10[%c0_67, %c0_68] : memref<20x128xf32, #tpu.memory_space<vmem>>, vector<20x128xf32>
    %cst_69 = arith.constant dense<0.000000e+00> : vector<8x128xf32>
    %188 = tpu.matmul %186, %187, %cst_69 {dimension_numbers = #tpu.dot_dimension_numbers<[1], [0], [0], [1], [0, 0, 1, 1], [], []>} : vector<8x20xf32>, vector<20x128xf32>, vector<8x128xf32> -> vector<8x128xf32>
    %c0_70 = arith.constant 0 : index
    %c0_71 = arith.constant 0 : index
    %189 = vector.load %arg11[%c0_70, %c0_71] : memref<1x128xf32, #tpu.memory_space<vmem>>, vector<1x128xf32>
    %190 = vector.broadcast %189 : vector<1x128xf32> to vector<8x128xf32>
    %191 = arith.addf %188, %190 : vector<8x128xf32>
    %cst_72 = arith.constant 0.000000e+00 : f32
    %192 = vector.broadcast %cst_72 : f32 to vector<8x128xf32>
    %193 = arith.maximumf %191, %192 : vector<8x128xf32>
    %c0_73 = arith.constant 0 : index
    %c0_74 = arith.constant 0 : index
    %194 = vector.load %arg12[%c0_73, %c0_74] : memref<128x2xf32, #tpu.memory_space<vmem>>, vector<128x2xf32>
    %cst_75 = arith.constant dense<0.000000e+00> : vector<8x2xf32>
    %195 = tpu.matmul %193, %194, %cst_75 {dimension_numbers = #tpu.dot_dimension_numbers<[1], [0], [0], [1], [0, 0, 1, 1], [], []>} : vector<8x128xf32>, vector<128x2xf32>, vector<8x2xf32> -> vector<8x2xf32>
    %c0_76 = arith.constant 0 : index
    %c0_77 = arith.constant 0 : index
    %196 = vector.load %arg13[%c0_76, %c0_77] : memref<1x2xf32, #tpu.memory_space<vmem>>, vector<1x2xf32>
    %197 = vector.broadcast %196 : vector<1x2xf32> to vector<8x2xf32>
    %198 = arith.addf %195, %197 : vector<8x2xf32>
    %199 = vector.extract_strided_slice %198 {offsets = [0, 0], sizes = [2, 2], strides = [1, 1]} : vector<8x2xf32> to vector<2x2xf32>
    %c0_78 = arith.constant 0 : index
    %c0_79 = arith.constant 0 : index
    %200 = vector.load %arg14[%c0_78, %c0_79] : memref<2x2xf32, #tpu.memory_space<vmem>>, vector<2x2xf32>
    tpu.vector_store %arg14[%c0_78, %c0_79], %199 {strides = array<i32>} : memref<2x2xf32, #tpu.memory_space<vmem>>, vector<2x2xf32>,
    return
  }
  func.func @transform_0(%arg0: i32) -> (i32, i32) {
    %c0_i32 = arith.constant 0 : i32
    %c0_i32_0 = arith.constant 0 : i32
    %c0_i32_1 = arith.constant 0 : i32
    return %c0_i32, %c0_i32_0 : i32, i32
  }
  func.func @transform_1(%arg0: i32) -> (i32, i32) {
    %c0_i32 = arith.constant 0 : i32
    %c0_i32_0 = arith.constant 0 : i32
    %c0_i32_1 = arith.constant 0 : i32
    return %c0_i32, %c0_i32_0 : i32, i32
  }
  func.func @transform_2(%arg0: i32) -> (i32, i32) {
    %c0_i32 = arith.constant 0 : i32
    %c0_i32_0 = arith.constant 0 : i32
    %c0_i32_1 = arith.constant 0 : i32
    return %c0_i32, %c0_i32_0 : i32, i32
  }
  func.func @transform_3(%arg0: i32) -> (i32, i32, i32) {
    %c0_i32 = arith.constant 0 : i32
    %c0_i32_0 = arith.constant 0 : i32
    %c0_i32_1 = arith.constant 0 : i32
    %c0_i32_2 = arith.constant 0 : i32
    return %c0_i32, %c0_i32_0, %c0_i32_1 : i32, i32, i32
  }
  func.func @transform_4(%arg0: i32) -> (i32, i32) {
    %c0_i32 = arith.constant 0 : i32
    %c0_i32_0 = arith.constant 0 : i32
    %c0_i32_1 = arith.constant 0 : i32
    return %c0_i32, %c0_i32_0 : i32, i32
  }
  func.func @transform_5(%arg0: i32) -> (i32, i32, i32) {
    %c0_i32 = arith.constant 0 : i32
    %c0_i32_0 = arith.constant 0 : i32
    %c0_i32_1 = arith.constant 0 : i32
    %c0_i32_2 = arith.constant 0 : i32
    return %c0_i32, %c0_i32_0, %c0_i32_1 : i32, i32, i32
  }
  func.func @transform_6(%arg0: i32) -> (i32, i32) {
    %c0_i32 = arith.constant 0 : i32
    %c0_i32_0 = arith.constant 0 : i32
    %c0_i32_1 = arith.constant 0 : i32
    return %c0_i32, %c0_i32_0 : i32, i32
  }
  func.func @transform_7(%arg0: i32) -> (i32, i32) {
    %c0_i32 = arith.constant 0 : i32
    %c0_i32_0 = arith.constant 0 : i32
    %c0_i32_1 = arith.constant 0 : i32
    return %c0_i32, %c0_i32_0 : i32, i32
  }
  func.func @transform_8(%arg0: i32) -> (i32, i32) {
    %c0_i32 = arith.constant 0 : i32
    %c0_i32_0 = arith.constant 0 : i32
    %c0_i32_1 = arith.constant 0 : i32
    return %c0_i32, %c0_i32_0 : i32, i32
  }
  func.func @transform_9(%arg0: i32) -> (i32, i32) {
    %c0_i32 = arith.constant 0 : i32
    %c0_i32_0 = arith.constant 0 : i32
    %c0_i32_1 = arith.constant 0 : i32
    return %c0_i32, %c0_i32_0 : i32, i32
  }
  func.func @transform_10(%arg0: i32) -> (i32, i32) {
    %c0_i32 = arith.constant 0 : i32
    %c0_i32_0 = arith.constant 0 : i32
    %c0_i32_1 = arith.constant 0 : i32
    return %c0_i32, %c0_i32_0 : i32, i32
  }
  func.func @transform_11(%arg0: i32) -> (i32, i32) {
    %c0_i32 = arith.constant 0 : i32
    %c0_i32_0 = arith.constant 0 : i32
    %c0_i32_1 = arith.constant 0 : i32
    return %c0_i32, %c0_i32_0 : i32, i32
  }
  func.func @transform_12(%arg0: i32) -> (i32, i32) {
    %c0_i32 = arith.constant 0 : i32
    %c0_i32_0 = arith.constant 0 : i32
    %c0_i32_1 = arith.constant 0 : i32
    return %c0_i32, %c0_i32_0 : i32, i32
  }
  func.func @transform_13(%arg0: i32) -> (i32, i32) {
    %c0_i32 = arith.constant 0 : i32
    %c0_i32_0 = arith.constant 0 : i32
    %c0_i32_1 = arith.constant 0 : i32
    return %c0_i32, %c0_i32_0 : i32, i32
  }
  func.func @transform_14(%arg0: i32) -> (i32, i32) {
    %c0_i32 = arith.constant 0 : i32
    %c0_i32_0 = arith.constant 0 : i32
    %c0_i32_1 = arith.constant 0 : i32
    return %c0_i32, %c0_i32_0 : i32, i32
  }
}

</mosaic_0001>

<llo_original>
// kernel: net_al_forward.1
$region0: #{net_al_forward.1}
  #allocation0 [shape = 'u32[]', space=smem, size = 0x4, offset = 0x4, fixed_abs, tag = 'smem constant byte address 0x4 - core index']
  #allocation1 [shape = 'u32[144,128]{1,0:T(1,128)}', space=vmem, size = 0x12000, scoped, tag = 'internal scratch']
  %s0 = inlined_call_operand.vmem [shape: f32[1152,18], index: 0, kind: input, shape index: {}]
  %s1 = inlined_call_operand.vmem [shape: f32[18,64], index: 1, kind: input, shape index: {}]
  %s2 = inlined_call_operand.vmem [shape: f32[1,64], index: 2, kind: input, shape index: {}]
  %s3 = inlined_call_operand.vmem [shape: f32[9,64,128], index: 3, kind: input, shape index: {}]
  %s4 = inlined_call_operand.vmem [shape: f32[1,128], index: 4, kind: input, shape index: {}]
  %s5 = inlined_call_operand.vmem [shape: f32[4,128,256], index: 5, kind: input, shape index: {}]
  %s6 = inlined_call_operand.vmem [shape: f32[1,256], index: 6, kind: input, shape index: {}]
  %s7 = inlined_call_operand.vmem [shape: f32[256,20], index: 7, kind: input, shape index: {}]
  %s8 = inlined_call_operand.vmem [shape: f32[1,20], index: 8, kind: input, shape index: {}]
  %s9 = inlined_call_operand.vmem [shape: f32[20,128], index: 9, kind: input, shape index: {}]
  %s10 = inlined_call_operand.vmem [shape: f32[1,128], index: 10, kind: input, shape index: {}]
  %s11 = inlined_call_operand.vmem [shape: f32[128,2], index: 11, kind: input, shape index: {}]
  %s12 = inlined_call_operand.vmem [shape: f32[1,2], index: 12, kind: input, shape index: {}]
  %s13 = inlined_call_operand.hbm [shape: f32[2,2], index: 13, kind: output, shape index: {0}]
  %s14 = inlined_call_operand.vmem [shape: f32[2,20], index: 14, kind: output, shape index: {1}]
  %15 = xla_tuple %s13, %s14
  %s16 = sld [smem:[#allocation0]]
  $region70: #{net_al_forward.1} parent=0
    _
  %s18 = ssub.s32 1, %s16
  %s19 = scalar_select 0, %s18, %s16
  $region1: #{net_al_forward.1} parent=0
    #allocation2 [shape = 'u8[1024]{0}', space=vmem, size = 0x400, scoped, tag = 'output window, operand 0, single buffered']
    #allocation3 [shape = 's32[1]{0}', space=sflag, size = 0x4, scoped, tag = 'scoped memory for net_al_forward.1']
    %20 = vsyncpa [#allocation3], 0
    // Predicated region
    $region2: #{net_al_forward.1} parent=1 // pred_check
      _
    $region3: #{net_al_forward.1} parent=1 // pred_check_branch
      %22 = sbr.rel (0) target = $region5
    $region4: #{net_al_forward.1} parent=1 // pred_region
      _
    $region5: #{net_al_forward.1} parent=1 // pred_fallthru
      _
    // Predicated region
    $region6: #{net_al_forward.1} parent=1 // pred_check
      _
    $region7: #{net_al_forward.1} parent=1 // pred_check_branch
      %24 = sbr.rel (0) target = $region9
    $region8: #{net_al_forward.1} parent=1 // pred_region
      _
    $region9: #{net_al_forward.1} parent=1 // pred_fallthru
      _
    // Predicated region
    $region10: #{net_al_forward.1} parent=1 // pred_check
      _
    $region11: #{net_al_forward.1} parent=1 // pred_check_branch
      %26 = sbr.rel (0) target = $region13
    $region12: #{net_al_forward.1} parent=1 // pred_region
      _
    $region13: #{net_al_forward.1} parent=1 // pred_fallthru
      _
    // Predicated region
    $region14: #{net_al_forward.1} parent=1 // pred_check
      _
    $region15: #{net_al_forward.1} parent=1 // pred_check_branch
      %28 = sbr.rel (0) target = $region17
    $region16: #{net_al_forward.1} parent=1 // pred_region
      _
    $region17: #{net_al_forward.1} parent=1 // pred_fallthru
      _
    // Predicated region
    $region18: #{net_al_forward.1} parent=1 // pred_check
      _
    $region19: #{net_al_forward.1} parent=1 // pred_check_branch
      %30 = sbr.rel (0) target = $region21
    $region20: #{net_al_forward.1} parent=1 // pred_region
      _
    $region21: #{net_al_forward.1} parent=1 // pred_fallthru
      _
    // Predicated region
    $region22: #{net_al_forward.1} parent=1 // pred_check
      _
    $region23: #{net_al_forward.1} parent=1 // pred_check_branch
      %32 = sbr.rel (0) target = $region25
    $region24: #{net_al_forward.1} parent=1 // pred_region
      _
    $region25: #{net_al_forward.1} parent=1 // pred_fallthru
      _
    // Predicated region
    $region26: #{net_al_forward.1} parent=1 // pred_check
      _
    $region27: #{net_al_forward.1} parent=1 // pred_check_branch
      %34 = sbr.rel (0) target = $region29
    $region28: #{net_al_forward.1} parent=1 // pred_region
      _
    $region29: #{net_al_forward.1} parent=1 // pred_fallthru
      _
    // Predicated region
    $region30: #{net_al_forward.1} parent=1 // pred_check
      _
    $region31: #{net_al_forward.1} parent=1 // pred_check_branch
      %36 = sbr.rel (0) target = $region33
    $region32: #{net_al_forward.1} parent=1 // pred_region
      _
    $region33: #{net_al_forward.1} parent=1 // pred_fallthru
      _
    // Predicated region
    $region34: #{net_al_forward.1} parent=1 // pred_check
      _
    $region35: #{net_al_forward.1} parent=1 // pred_check_branch
      %38 = sbr.rel (0) target = $region37
    $region36: #{net_al_forward.1} parent=1 // pred_region
      _
    $region37: #{net_al_forward.1} parent=1 // pred_fallthru
      _
    // Predicated region
    $region38: #{net_al_forward.1} parent=1 // pred_check
      _
    $region39: #{net_al_forward.1} parent=1 // pred_check_branch
      %40 = sbr.rel (0) target = $region41
    $region40: #{net_al_forward.1} parent=1 // pred_region
      _
    $region41: #{net_al_forward.1} parent=1 // pred_fallthru
      _
    // Predicated region
    $region42: #{net_al_forward.1} parent=1 // pred_check
      _
    $region43: #{net_al_forward.1} parent=1 // pred_check_branch
      %42 = sbr.rel (0) target = $region45
    $region44: #{net_al_forward.1} parent=1 // pred_region
      _
    $region45: #{net_al_forward.1} parent=1 // pred_fallthru
      _
    // Predicated region
    $region46: #{net_al_forward.1} parent=1 // pred_check
      _
    $region47: #{net_al_forward.1} parent=1 // pred_check_branch
      %44 = sbr.rel (0) target = $region49
    $region48: #{net_al_forward.1} parent=1 // pred_region
      _
    $region49: #{net_al_forward.1} parent=1 // pred_fallthru
      _
    // Predicated region
    $region50: #{net_al_forward.1} parent=1 // pred_check
      _
    $region51: #{net_al_forward.1} parent=1 // pred_check_branch
      %46 = sbr.rel (0) target = $region53
    $region52: #{net_al_forward.1} parent=1 // pred_region
      _
    $region53: #{net_al_forward.1} parent=1 // pred_fallthru
      _
    %v47 = vld [vmem:[%s0] sm:$0xff]
    %v48 = vld [vmem:[%s0 + $0x8] sm:$0xff]
    %v49 = vld [vmem:[%s0 + $0x10] sm:$0xff]
    %v50 = vld [vmem:[%s0 + $0x18] sm:$0xff]
    %v51 = vld [vmem:[%s0 + $0x20] sm:$0xff]
    %v52 = vld [vmem:[%s0 + $0x28] sm:$0xff]
    %v53 = vld [vmem:[%s0 + $0x30] sm:$0xff]
    %v54 = vld [vmem:[%s0 + $0x38] sm:$0xff]
    %v55 = vld [vmem:[%s0 + $0x40] sm:$0xff]
    %v56 = vld [vmem:[%s0 + $0x48] sm:$0xff]
    %v57 = vld [vmem:[%s0 + $0x50] sm:$0xff]
    %v58 = vld [vmem:[%s0 + $0x58] sm:$0xff]
    %v59 = vld [vmem:[%s0 + $0x60] sm:$0xff]
    %v60 = vld [vmem:[%s0 + $0x68] sm:$0xff]
    %v61 = vld [vmem:[%s0 + $0x70] sm:$0xff]
    %v62 = vld [vmem:[%s0 + $0x78] sm:$0xff]
    %v63 = vld [vmem:[%s0 + $0x80] sm:$0xff]
    %v64 = vld [vmem:[%s0 + $0x88] sm:$0xff]
    %v65 = vld [vmem:[%s0 + $0x90] sm:$0xff]
    %v66 = vld [vmem:[%s0 + $0x98] sm:$0xff]
    %v67 = vld [vmem:[%s0 + $0xa0] sm:$0xff]
    %v68 = vld [vmem:[%s0 + $0xa8] sm:$0xff]
    %v69 = vld [vmem:[%s0 + $0xb0] sm:$0xff]
    %v70 = vld [vmem:[%s0 + $0xb8] sm:$0xff]
    %v71 = vld [vmem:[%s0 + $0xc0] sm:$0xff]
    %v72 = vld [vmem:[%s0 + $0xc8] sm:$0xff]
    %v73 = vld [vmem:[%s0 + $0xd0] sm:$0xff]
    %v74 = vld [vmem:[%s0 + $0xd8] sm:$0xff]
    %v75 = vld [vmem:[%s0 + $0xe0] sm:$0xff]
    %v76 = vld [vmem:[%s0 + $0xe8] sm:$0xff]
    %v77 = vld [vmem:[%s0 + $0xf0] sm:$0xff]
    %v78 = vld [vmem:[%s0 + $0xf8] sm:$0xff]
    %v79 = vld [vmem:[%s0 + $0x100] sm:$0xff]
    %v80 = vld [vmem:[%s0 + $0x108] sm:$0xff]
    %v81 = vld [vmem:[%s0 + $0x110] sm:$0xff]
    %v82 = vld [vmem:[%s0 + $0x118] sm:$0xff]
    %v83 = vld [vmem:[%s0 + $0x120] sm:$0xff]
    %v84 = vld [vmem:[%s0 + $0x128] sm:$0xff]
    %v85 = vld [vmem:[%s0 + $0x130] sm:$0xff]
    %v86 = vld [vmem:[%s0 + $0x138] sm:$0xff]
    %v87 = vld [vmem:[%s0 + $0x140] sm:$0xff]
    %v88 = vld [vmem:[%s0 + $0x148] sm:$0xff]
    %v89 = vld [vmem:[%s0 + $0x150] sm:$0xff]
    %v90 = vld [vmem:[%s0 + $0x158] sm:$0xff]
    %v91 = vld [vmem:[%s0 + $0x160] sm:$0xff]
    %v92 = vld [vmem:[%s0 + $0x168] sm:$0xff]
    %v93 = vld [vmem:[%s0 + $0x170] sm:$0xff]
    %v94 = vld [vmem:[%s0 + $0x178] sm:$0xff]
    %v95 = vld [vmem:[%s0 + $0x180] sm:$0xff]
    %v96 = vld [vmem:[%s0 + $0x188] sm:$0xff]
    %v97 = vld [vmem:[%s0 + $0x190] sm:$0xff]
    %v98 = vld [vmem:[%s0 + $0x198] sm:$0xff]
    %v99 = vld [vmem:[%s0 + $0x1a0] sm:$0xff]
    %v100 = vld [vmem:[%s0 + $0x1a8] sm:$0xff]
    %v101 = vld [vmem:[%s0 + $0x1b0] sm:$0xff]
    %v102 = vld [vmem:[%s0 + $0x1b8] sm:$0xff]
    %v103 = vld [vmem:[%s0 + $0x1c0] sm:$0xff]
    %v104 = vld [vmem:[%s0 + $0x1c8] sm:$0xff]
    %v105 = vld [vmem:[%s0 + $0x1d0] sm:$0xff]
    %v106 = vld [vmem:[%s0 + $0x1d8] sm:$0xff]
    %v107 = vld [vmem:[%s0 + $0x1e0] sm:$0xff]
    %v108 = vld [vmem:[%s0 + $0x1e8] sm:$0xff]
    %v109 = vld [vmem:[%s0 + $0x1f0] sm:$0xff]
    %v110 = vld [vmem:[%s0 + $0x1f8] sm:$0xff]
    %v111 = vld [vmem:[%s0 + $0x200] sm:$0xff]
    %v112 = vld [vmem:[%s0 + $0x208] sm:$0xff]
    %v113 = vld [vmem:[%s0 + $0x210] sm:$0xff]
    %v114 = vld [vmem:[%s0 + $0x218] sm:$0xff]
    %v115 = vld [vmem:[%s0 + $0x220] sm:$0xff]
    %v116 = vld [vmem:[%s0 + $0x228] sm:$0xff]
    %v117 = vld [vmem:[%s0 + $0x230] sm:$0xff]
    %v118 = vld [vmem:[%s0 + $0x238] sm:$0xff]
    %v119 = vld [vmem:[%s0 + $0x240] sm:$0xff]
    %v120 = vld [vmem:[%s0 + $0x248] sm:$0xff]
    %v121 = vld [vmem:[%s0 + $0x250] sm:$0xff]
    %v122 = vld [vmem:[%s0 + $0x258] sm:$0xff]
    %v123 = vld [vmem:[%s0 + $0x260] sm:$0xff]
    %v124 = vld [vmem:[%s0 + $0x268] sm:$0xff]
    %v125 = vld [vmem:[%s0 + $0x270] sm:$0xff]
    %v126 = vld [vmem:[%s0 + $0x278] sm:$0xff]
    %v127 = vld [vmem:[%s0 + $0x280] sm:$0xff]
    %v128 = vld [vmem:[%s0 + $0x288] sm:$0xff]
    %v129 = vld [vmem:[%s0 + $0x290] sm:$0xff]
    %v130 = vld [vmem:[%s0 + $0x298] sm:$0xff]
    %v131 = vld [vmem:[%s0 + $0x2a0] sm:$0xff]
    %v132 = vld [vmem:[%s0 + $0x2a8] sm:$0xff]
    %v133 = vld [vmem:[%s0 + $0x2b0] sm:$0xff]
    %v134 = vld [vmem:[%s0 + $0x2b8] sm:$0xff]
    %v135 = vld [vmem:[%s0 + $0x2c0] sm:$0xff]
    %v136 = vld [vmem:[%s0 + $0x2c8] sm:$0xff]
    %v137 = vld [vmem:[%s0 + $0x2d0] sm:$0xff]
    %v138 = vld [vmem:[%s0 + $0x2d8] sm:$0xff]
    %v139 = vld [vmem:[%s0 + $0x2e0] sm:$0xff]
    %v140 = vld [vmem:[%s0 + $0x2e8] sm:$0xff]
    %v141 = vld [vmem:[%s0 + $0x2f0] sm:$0xff]
    %v142 = vld [vmem:[%s0 + $0x2f8] sm:$0xff]
    %v143 = vld [vmem:[%s0 + $0x300] sm:$0xff]
    %v144 = vld [vmem:[%s0 + $0x308] sm:$0xff]
    %v145 = vld [vmem:[%s0 + $0x310] sm:$0xff]
    %v146 = vld [vmem:[%s0 + $0x318] sm:$0xff]
    %v147 = vld [vmem:[%s0 + $0x320] sm:$0xff]
    %v148 = vld [vmem:[%s0 + $0x328] sm:$0xff]
    %v149 = vld [vmem:[%s0 + $0x330] sm:$0xff]
    %v150 = vld [vmem:[%s0 + $0x338] sm:$0xff]
    %v151 = vld [vmem:[%s0 + $0x340] sm:$0xff]
    %v152 = vld [vmem:[%s0 + $0x348] sm:$0xff]
    %v153 = vld [vmem:[%s0 + $0x350] sm:$0xff]
    %v154 = vld [vmem:[%s0 + $0x358] sm:$0xff]
    %v155 = vld [vmem:[%s0 + $0x360] sm:$0xff]
    %v156 = vld [vmem:[%s0 + $0x368] sm:$0xff]
    %v157 = vld [vmem:[%s0 + $0x370] sm:$0xff]
    %v158 = vld [vmem:[%s0 + $0x378] sm:$0xff]
    %v159 = vld [vmem:[%s0 + $0x380] sm:$0xff]
    %v160 = vld [vmem:[%s0 + $0x388] sm:$0xff]
    %v161 = vld [vmem:[%s0 + $0x390] sm:$0xff]
    %v162 = vld [vmem:[%s0 + $0x398] sm:$0xff]
    %v163 = vld [vmem:[%s0 + $0x3a0] sm:$0xff]
    %v164 = vld [vmem:[%s0 + $0x3a8] sm:$0xff]
    %v165 = vld [vmem:[%s0 + $0x3b0] sm:$0xff]
    %v166 = vld [vmem:[%s0 + $0x3b8] sm:$0xff]
    %v167 = vld [vmem:[%s0 + $0x3c0] sm:$0xff]
    %v168 = vld [vmem:[%s0 + $0x3c8] sm:$0xff]
    %v169 = vld [vmem:[%s0 + $0x3d0] sm:$0xff]
    %v170 = vld [vmem:[%s0 + $0x3d8] sm:$0xff]
    %v171 = vld [vmem:[%s0 + $0x3e0] sm:$0xff]
    %v172 = vld [vmem:[%s0 + $0x3e8] sm:$0xff]
    %v173 = vld [vmem:[%s0 + $0x3f0] sm:$0xff]
    %v174 = vld [vmem:[%s0 + $0x3f8] sm:$0xff]
    %v175 = vld [vmem:[%s0 + $0x400] sm:$0xff]
    %v176 = vld [vmem:[%s0 + $0x408] sm:$0xff]
    %v177 = vld [vmem:[%s0 + $0x410] sm:$0xff]
    %v178 = vld [vmem:[%s0 + $0x418] sm:$0xff]
    %v179 = vld [vmem:[%s0 + $0x420] sm:$0xff]
    %v180 = vld [vmem:[%s0 + $0x428] sm:$0xff]
    %v181 = vld [vmem:[%s0 + $0x430] sm:$0xff]
    %v182 = vld [vmem:[%s0 + $0x438] sm:$0xff]
    %v183 = vld [vmem:[%s0 + $0x440] sm:$0xff]
    %v184 = vld [vmem:[%s0 + $0x448] sm:$0xff]
    %v185 = vld [vmem:[%s0 + $0x450] sm:$0xff]
    %v186 = vld [vmem:[%s0 + $0x458] sm:$0xff]
    %v187 = vld [vmem:[%s0 + $0x460] sm:$0xff]
    %v188 = vld [vmem:[%s0 + $0x468] sm:$0xff]
    %v189 = vld [vmem:[%s0 + $0x470] sm:$0xff]
    %v190 = vld [vmem:[%s0 + $0x478] sm:$0xff]
    %v191 = vld [vmem:[%s1] sm:$0xff]
    %v192 = vld [vmem:[%s1 + $0x8] sm:$0xff]
    %v193 = vld [vmem:[%s1 + $0x10] sm:$0x3]
    %vm194 = vcmask 146432
    %v196 = vsel %vm194, %v47, 0
    %v199 = vsel %vm194, %v48, 0
    %v202 = vsel %vm194, %v49, 0
    %v205 = vsel %vm194, %v50, 0
    %v208 = vsel %vm194, %v51, 0
    %v211 = vsel %vm194, %v52, 0
    %v214 = vsel %vm194, %v53, 0
    %v217 = vsel %vm194, %v54, 0
    %v220 = vsel %vm194, %v55, 0
    %v223 = vsel %vm194, %v56, 0
    %v226 = vsel %vm194, %v57, 0
    %v229 = vsel %vm194, %v58, 0
    %v232 = vsel %vm194, %v59, 0
    %v235 = vsel %vm194, %v60, 0
    %v238 = vsel %vm194, %v61, 0
    %v241 = vsel %vm194, %v62, 0
    %v244 = vsel %vm194, %v63, 0
    %v247 = vsel %vm194, %v64, 0
    %v250 = vsel %vm194, %v65, 0
    %v253 = vsel %vm194, %v66, 0
    %v256 = vsel %vm194, %v67, 0
    %v259 = vsel %vm194, %v68, 0
    %v262 = vsel %vm194, %v69, 0
    %v265 = vsel %vm194, %v70, 0
    %v268 = vsel %vm194, %v71, 0
    %v271 = vsel %vm194, %v72, 0
    %v274 = vsel %vm194, %v73, 0
    %v277 = vsel %vm194, %v74, 0
    %v280 = vsel %vm194, %v75, 0
    %v283 = vsel %vm194, %v76, 0
    %v286 = vsel %vm194, %v77, 0
    %v289 = vsel %vm194, %v78, 0
    %v292 = vsel %vm194, %v79, 0
    %v295 = vsel %vm194, %v80, 0
    %v298 = vsel %vm194, %v81, 0
    %v301 = vsel %vm194, %v82, 0
    %v304 = vsel %vm194, %v83, 0
    %v307 = vsel %vm194, %v84, 0
    %v310 = vsel %vm194, %v85, 0
    %v313 = vsel %vm194, %v86, 0
    %v316 = vsel %vm194, %v87, 0
    %v319 = vsel %vm194, %v88, 0
    %v322 = vsel %vm194, %v89, 0
    %v325 = vsel %vm194, %v90, 0
    %v328 = vsel %vm194, %v91, 0
    %v331 = vsel %vm194, %v92, 0
    %v334 = vsel %vm194, %v93, 0
    %v337 = vsel %vm194, %v94, 0
    %v340 = vsel %vm194, %v95, 0
    %v343 = vsel %vm194, %v96, 0
    %v346 = vsel %vm194, %v97, 0
    %v349 = vsel %vm194, %v98, 0
    %v352 = vsel %vm194, %v99, 0
    %v355 = vsel %vm194, %v100, 0
    %v358 = vsel %vm194, %v101, 0
    %v361 = vsel %vm194, %v102, 0
    %v364 = vsel %vm194, %v103, 0
    %v367 = vsel %vm194, %v104, 0
    %v370 = vsel %vm194, %v105, 0
    %v373 = vsel %vm194, %v106, 0
    %v376 = vsel %vm194, %v107, 0
    %v379 = vsel %vm194, %v108, 0
    %v382 = vsel %vm194, %v109, 0
    %v385 = vsel %vm194, %v110, 0
    %v388 = vsel %vm194, %v111, 0
    %v391 = vsel %vm194, %v112, 0
    %v394 = vsel %vm194, %v113, 0
    %v397 = vsel %vm194, %v114, 0
    %v400 = vsel %vm194, %v115, 0
    %v403 = vsel %vm194, %v116, 0
    %v406 = vsel %vm194, %v117, 0
    %v409 = vsel %vm194, %v118, 0
    %v412 = vsel %vm194, %v119, 0
    %v415 = vsel %vm194, %v120, 0
    %v418 = vsel %vm194, %v121, 0
    %v421 = vsel %vm194, %v122, 0
    %v424 = vsel %vm194, %v123, 0
    %v427 = vsel %vm194, %v124, 0
    %v430 = vsel %vm194, %v125, 0
    %v433 = vsel %vm194, %v126, 0
    %v436 = vsel %vm194, %v127, 0
    %v439 = vsel %vm194, %v128, 0
    %v442 = vsel %vm194, %v129, 0
    %v445 = vsel %vm194, %v130, 0
    %v448 = vsel %vm194, %v131, 0
    %v451 = vsel %vm194, %v132, 0
    %v454 = vsel %vm194, %v133, 0
    %v457 = vsel %vm194, %v134, 0
    %v460 = vsel %vm194, %v135, 0
    %v463 = vsel %vm194, %v136, 0
    %v466 = vsel %vm194, %v137, 0
    %v469 = vsel %vm194, %v138, 0
    %v472 = vsel %vm194, %v139, 0
    %v475 = vsel %vm194, %v140, 0
    %v478 = vsel %vm194, %v141, 0
    %v481 = vsel %vm194, %v142, 0
    %v484 = vsel %vm194, %v143, 0
    %v487 = vsel %vm194, %v144, 0
    %v490 = vsel %vm194, %v145, 0
    %v493 = vsel %vm194, %v146, 0
    %v496 = vsel %vm194, %v147, 0
    %v499 = vsel %vm194, %v148, 0
    %v502 = vsel %vm194, %v149, 0
    %v505 = vsel %vm194, %v150, 0
    %v508 = vsel %vm194, %v151, 0
    %v511 = vsel %vm194, %v152, 0
    %v514 = vsel %vm194, %v153, 0
    %v517 = vsel %vm194, %v154, 0
    %v520 = vsel %vm194, %v155, 0
    %v523 = vsel %vm194, %v156, 0
    %v526 = vsel %vm194, %v157, 0
    %v529 = vsel %vm194, %v158, 0
    %v532 = vsel %vm194, %v159, 0
    %v535 = vsel %vm194, %v160, 0
    %v538 = vsel %vm194, %v161, 0
    %v541 = vsel %vm194, %v162, 0
    %v544 = vsel %vm194, %v163, 0
    %v547 = vsel %vm194, %v164, 0
    %v550 = vsel %vm194, %v165, 0
    %v553 = vsel %vm194, %v166, 0
    %v556 = vsel %vm194, %v167, 0
    %v559 = vsel %vm194, %v168, 0
    %v562 = vsel %vm194, %v169, 0
    %v565 = vsel %vm194, %v170, 0
    %v568 = vsel %vm194, %v171, 0
    %v571 = vsel %vm194, %v172, 0
    %v574 = vsel %vm194, %v173, 0
    %v577 = vsel %vm194, %v174, 0
    %v580 = vsel %vm194, %v175, 0
    %v583 = vsel %vm194, %v176, 0
    %v586 = vsel %vm194, %v177, 0
    %v589 = vsel %vm194, %v178, 0
    %v592 = vsel %vm194, %v179, 0
    %v595 = vsel %vm194, %v180, 0
    %v598 = vsel %vm194, %v181, 0
    %v601 = vsel %vm194, %v182, 0
    %v604 = vsel %vm194, %v183, 0
    %v607 = vsel %vm194, %v184, 0
    %v610 = vsel %vm194, %v185, 0
    %v613 = vsel %vm194, %v186, 0
    %v616 = vsel %vm194, %v187, 0
    %v619 = vsel %vm194, %v188, 0
    %v622 = vsel %vm194, %v189, 0
    %v625 = vsel %vm194, %v190, 0
    %vm627 = vcmask 1041408
    %v629 = vsel %vm627, %v193, 0
    %631 = vmatprep.subr.mxu0 0.0
    %632 = vmatpush1.msra.mxu0 0.0
    %633 = vmatprep.subr.mxu0 0.0
    %634 = vmatpush1.msra.mxu0 0.0
    %635 = vmatprep.subr.mxu0 0.0
    %636 = vmatpush1.msra.mxu0 0.0
    %637 = vmatprep.subr.mxu0 0.0
    %638 = vmatpush1.msra.mxu0 0.0
    %639 = vmatprep.subr.mxu0 0.0
    %640 = vmatpush1.msra.mxu0 0.0
    %641 = vmatprep.subr.mxu0 0.0
    %642 = vmatpush1.msra.mxu0 0.0
    %643 = vmatprep.subr.mxu0 0.0
    %644 = vmatpush1.msra.mxu0 0.0
    %645 = vmatprep.subr.mxu0 0.0
    %646 = vmatpush1.msra.mxu0 0.0
    %647 = vmatprep.subr.mxu0 0.0
    %648 = vmatpush1.msra.mxu0 0.0
    %649 = vmatprep.subr.mxu0 0.0
    %650 = vmatpush1.msra.mxu0 0.0
    %651 = vmatprep.subr.mxu0 0.0
    %652 = vmatpush1.msra.mxu0 0.0
    %653 = vmatprep.subr.mxu0 0.0
    %654 = vmatpush1.msra.mxu0 0.0
    %655 = vmatprep.subr.mxu0 0.0
    %656 = vmatpush1.msra.mxu0 0.0
    %657 = vmatprep.subr.mxu0 0.0
    %658 = vmatpush1.msra.mxu0 %v629
    %659 = vmatprep.subr.mxu0 0.0
    %660 = vmatpush1.msra.mxu0 %v192
    %661 = vmatprep.subr.mxu0 0.0
    %662 = vmatpush1.msra.mxu0 %v191
    %663 = vmatprep.subr.mxu0 0.0
    %664 = vmatpush2.msra.mxu0 0.0
    %665 = vmatprep.subr.mxu0 0.0
    %666 = vmatpush2.msra.mxu0 0.0
    %667 = vmatprep.subr.mxu0 0.0
    %668 = vmatpush2.msra.mxu0 0.0
    %669 = vmatprep.subr.mxu0 0.0
    %670 = vmatpush2.msra.mxu0 0.0
    %671 = vmatprep.subr.mxu0 0.0
    %672 = vmatpush2.msra.mxu0 0.0
    %673 = vmatprep.subr.mxu0 0.0
    %674 = vmatpush2.msra.mxu0 0.0
    %675 = vmatprep.subr.mxu0 0.0
    %676 = vmatpush2.msra.mxu0 0.0
    %677 = vmatprep.subr.mxu0 0.0
    %678 = vmatpush2.msra.mxu0 0.0
    %679 = vmatprep.subr.mxu0 0.0
    %680 = vmatpush2.msra.mxu0 0.0
    %681 = vmatprep.subr.mxu0 0.0
    %682 = vmatpush2.msra.mxu0 0.0
    %683 = vmatprep.subr.mxu0 0.0
    %684 = vmatpush2.msra.mxu0 0.0
    %685 = vmatprep.subr.mxu0 0.0
    %686 = vmatpush2.msra.mxu0 0.0
    %687 = vmatprep.subr.mxu0 0.0
    %688 = vmatpush2.msra.mxu0 0.0
    %689 = vmatprep.subr.mxu0 0.0
    %690 = vmatpush2.msra.mxu0 0.0
    %691 = vmatprep.subr.mxu0 0.0
    %692 = vmatpush2.msra.mxu0 0.0
    %693 = vmatprep.subr.mxu0 0.0
    %694 = vmatpush2.msra.mxu0 0.0
    %695 = vmatprep.mubr.f32.mxu0 0.0
    %696 = vmatmul.mubr.f32.gmra.mxu0 %v196
    %v697 = vpop.f32.mrf.mxu0
    %v698 = vadd.f32 0.0, %v697
    %v699 = vpop.f32.mrf.mxu0
    %700 = vmatprep.mubr.f32.mxu0 0.0
    %701 = vmatmul.mubr.f32.gmra.mxu0 %v199
    %v702 = vpop.f32.mrf.mxu0
    %v703 = vadd.f32 0.0, %v702
    %v704 = vpop.f32.mrf.mxu0
    %705 = vmatprep.mubr.f32.mxu0 0.0
    %706 = vmatmul.mubr.f32.gmra.mxu0 %v202
    %v707 = vpop.f32.mrf.mxu0
    %v708 = vadd.f32 0.0, %v707
    %v709 = vpop.f32.mrf.mxu0
    %710 = vmatprep.mubr.f32.mxu0 0.0
    %711 = vmatmul.mubr.f32.gmra.mxu0 %v205
    %v712 = vpop.f32.mrf.mxu0
    %v713 = vadd.f32 0.0, %v712
    %v714 = vpop.f32.mrf.mxu0
    %715 = vmatprep.mubr.f32.mxu0 0.0
    %716 = vmatmul.mubr.f32.gmra.mxu0 %v208
    %v717 = vpop.f32.mrf.mxu0
    %v718 = vadd.f32 0.0, %v717
    %v719 = vpop.f32.mrf.mxu0
    %720 = vmatprep.mubr.f32.mxu0 0.0
    %721 = vmatmul.mubr.f32.gmra.mxu0 %v211
    %v722 = vpop.f32.mrf.mxu0
    %v723 = vadd.f32 0.0, %v722
    %v724 = vpop.f32.mrf.mxu0
    %725 = vmatprep.mubr.f32.mxu0 0.0
    %726 = vmatmul.mubr.f32.gmra.mxu0 %v214
    %v727 = vpop.f32.mrf.mxu0
    %v728 = vadd.f32 0.0, %v727
    %v729 = vpop.f32.mrf.mxu0
    %730 = vmatprep.mubr.f32.mxu0 0.0
    %731 = vmatmul.mubr.f32.gmra.mxu0 %v217
    %v732 = vpop.f32.mrf.mxu0
    %v733 = vadd.f32 0.0, %v732
    %v734 = vpop.f32.mrf.mxu0
    %735 = vmatprep.mubr.f32.mxu0 0.0
    %736 = vmatmul.mubr.f32.gmra.mxu0 %v220
    %v737 = vpop.f32.mrf.mxu0
    %v738 = vadd.f32 0.0, %v737
    %v739 = vpop.f32.mrf.mxu0
    %740 = vmatprep.mubr.f32.mxu0 0.0
    %741 = vmatmul.mubr.f32.gmra.mxu0 %v223
    %v742 = vpop.f32.mrf.mxu0
    %v743 = vadd.f32 0.0, %v742
    %v744 = vpop.f32.mrf.mxu0
    %745 = vmatprep.mubr.f32.mxu0 0.0
    %746 = vmatmul.mubr.f32.gmra.mxu0 %v226
    %v747 = vpop.f32.mrf.mxu0
    %v748 = vadd.f32 0.0, %v747
    %v749 = vpop.f32.mrf.mxu0
    %750 = vmatprep.mubr.f32.mxu0 0.0
    %751 = vmatmul.mubr.f32.gmra.mxu0 %v229
    %v752 = vpop.f32.mrf.mxu0
    %v753 = vadd.f32 0.0, %v752
    %v754 = vpop.f32.mrf.mxu0
    %755 = vmatprep.mubr.f32.mxu0 0.0
    %756 = vmatmul.mubr.f32.gmra.mxu0 %v232
    %v757 = vpop.f32.mrf.mxu0
    %v758 = vadd.f32 0.0, %v757
    %v759 = vpop.f32.mrf.mxu0
    %760 = vmatprep.mubr.f32.mxu0 0.0
    %761 = vmatmul.mubr.f32.gmra.mxu0 %v235
    %v762 = vpop.f32.mrf.mxu0
    %v763 = vadd.f32 0.0, %v762
    %v764 = vpop.f32.mrf.mxu0
    %765 = vmatprep.mubr.f32.mxu0 0.0
    %766 = vmatmul.mubr.f32.gmra.mxu0 %v238
    %v767 = vpop.f32.mrf.mxu0
    %v768 = vadd.f32 0.0, %v767
    %v769 = vpop.f32.mrf.mxu0
    %770 = vmatprep.mubr.f32.mxu0 0.0
    %771 = vmatmul.mubr.f32.gmra.mxu0 %v241
    %v772 = vpop.f32.mrf.mxu0
    %v773 = vadd.f32 0.0, %v772
    %v774 = vpop.f32.mrf.mxu0
    %775 = vmatprep.mubr.f32.mxu0 0.0
    %776 = vmatmul.mubr.f32.gmra.mxu0 %v244
    %v777 = vpop.f32.mrf.mxu0
    %v778 = vadd.f32 0.0, %v777
    %v779 = vpop.f32.mrf.mxu0
    %780 = vmatprep.mubr.f32.mxu0 0.0
    %781 = vmatmul.mubr.f32.gmra.mxu0 %v247
    %v782 = vpop.f32.mrf.mxu0
    %v783 = vadd.f32 0.0, %v782
    %v784 = vpop.f32.mrf.mxu0
    %785 = vmatprep.mubr.f32.mxu0 0.0
    %786 = vmatmul.mubr.f32.gmra.mxu0 %v250
    %v787 = vpop.f32.mrf.mxu0
    %v788 = vadd.f32 0.0, %v787
    %v789 = vpop.f32.mrf.mxu0
    %790 = vmatprep.mubr.f32.mxu0 0.0
    %791 = vmatmul.mubr.f32.gmra.mxu0 %v253
    %v792 = vpop.f32.mrf.mxu0
    %v793 = vadd.f32 0.0, %v792
    %v794 = vpop.f32.mrf.mxu0
    %795 = vmatprep.mubr.f32.mxu0 0.0
    %796 = vmatmul.mubr.f32.gmra.mxu0 %v256
    %v797 = vpop.f32.mrf.mxu0
    %v798 = vadd.f32 0.0, %v797
    %v799 = vpop.f32.mrf.mxu0
    %800 = vmatprep.mubr.f32.mxu0 0.0
    %801 = vmatmul.mubr.f32.gmra.mxu0 %v259
    %v802 = vpop.f32.mrf.mxu0
    %v803 = vadd.f32 0.0, %v802
    %v804 = vpop.f32.mrf.mxu0
    %805 = vmatprep.mubr.f32.mxu0 0.0
    %806 = vmatmul.mubr.f32.gmra.mxu0 %v262
    %v807 = vpop.f32.mrf.mxu0
    %v808 = vadd.f32 0.0, %v807
    %v809 = vpop.f32.mrf.mxu0
    %810 = vmatprep.mubr.f32.mxu0 0.0
    %811 = vmatmul.mubr.f32.gmra.mxu0 %v265
    %v812 = vpop.f32.mrf.mxu0
    %v813 = vadd.f32 0.0, %v812
    %v814 = vpop.f32.mrf.mxu0
    %815 = vmatprep.mubr.f32.mxu0 0.0
    %816 = vmatmul.mubr.f32.gmra.mxu0 %v268
    %v817 = vpop.f32.mrf.mxu0
    %v818 = vadd.f32 0.0, %v817
    %v819 = vpop.f32.mrf.mxu0
    %820 = vmatprep.mubr.f32.mxu0 0.0
    %821 = vmatmul.mubr.f32.gmra.mxu0 %v271
    %v822 = vpop.f32.mrf.mxu0
    %v823 = vadd.f32 0.0, %v822
    %v824 = vpop.f32.mrf.mxu0
    %825 = vmatprep.mubr.f32.mxu0 0.0
    %826 = vmatmul.mubr.f32.gmra.mxu0 %v274
    %v827 = vpop.f32.mrf.mxu0
    %v828 = vadd.f32 0.0, %v827
    %v829 = vpop.f32.mrf.mxu0
    %830 = vmatprep.mubr.f32.mxu0 0.0
    %831 = vmatmul.mubr.f32.gmra.mxu0 %v277
    %v832 = vpop.f32.mrf.mxu0
    %v833 = vadd.f32 0.0, %v832
    %v834 = vpop.f32.mrf.mxu0
    %835 = vmatprep.mubr.f32.mxu0 0.0
    %836 = vmatmul.mubr.f32.gmra.mxu0 %v280
    %v837 = vpop.f32.mrf.mxu0
    %v838 = vadd.f32 0.0, %v837
    %v839 = vpop.f32.mrf.mxu0
    %840 = vmatprep.mubr.f32.mxu0 0.0
    %841 = vmatmul.mubr.f32.gmra.mxu0 %v283
    %v842 = vpop.f32.mrf.mxu0
    %v843 = vadd.f32 0.0, %v842
    %v844 = vpop.f32.mrf.mxu0
    %845 = vmatprep.mubr.f32.mxu0 0.0
    %846 = vmatmul.mubr.f32.gmra.mxu0 %v286
    %v847 = vpop.f32.mrf.mxu0
    %v848 = vadd.f32 0.0, %v847
    %v849 = vpop.f32.mrf.mxu0
    %850 = vmatprep.mubr.f32.mxu0 0.0
    %851 = vmatmul.mubr.f32.gmra.mxu0 %v289
    %v852 = vpop.f32.mrf.mxu0
    %v853 = vadd.f32 0.0, %v852
    %v854 = vpop.f32.mrf.mxu0
    %855 = vmatprep.mubr.f32.mxu0 0.0
    %856 = vmatmul.mubr.f32.gmra.mxu0 %v292
    %v857 = vpop.f32.mrf.mxu0
    %v858 = vadd.f32 0.0, %v857
    %v859 = vpop.f32.mrf.mxu0
    %860 = vmatprep.mubr.f32.mxu0 0.0
    %861 = vmatmul.mubr.f32.gmra.mxu0 %v295
    %v862 = vpop.f32.mrf.mxu0
    %v863 = vadd.f32 0.0, %v862
    %v864 = vpop.f32.mrf.mxu0
    %865 = vmatprep.mubr.f32.mxu0 0.0
    %866 = vmatmul.mubr.f32.gmra.mxu0 %v298
    %v867 = vpop.f32.mrf.mxu0
    %v868 = vadd.f32 0.0, %v867
    %v869 = vpop.f32.mrf.mxu0
    %870 = vmatprep.mubr.f32.mxu0 0.0
    %871 = vmatmul.mubr.f32.gmra.mxu0 %v301
    %v872 = vpop.f32.mrf.mxu0
    %v873 = vadd.f32 0.0, %v872
    %v874 = vpop.f32.mrf.mxu0
    %875 = vmatprep.mubr.f32.mxu0 0.0
    %876 = vmatmul.mubr.f32.gmra.mxu0 %v304
    %v877 = vpop.f32.mrf.mxu0
    %v878 = vadd.f32 0.0, %v877
    %v879 = vpop.f32.mrf.mxu0
    %880 = vmatprep.mubr.f32.mxu0 0.0
    %881 = vmatmul.mubr.f32.gmra.mxu0 %v307
    %v882 = vpop.f32.mrf.mxu0
    %v883 = vadd.f32 0.0, %v882
    %v884 = vpop.f32.mrf.mxu0
    %885 = vmatprep.mubr.f32.mxu0 0.0
    %886 = vmatmul.mubr.f32.gmra.mxu0 %v310
    %v887 = vpop.f32.mrf.mxu0
    %v888 = vadd.f32 0.0, %v887
    %v889 = vpop.f32.mrf.mxu0
    %890 = vmatprep.mubr.f32.mxu0 0.0
    %891 = vmatmul.mubr.f32.gmra.mxu0 %v313
    %v892 = vpop.f32.mrf.mxu0
    %v893 = vadd.f32 0.0, %v892
    %v894 = vpop.f32.mrf.mxu0
    %895 = vmatprep.mubr.f32.mxu0 0.0
    %896 = vmatmul.mubr.f32.gmra.mxu0 %v316
    %v897 = vpop.f32.mrf.mxu0
    %v898 = vadd.f32 0.0, %v897
    %v899 = vpop.f32.mrf.mxu0
    %900 = vmatprep.mubr.f32.mxu0 0.0
    %901 = vmatmul.mubr.f32.gmra.mxu0 %v319
    %v902 = vpop.f32.mrf.mxu0
    %v903 = vadd.f32 0.0, %v902
    %v904 = vpop.f32.mrf.mxu0
    %905 = vmatprep.mubr.f32.mxu0 0.0
    %906 = vmatmul.mubr.f32.gmra.mxu0 %v322
    %v907 = vpop.f32.mrf.mxu0
    %v908 = vadd.f32 0.0, %v907
    %v909 = vpop.f32.mrf.mxu0
    %910 = vmatprep.mubr.f32.mxu0 0.0
    %911 = vmatmul.mubr.f32.gmra.mxu0 %v325
    %v912 = vpop.f32.mrf.mxu0
    %v913 = vadd.f32 0.0, %v912
    %v914 = vpop.f32.mrf.mxu0
    %915 = vmatprep.mubr.f32.mxu0 0.0
    %916 = vmatmul.mubr.f32.gmra.mxu0 %v328
    %v917 = vpop.f32.mrf.mxu0
    %v918 = vadd.f32 0.0, %v917
    %v919 = vpop.f32.mrf.mxu0
    %920 = vmatprep.mubr.f32.mxu0 0.0
    %921 = vmatmul.mubr.f32.gmra.mxu0 %v331
    %v922 = vpop.f32.mrf.mxu0
    %v923 = vadd.f32 0.0, %v922
    %v924 = vpop.f32.mrf.mxu0
    %925 = vmatprep.mubr.f32.mxu0 0.0
    %926 = vmatmul.mubr.f32.gmra.mxu0 %v334
    %v927 = vpop.f32.mrf.mxu0
    %v928 = vadd.f32 0.0, %v927
    %v929 = vpop.f32.mrf.mxu0
    %930 = vmatprep.mubr.f32.mxu0 0.0
    %931 = vmatmul.mubr.f32.gmra.mxu0 %v337
    %v932 = vpop.f32.mrf.mxu0
    %v933 = vadd.f32 0.0, %v932
    %v934 = vpop.f32.mrf.mxu0
    %935 = vmatprep.mubr.f32.mxu0 0.0
    %936 = vmatmul.mubr.f32.gmra.mxu0 %v340
    %v937 = vpop.f32.mrf.mxu0
    %v938 = vadd.f32 0.0, %v937
    %v939 = vpop.f32.mrf.mxu0
    %940 = vmatprep.mubr.f32.mxu0 0.0
    %941 = vmatmul.mubr.f32.gmra.mxu0 %v343
    %v942 = vpop.f32.mrf.mxu0
    %v943 = vadd.f32 0.0, %v942
    %v944 = vpop.f32.mrf.mxu0
    %945 = vmatprep.mubr.f32.mxu0 0.0
    %946 = vmatmul.mubr.f32.gmra.mxu0 %v346
    %v947 = vpop.f32.mrf.mxu0
    %v948 = vadd.f32 0.0, %v947
    %v949 = vpop.f32.mrf.mxu0
    %950 = vmatprep.mubr.f32.mxu0 0.0
    %951 = vmatmul.mubr.f32.gmra.mxu0 %v349
    %v952 = vpop.f32.mrf.mxu0
    %v953 = vadd.f32 0.0, %v952
    %v954 = vpop.f32.mrf.mxu0
    %955 = vmatprep.mubr.f32.mxu0 0.0
    %956 = vmatmul.mubr.f32.gmra.mxu0 %v352
    %v957 = vpop.f32.mrf.mxu0
    %v958 = vadd.f32 0.0, %v957
    %v959 = vpop.f32.mrf.mxu0
    %960 = vmatprep.mubr.f32.mxu0 0.0
    %961 = vmatmul.mubr.f32.gmra.mxu0 %v355
    %v962 = vpop.f32.mrf.mxu0
    %v963 = vadd.f32 0.0, %v962
    %v964 = vpop.f32.mrf.mxu0
    %965 = vmatprep.mubr.f32.mxu0 0.0
    %966 = vmatmul.mubr.f32.gmra.mxu0 %v358
    %v967 = vpop.f32.mrf.mxu0
    %v968 = vadd.f32 0.0, %v967
    %v969 = vpop.f32.mrf.mxu0
    %970 = vmatprep.mubr.f32.mxu0 0.0
    %971 = vmatmul.mubr.f32.gmra.mxu0 %v361
    %v972 = vpop.f32.mrf.mxu0
    %v973 = vadd.f32 0.0, %v972
    %v974 = vpop.f32.mrf.mxu0
    %975 = vmatprep.mubr.f32.mxu0 0.0
    %976 = vmatmul.mubr.f32.gmra.mxu0 %v364
    %v977 = vpop.f32.mrf.mxu0
    %v978 = vadd.f32 0.0, %v977
    %v979 = vpop.f32.mrf.mxu0
    %980 = vmatprep.mubr.f32.mxu0 0.0
    %981 = vmatmul.mubr.f32.gmra.mxu0 %v367
    %v982 = vpop.f32.mrf.mxu0
    %v983 = vadd.f32 0.0, %v982
    %v984 = vpop.f32.mrf.mxu0
    %985 = vmatprep.mubr.f32.mxu0 0.0
    %986 = vmatmul.mubr.f32.gmra.mxu0 %v370
    %v987 = vpop.f32.mrf.mxu0
    %v988 = vadd.f32 0.0, %v987
    %v989 = vpop.f32.mrf.mxu0
    %990 = vmatprep.mubr.f32.mxu0 0.0
    %991 = vmatmul.mubr.f32.gmra.mxu0 %v373
    %v992 = vpop.f32.mrf.mxu0
    %v993 = vadd.f32 0.0, %v992
    %v994 = vpop.f32.mrf.mxu0
    %995 = vmatprep.mubr.f32.mxu0 0.0
    %996 = vmatmul.mubr.f32.gmra.mxu0 %v376
    %v997 = vpop.f32.mrf.mxu0
    %v998 = vadd.f32 0.0, %v997
    %v999 = vpop.f32.mrf.mxu0
    %1000 = vmatprep.mubr.f32.mxu0 0.0
    %1001 = vmatmul.mubr.f32.gmra.mxu0 %v379
    %v1002 = vpop.f32.mrf.mxu0
    %v1003 = vadd.f32 0.0, %v1002
    %v1004 = vpop.f32.mrf.mxu0
    %1005 = vmatprep.mubr.f32.mxu0 0.0
    %1006 = vmatmul.mubr.f32.gmra.mxu0 %v382
    %v1007 = vpop.f32.mrf.mxu0
    %v1008 = vadd.f32 0.0, %v1007
    %v1009 = vpop.f32.mrf.mxu0
    %1010 = vmatprep.mubr.f32.mxu0 0.0
    %1011 = vmatmul.mubr.f32.gmra.mxu0 %v385
    %v1012 = vpop.f32.mrf.mxu0
    %v1013 = vadd.f32 0.0, %v1012
    %v1014 = vpop.f32.mrf.mxu0
    %1015 = vmatprep.mubr.f32.mxu0 0.0
    %1016 = vmatmul.mubr.f32.gmra.mxu0 %v388
    %v1017 = vpop.f32.mrf.mxu0
    %v1018 = vadd.f32 0.0, %v1017
    %v1019 = vpop.f32.mrf.mxu0
    %1020 = vmatprep.mubr.f32.mxu0 0.0
    %1021 = vmatmul.mubr.f32.gmra.mxu0 %v391
    %v1022 = vpop.f32.mrf.mxu0
    %v1023 = vadd.f32 0.0, %v1022
    %v1024 = vpop.f32.mrf.mxu0
    %1025 = vmatprep.mubr.f32.mxu0 0.0
    %1026 = vmatmul.mubr.f32.gmra.mxu0 %v394
    %v1027 = vpop.f32.mrf.mxu0
    %v1028 = vadd.f32 0.0, %v1027
    %v1029 = vpop.f32.mrf.mxu0
    %1030 = vmatprep.mubr.f32.mxu0 0.0
    %1031 = vmatmul.mubr.f32.gmra.mxu0 %v397
    %v1032 = vpop.f32.mrf.mxu0
    %v1033 = vadd.f32 0.0, %v1032
    %v1034 = vpop.f32.mrf.mxu0
    %1035 = vmatprep.mubr.f32.mxu0 0.0
    %1036 = vmatmul.mubr.f32.gmra.mxu0 %v400
    %v1037 = vpop.f32.mrf.mxu0
    %v1038 = vadd.f32 0.0, %v1037
    %v1039 = vpop.f32.mrf.mxu0
    %1040 = vmatprep.mubr.f32.mxu0 0.0
    %1041 = vmatmul.mubr.f32.gmra.mxu0 %v403
    %v1042 = vpop.f32.mrf.mxu0
    %v1043 = vadd.f32 0.0, %v1042
    %v1044 = vpop.f32.mrf.mxu0
    %1045 = vmatprep.mubr.f32.mxu0 0.0
    %1046 = vmatmul.mubr.f32.gmra.mxu0 %v406
    %v1047 = vpop.f32.mrf.mxu0
    %v1048 = vadd.f32 0.0, %v1047
    %v1049 = vpop.f32.mrf.mxu0
    %1050 = vmatprep.mubr.f32.mxu0 0.0
    %1051 = vmatmul.mubr.f32.gmra.mxu0 %v409
    %v1052 = vpop.f32.mrf.mxu0
    %v1053 = vadd.f32 0.0, %v1052
    %v1054 = vpop.f32.mrf.mxu0
    %1055 = vmatprep.mubr.f32.mxu0 0.0
    %1056 = vmatmul.mubr.f32.gmra.mxu0 %v412
    %v1057 = vpop.f32.mrf.mxu0
    %v1058 = vadd.f32 0.0, %v1057
    %v1059 = vpop.f32.mrf.mxu0
    %1060 = vmatprep.mubr.f32.mxu0 0.0
    %1061 = vmatmul.mubr.f32.gmra.mxu0 %v415
    %v1062 = vpop.f32.mrf.mxu0
    %v1063 = vadd.f32 0.0, %v1062
    %v1064 = vpop.f32.mrf.mxu0
    %1065 = vmatprep.mubr.f32.mxu0 0.0
    %1066 = vmatmul.mubr.f32.gmra.mxu0 %v418
    %v1067 = vpop.f32.mrf.mxu0
    %v1068 = vadd.f32 0.0, %v1067
    %v1069 = vpop.f32.mrf.mxu0
    %1070 = vmatprep.mubr.f32.mxu0 0.0
    %1071 = vmatmul.mubr.f32.gmra.mxu0 %v421
    %v1072 = vpop.f32.mrf.mxu0
    %v1073 = vadd.f32 0.0, %v1072
    %v1074 = vpop.f32.mrf.mxu0
    %1075 = vmatprep.mubr.f32.mxu0 0.0
    %1076 = vmatmul.mubr.f32.gmra.mxu0 %v424
    %v1077 = vpop.f32.mrf.mxu0
    %v1078 = vadd.f32 0.0, %v1077
    %v1079 = vpop.f32.mrf.mxu0
    %1080 = vmatprep.mubr.f32.mxu0 0.0
    %1081 = vmatmul.mubr.f32.gmra.mxu0 %v427
    %v1082 = vpop.f32.mrf.mxu0
    %v1083 = vadd.f32 0.0, %v1082
    %v1084 = vpop.f32.mrf.mxu0
    %1085 = vmatprep.mubr.f32.mxu0 0.0
    %1086 = vmatmul.mubr.f32.gmra.mxu0 %v430
    %v1087 = vpop.f32.mrf.mxu0
    %v1088 = vadd.f32 0.0, %v1087
    %v1089 = vpop.f32.mrf.mxu0
    %1090 = vmatprep.mubr.f32.mxu0 0.0
    %1091 = vmatmul.mubr.f32.gmra.mxu0 %v433
    %v1092 = vpop.f32.mrf.mxu0
    %v1093 = vadd.f32 0.0, %v1092
    %v1094 = vpop.f32.mrf.mxu0
    %1095 = vmatprep.mubr.f32.mxu0 0.0
    %1096 = vmatmul.mubr.f32.gmra.mxu0 %v436
    %v1097 = vpop.f32.mrf.mxu0
    %v1098 = vadd.f32 0.0, %v1097
    %v1099 = vpop.f32.mrf.mxu0
    %1100 = vmatprep.mubr.f32.mxu0 0.0
    %1101 = vmatmul.mubr.f32.gmra.mxu0 %v439
    %v1102 = vpop.f32.mrf.mxu0
    %v1103 = vadd.f32 0.0, %v1102
    %v1104 = vpop.f32.mrf.mxu0
    %1105 = vmatprep.mubr.f32.mxu0 0.0
    %1106 = vmatmul.mubr.f32.gmra.mxu0 %v442
    %v1107 = vpop.f32.mrf.mxu0
    %v1108 = vadd.f32 0.0, %v1107
    %v1109 = vpop.f32.mrf.mxu0
    %1110 = vmatprep.mubr.f32.mxu0 0.0
    %1111 = vmatmul.mubr.f32.gmra.mxu0 %v445
    %v1112 = vpop.f32.mrf.mxu0
    %v1113 = vadd.f32 0.0, %v1112
    %v1114 = vpop.f32.mrf.mxu0
    %1115 = vmatprep.mubr.f32.mxu0 0.0
    %1116 = vmatmul.mubr.f32.gmra.mxu0 %v448
    %v1117 = vpop.f32.mrf.mxu0
    %v1118 = vadd.f32 0.0, %v1117
    %v1119 = vpop.f32.mrf.mxu0
    %1120 = vmatprep.mubr.f32.mxu0 0.0
    %1121 = vmatmul.mubr.f32.gmra.mxu0 %v451
    %v1122 = vpop.f32.mrf.mxu0
    %v1123 = vadd.f32 0.0, %v1122
    %v1124 = vpop.f32.mrf.mxu0
    %1125 = vmatprep.mubr.f32.mxu0 0.0
    %1126 = vmatmul.mubr.f32.gmra.mxu0 %v454
    %v1127 = vpop.f32.mrf.mxu0
    %v1128 = vadd.f32 0.0, %v1127
    %v1129 = vpop.f32.mrf.mxu0
    %1130 = vmatprep.mubr.f32.mxu0 0.0
    %1131 = vmatmul.mubr.f32.gmra.mxu0 %v457
    %v1132 = vpop.f32.mrf.mxu0
    %v1133 = vadd.f32 0.0, %v1132
    %v1134 = vpop.f32.mrf.mxu0
    %1135 = vmatprep.mubr.f32.mxu0 0.0
    %1136 = vmatmul.mubr.f32.gmra.mxu0 %v460
    %v1137 = vpop.f32.mrf.mxu0
    %v1138 = vadd.f32 0.0, %v1137
    %v1139 = vpop.f32.mrf.mxu0
    %1140 = vmatprep.mubr.f32.mxu0 0.0
    %1141 = vmatmul.mubr.f32.gmra.mxu0 %v463
    %v1142 = vpop.f32.mrf.mxu0
    %v1143 = vadd.f32 0.0, %v1142
    %v1144 = vpop.f32.mrf.mxu0
    %1145 = vmatprep.mubr.f32.mxu0 0.0
    %1146 = vmatmul.mubr.f32.gmra.mxu0 %v466
    %v1147 = vpop.f32.mrf.mxu0
    %v1148 = vadd.f32 0.0, %v1147
    %v1149 = vpop.f32.mrf.mxu0
    %1150 = vmatprep.mubr.f32.mxu0 0.0
    %1151 = vmatmul.mubr.f32.gmra.mxu0 %v469
    %v1152 = vpop.f32.mrf.mxu0
    %v1153 = vadd.f32 0.0, %v1152
    %v1154 = vpop.f32.mrf.mxu0
    %1155 = vmatprep.mubr.f32.mxu0 0.0
    %1156 = vmatmul.mubr.f32.gmra.mxu0 %v472
    %v1157 = vpop.f32.mrf.mxu0
    %v1158 = vadd.f32 0.0, %v1157
    %v1159 = vpop.f32.mrf.mxu0
    %1160 = vmatprep.mubr.f32.mxu0 0.0
    %1161 = vmatmul.mubr.f32.gmra.mxu0 %v475
    %v1162 = vpop.f32.mrf.mxu0
    %v1163 = vadd.f32 0.0, %v1162
    %v1164 = vpop.f32.mrf.mxu0
    %1165 = vmatprep.mubr.f32.mxu0 0.0
    %1166 = vmatmul.mubr.f32.gmra.mxu0 %v478
    %v1167 = vpop.f32.mrf.mxu0
    %v1168 = vadd.f32 0.0, %v1167
    %v1169 = vpop.f32.mrf.mxu0
    %1170 = vmatprep.mubr.f32.mxu0 0.0
    %1171 = vmatmul.mubr.f32.gmra.mxu0 %v481
    %v1172 = vpop.f32.mrf.mxu0
    %v1173 = vadd.f32 0.0, %v1172
    %v1174 = vpop.f32.mrf.mxu0
    %1175 = vmatprep.mubr.f32.mxu0 0.0
    %1176 = vmatmul.mubr.f32.gmra.mxu0 %v484
    %v1177 = vpop.f32.mrf.mxu0
    %v1178 = vadd.f32 0.0, %v1177
    %v1179 = vpop.f32.mrf.mxu0
    %1180 = vmatprep.mubr.f32.mxu0 0.0
    %1181 = vmatmul.mubr.f32.gmra.mxu0 %v487
    %v1182 = vpop.f32.mrf.mxu0
    %v1183 = vadd.f32 0.0, %v1182
    %v1184 = vpop.f32.mrf.mxu0
    %1185 = vmatprep.mubr.f32.mxu0 0.0
    %1186 = vmatmul.mubr.f32.gmra.mxu0 %v490
    %v1187 = vpop.f32.mrf.mxu0
    %v1188 = vadd.f32 0.0, %v1187
    %v1189 = vpop.f32.mrf.mxu0
    %1190 = vmatprep.mubr.f32.mxu0 0.0
    %1191 = vmatmul.mubr.f32.gmra.mxu0 %v493
    %v1192 = vpop.f32.mrf.mxu0
    %v1193 = vadd.f32 0.0, %v1192
    %v1194 = vpop.f32.mrf.mxu0
    %1195 = vmatprep.mubr.f32.mxu0 0.0
    %1196 = vmatmul.mubr.f32.gmra.mxu0 %v496
    %v1197 = vpop.f32.mrf.mxu0
    %v1198 = vadd.f32 0.0, %v1197
    %v1199 = vpop.f32.mrf.mxu0
    %1200 = vmatprep.mubr.f32.mxu0 0.0
    %1201 = vmatmul.mubr.f32.gmra.mxu0 %v499
    %v1202 = vpop.f32.mrf.mxu0
    %v1203 = vadd.f32 0.0, %v1202
    %v1204 = vpop.f32.mrf.mxu0
    %1205 = vmatprep.mubr.f32.mxu0 0.0
    %1206 = vmatmul.mubr.f32.gmra.mxu0 %v502
    %v1207 = vpop.f32.mrf.mxu0
    %v1208 = vadd.f32 0.0, %v1207
    %v1209 = vpop.f32.mrf.mxu0
    %1210 = vmatprep.mubr.f32.mxu0 0.0
    %1211 = vmatmul.mubr.f32.gmra.mxu0 %v505
    %v1212 = vpop.f32.mrf.mxu0
    %v1213 = vadd.f32 0.0, %v1212
    %v1214 = vpop.f32.mrf.mxu0
    %1215 = vmatprep.mubr.f32.mxu0 0.0
    %1216 = vmatmul.mubr.f32.gmra.mxu0 %v508
    %v1217 = vpop.f32.mrf.mxu0
    %v1218 = vadd.f32 0.0, %v1217
    %v1219 = vpop.f32.mrf.mxu0
    %1220 = vmatprep.mubr.f32.mxu0 0.0
    %1221 = vmatmul.mubr.f32.gmra.mxu0 %v511
    %v1222 = vpop.f32.mrf.mxu0
    %v1223 = vadd.f32 0.0, %v1222
    %v1224 = vpop.f32.mrf.mxu0
    %1225 = vmatprep.mubr.f32.mxu0 0.0
    %1226 = vmatmul.mubr.f32.gmra.mxu0 %v514
    %v1227 = vpop.f32.mrf.mxu0
    %v1228 = vadd.f32 0.0, %v1227
    %v1229 = vpop.f32.mrf.mxu0
    %1230 = vmatprep.mubr.f32.mxu0 0.0
    %1231 = vmatmul.mubr.f32.gmra.mxu0 %v517
    %v1232 = vpop.f32.mrf.mxu0
    %v1233 = vadd.f32 0.0, %v1232
    %v1234 = vpop.f32.mrf.mxu0
    %1235 = vmatprep.mubr.f32.mxu0 0.0
    %1236 = vmatmul.mubr.f32.gmra.mxu0 %v520
    %v1237 = vpop.f32.mrf.mxu0
    %v1238 = vadd.f32 0.0, %v1237
    %v1239 = vpop.f32.mrf.mxu0
    %1240 = vmatprep.mubr.f32.mxu0 0.0
    %1241 = vmatmul.mubr.f32.gmra.mxu0 %v523
    %v1242 = vpop.f32.mrf.mxu0
    %v1243 = vadd.f32 0.0, %v1242
    %v1244 = vpop.f32.mrf.mxu0
    %1245 = vmatprep.mubr.f32.mxu0 0.0
    %1246 = vmatmul.mubr.f32.gmra.mxu0 %v526
    %v1247 = vpop.f32.mrf.mxu0
    %v1248 = vadd.f32 0.0, %v1247
    %v1249 = vpop.f32.mrf.mxu0
    %1250 = vmatprep.mubr.f32.mxu0 0.0
    %1251 = vmatmul.mubr.f32.gmra.mxu0 %v529
    %v1252 = vpop.f32.mrf.mxu0
    %v1253 = vadd.f32 0.0, %v1252
    %v1254 = vpop.f32.mrf.mxu0
    %1255 = vmatprep.mubr.f32.mxu0 0.0
    %1256 = vmatmul.mubr.f32.gmra.mxu0 %v532
    %v1257 = vpop.f32.mrf.mxu0
    %v1258 = vadd.f32 0.0, %v1257
    %v1259 = vpop.f32.mrf.mxu0
    %1260 = vmatprep.mubr.f32.mxu0 0.0
    %1261 = vmatmul.mubr.f32.gmra.mxu0 %v535
    %v1262 = vpop.f32.mrf.mxu0
    %v1263 = vadd.f32 0.0, %v1262
    %v1264 = vpop.f32.mrf.mxu0
    %1265 = vmatprep.mubr.f32.mxu0 0.0
    %1266 = vmatmul.mubr.f32.gmra.mxu0 %v538
    %v1267 = vpop.f32.mrf.mxu0
    %v1268 = vadd.f32 0.0, %v1267
    %v1269 = vpop.f32.mrf.mxu0
    %1270 = vmatprep.mubr.f32.mxu0 0.0
    %1271 = vmatmul.mubr.f32.gmra.mxu0 %v541
    %v1272 = vpop.f32.mrf.mxu0
    %v1273 = vadd.f32 0.0, %v1272
    %v1274 = vpop.f32.mrf.mxu0
    %1275 = vmatprep.mubr.f32.mxu0 0.0
    %1276 = vmatmul.mubr.f32.gmra.mxu0 %v544
    %v1277 = vpop.f32.mrf.mxu0
    %v1278 = vadd.f32 0.0, %v1277
    %v1279 = vpop.f32.mrf.mxu0
    %1280 = vmatprep.mubr.f32.mxu0 0.0
    %1281 = vmatmul.mubr.f32.gmra.mxu0 %v547
    %v1282 = vpop.f32.mrf.mxu0
    %v1283 = vadd.f32 0.0, %v1282
    %v1284 = vpop.f32.mrf.mxu0
    %1285 = vmatprep.mubr.f32.mxu0 0.0
    %1286 = vmatmul.mubr.f32.gmra.mxu0 %v550
    %v1287 = vpop.f32.mrf.mxu0
    %v1288 = vadd.f32 0.0, %v1287
    %v1289 = vpop.f32.mrf.mxu0
    %1290 = vmatprep.mubr.f32.mxu0 0.0
    %1291 = vmatmul.mubr.f32.gmra.mxu0 %v553
    %v1292 = vpop.f32.mrf.mxu0
    %v1293 = vadd.f32 0.0, %v1292
    %v1294 = vpop.f32.mrf.mxu0
    %1295 = vmatprep.mubr.f32.mxu0 0.0
    %1296 = vmatmul.mubr.f32.gmra.mxu0 %v556
    %v1297 = vpop.f32.mrf.mxu0
    %v1298 = vadd.f32 0.0, %v1297
    %v1299 = vpop.f32.mrf.mxu0
    %1300 = vmatprep.mubr.f32.mxu0 0.0
    %1301 = vmatmul.mubr.f32.gmra.mxu0 %v559
    %v1302 = vpop.f32.mrf.mxu0
    %v1303 = vadd.f32 0.0, %v1302
    %v1304 = vpop.f32.mrf.mxu0
    %1305 = vmatprep.mubr.f32.mxu0 0.0
    %1306 = vmatmul.mubr.f32.gmra.mxu0 %v562
    %v1307 = vpop.f32.mrf.mxu0
    %v1308 = vadd.f32 0.0, %v1307
    %v1309 = vpop.f32.mrf.mxu0
    %1310 = vmatprep.mubr.f32.mxu0 0.0
    %1311 = vmatmul.mubr.f32.gmra.mxu0 %v565
    %v1312 = vpop.f32.mrf.mxu0
    %v1313 = vadd.f32 0.0, %v1312
    %v1314 = vpop.f32.mrf.mxu0
    %1315 = vmatprep.mubr.f32.mxu0 0.0
    %1316 = vmatmul.mubr.f32.gmra.mxu0 %v568
    %v1317 = vpop.f32.mrf.mxu0
    %v1318 = vadd.f32 0.0, %v1317
    %v1319 = vpop.f32.mrf.mxu0
    %1320 = vmatprep.mubr.f32.mxu0 0.0
    %1321 = vmatmul.mubr.f32.gmra.mxu0 %v571
    %v1322 = vpop.f32.mrf.mxu0
    %v1323 = vadd.f32 0.0, %v1322
    %v1324 = vpop.f32.mrf.mxu0
    %1325 = vmatprep.mubr.f32.mxu0 0.0
    %1326 = vmatmul.mubr.f32.gmra.mxu0 %v574
    %v1327 = vpop.f32.mrf.mxu0
    %v1328 = vadd.f32 0.0, %v1327
    %v1329 = vpop.f32.mrf.mxu0
    %1330 = vmatprep.mubr.f32.mxu0 0.0
    %1331 = vmatmul.mubr.f32.gmra.mxu0 %v577
    %v1332 = vpop.f32.mrf.mxu0
    %v1333 = vadd.f32 0.0, %v1332
    %v1334 = vpop.f32.mrf.mxu0
    %1335 = vmatprep.mubr.f32.mxu0 0.0
    %1336 = vmatmul.mubr.f32.gmra.mxu0 %v580
    %v1337 = vpop.f32.mrf.mxu0
    %v1338 = vadd.f32 0.0, %v1337
    %v1339 = vpop.f32.mrf.mxu0
    %1340 = vmatprep.mubr.f32.mxu0 0.0
    %1341 = vmatmul.mubr.f32.gmra.mxu0 %v583
    %v1342 = vpop.f32.mrf.mxu0
    %v1343 = vadd.f32 0.0, %v1342
    %v1344 = vpop.f32.mrf.mxu0
    %1345 = vmatprep.mubr.f32.mxu0 0.0
    %1346 = vmatmul.mubr.f32.gmra.mxu0 %v586
    %v1347 = vpop.f32.mrf.mxu0
    %v1348 = vadd.f32 0.0, %v1347
    %v1349 = vpop.f32.mrf.mxu0
    %1350 = vmatprep.mubr.f32.mxu0 0.0
    %1351 = vmatmul.mubr.f32.gmra.mxu0 %v589
    %v1352 = vpop.f32.mrf.mxu0
    %v1353 = vadd.f32 0.0, %v1352
    %v1354 = vpop.f32.mrf.mxu0
    %1355 = vmatprep.mubr.f32.mxu0 0.0
    %1356 = vmatmul.mubr.f32.gmra.mxu0 %v592
    %v1357 = vpop.f32.mrf.mxu0
    %v1358 = vadd.f32 0.0, %v1357
    %v1359 = vpop.f32.mrf.mxu0
    %1360 = vmatprep.mubr.f32.mxu0 0.0
    %1361 = vmatmul.mubr.f32.gmra.mxu0 %v595
    %v1362 = vpop.f32.mrf.mxu0
    %v1363 = vadd.f32 0.0, %v1362
    %v1364 = vpop.f32.mrf.mxu0
    %1365 = vmatprep.mubr.f32.mxu0 0.0
    %1366 = vmatmul.mubr.f32.gmra.mxu0 %v598
    %v1367 = vpop.f32.mrf.mxu0
    %v1368 = vadd.f32 0.0, %v1367
    %v1369 = vpop.f32.mrf.mxu0
    %1370 = vmatprep.mubr.f32.mxu0 0.0
    %1371 = vmatmul.mubr.f32.gmra.mxu0 %v601
    %v1372 = vpop.f32.mrf.mxu0
    %v1373 = vadd.f32 0.0, %v1372
    %v1374 = vpop.f32.mrf.mxu0
    %1375 = vmatprep.mubr.f32.mxu0 0.0
    %1376 = vmatmul.mubr.f32.gmra.mxu0 %v604
    %v1377 = vpop.f32.mrf.mxu0
    %v1378 = vadd.f32 0.0, %v1377
    %v1379 = vpop.f32.mrf.mxu0
    %1380 = vmatprep.mubr.f32.mxu0 0.0
    %1381 = vmatmul.mubr.f32.gmra.mxu0 %v607
    %v1382 = vpop.f32.mrf.mxu0
    %v1383 = vadd.f32 0.0, %v1382
    %v1384 = vpop.f32.mrf.mxu0
    %1385 = vmatprep.mubr.f32.mxu0 0.0
    %1386 = vmatmul.mubr.f32.gmra.mxu0 %v610
    %v1387 = vpop.f32.mrf.mxu0
    %v1388 = vadd.f32 0.0, %v1387
    %v1389 = vpop.f32.mrf.mxu0
    %1390 = vmatprep.mubr.f32.mxu0 0.0
    %1391 = vmatmul.mubr.f32.gmra.mxu0 %v613
    %v1392 = vpop.f32.mrf.mxu0
    %v1393 = vadd.f32 0.0, %v1392
    %v1394 = vpop.f32.mrf.mxu0
    %1395 = vmatprep.mubr.f32.mxu0 0.0
    %1396 = vmatmul.mubr.f32.gmra.mxu0 %v616
    %v1397 = vpop.f32.mrf.mxu0
    %v1398 = vadd.f32 0.0, %v1397
    %v1399 = vpop.f32.mrf.mxu0
    %1400 = vmatprep.mubr.f32.mxu0 0.0
    %1401 = vmatmul.mubr.f32.gmra.mxu0 %v619
    %v1402 = vpop.f32.mrf.mxu0
    %v1403 = vadd.f32 0.0, %v1402
    %v1404 = vpop.f32.mrf.mxu0
    %1405 = vmatprep.mubr.f32.mxu0 0.0
    %1406 = vmatmul.mubr.f32.gmra.mxu0 %v622
    %v1407 = vpop.f32.mrf.mxu0
    %v1408 = vadd.f32 0.0, %v1407
    %v1409 = vpop.f32.mrf.mxu0
    %1410 = vmatprep.mubr.f32.mxu0 0.0
    %1411 = vmatmul.mubr.f32.gmra.mxu0 %v625
    %v1412 = vpop.f32.mrf.mxu0
    %v1413 = vadd.f32 0.0, %v1412
    %v1414 = vpop.f32.mrf.mxu0
    %1415 = vdwg.mxu0
    %v1416 = vmax.f32 %v698, %v878
    %v1417 = vmax.f32 %v703, %v883
    %v1418 = vmax.f32 %v708, %v888
    %v1419 = vmax.f32 %v713, %v893
    %v1420 = vmax.f32 %v718, %v898
    %v1421 = vmax.f32 %v723, %v903
    %v1422 = vmax.f32 %v728, %v908
    %v1423 = vmax.f32 %v733, %v913
    %v1424 = vmax.f32 %v738, %v918
    %v1425 = vmax.f32 %v743, %v923
    %v1426 = vmax.f32 %v748, %v928
    %v1427 = vmax.f32 %v753, %v933
    %v1428 = vmax.f32 %v758, %v938
    %v1429 = vmax.f32 %v763, %v943
    %v1430 = vmax.f32 %v768, %v948
    %v1431 = vmax.f32 %v773, %v953
    %v1432 = vmax.f32 %v778, %v958
    %v1433 = vmax.f32 %v783, %v963
    %v1434 = vmax.f32 %v788, %v968
    %v1435 = vmax.f32 %v793, %v973
    %v1436 = vmax.f32 %v798, %v978
    %v1437 = vmax.f32 %v803, %v983
    %v1438 = vmax.f32 %v808, %v988
    %v1439 = vmax.f32 %v813, %v993
    %v1440 = vmax.f32 %v818, %v998
    %v1441 = vmax.f32 %v823, %v1003
    %v1442 = vmax.f32 %v828, %v1008
    %v1443 = vmax.f32 %v833, %v1013
    %v1444 = vmax.f32 %v838, %v1018
    %v1445 = vmax.f32 %v843, %v1023
    %v1446 = vmax.f32 %v848, %v1028
    %v1447 = vmax.f32 %v853, %v1033
    %v1448 = vmax.f32 %v858, %v1038
    %v1449 = vmax.f32 %v863, %v1043
    %v1450 = vmax.f32 %v868, %v1048
    %v1451 = vmax.f32 %v873, %v1053
    %v1452 = vmax.f32 %v1416, %v1058
    %v1453 = vmax.f32 %v1417, %v1063
    %v1454 = vmax.f32 %v1418, %v1068
    %v1455 = vmax.f32 %v1419, %v1073
    %v1456 = vmax.f32 %v1420, %v1078
    %v1457 = vmax.f32 %v1421, %v1083
    %v1458 = vmax.f32 %v1422, %v1088
    %v1459 = vmax.f32 %v1423, %v1093
    %v1460 = vmax.f32 %v1424, %v1098
    %v1461 = vmax.f32 %v1425, %v1103
    %v1462 = vmax.f32 %v1426, %v1108
    %v1463 = vmax.f32 %v1427, %v1113
    %v1464 = vmax.f32 %v1428, %v1118
    %v1465 = vmax.f32 %v1429, %v1123
    %v1466 = vmax.f32 %v1430, %v1128
    %v1467 = vmax.f32 %v1431, %v1133
    %v1468 = vmax.f32 %v1432, %v1138
    %v1469 = vmax.f32 %v1433, %v1143
    %v1470 = vmax.f32 %v1434, %v1148
    %v1471 = vmax.f32 %v1435, %v1153
    %v1472 = vmax.f32 %v1436, %v1158
    %v1473 = vmax.f32 %v1437, %v1163
    %v1474 = vmax.f32 %v1438, %v1168
    %v1475 = vmax.f32 %v1439, %v1173
    %v1476 = vmax.f32 %v1440, %v1178
    %v1477 = vmax.f32 %v1441, %v1183
    %v1478 = vmax.f32 %v1442, %v1188
    %v1479 = vmax.f32 %v1443, %v1193
    %v1480 = vmax.f32 %v1444, %v1198
    %v1481 = vmax.f32 %v1445, %v1203
    %v1482 = vmax.f32 %v1446, %v1208
    %v1483 = vmax.f32 %v1447, %v1213
    %v1484 = vmax.f32 %v1448, %v1218
    %v1485 = vmax.f32 %v1449, %v1223
    %v1486 = vmax.f32 %v1450, %v1228
    %v1487 = vmax.f32 %v1451, %v1233
    %v1488 = vmax.f32 %v1452, %v1238
    %v1489 = vmax.f32 %v1453, %v1243
    %v1490 = vmax.f32 %v1454, %v1248
    %v1491 = vmax.f32 %v1455, %v1253
    %v1492 = vmax.f32 %v1456, %v1258
    %v1493 = vmax.f32 %v1457, %v1263
    %v1494 = vmax.f32 %v1458, %v1268
    %v1495 = vmax.f32 %v1459, %v1273
    %v1496 = vmax.f32 %v1460, %v1278
    %v1497 = vmax.f32 %v1461, %v1283
    %v1498 = vmax.f32 %v1462, %v1288
    %v1499 = vmax.f32 %v1463, %v1293
    %v1500 = vmax.f32 %v1464, %v1298
    %v1501 = vmax.f32 %v1465, %v1303
    %v1502 = vmax.f32 %v1466, %v1308
    %v1503 = vmax.f32 %v1467, %v1313
    %v1504 = vmax.f32 %v1468, %v1318
    %v1505 = vmax.f32 %v1469, %v1323
    %v1506 = vmax.f32 %v1470, %v1328
    %v1507 = vmax.f32 %v1471, %v1333
    %v1508 = vmax.f32 %v1472, %v1338
    %v1509 = vmax.f32 %v1473, %v1343
    %v1510 = vmax.f32 %v1474, %v1348
    %v1511 = vmax.f32 %v1475, %v1353
    %v1512 = vmax.f32 %v1476, %v1358
    %v1513 = vmax.f32 %v1477, %v1363
    %v1514 = vmax.f32 %v1478, %v1368
    %v1515 = vmax.f32 %v1479, %v1373
    %v1516 = vmax.f32 %v1480, %v1378
    %v1517 = vmax.f32 %v1481, %v1383
    %v1518 = vmax.f32 %v1482, %v1388
    %v1519 = vmax.f32 %v1483, %v1393
    %v1520 = vmax.f32 %v1484, %v1398
    %v1521 = vmax.f32 %v1485, %v1403
    %v1522 = vmax.f32 %v1486, %v1408
    %v1523 = vmax.f32 %v1487, %v1413
    %v1524 = vld [vmem:[%s2] sm:$0x1]
    %v1526 = vlaneseq
    %v1527 = vshrl.u32 %v1526, 7
    %v1528 = vsub.s32 0, %v1527
    %v1529 = vrot.slane %v1524, %v1528
    %v1531 = vadd.f32 %v1488, %v1529
    %v1532 = vadd.f32 %v1489, %v1529
    %v1533 = vadd.f32 %v1490, %v1529
    %v1534 = vadd.f32 %v1491, %v1529
    %v1535 = vadd.f32 %v1492, %v1529
    %v1536 = vadd.f32 %v1493, %v1529
    %v1537 = vadd.f32 %v1494, %v1529
    %v1538 = vadd.f32 %v1495, %v1529
    %v1539 = vadd.f32 %v1496, %v1529
    %v1540 = vadd.f32 %v1497, %v1529
    %v1541 = vadd.f32 %v1498, %v1529
    %v1542 = vadd.f32 %v1499, %v1529
    %v1543 = vadd.f32 %v1500, %v1529
    %v1544 = vadd.f32 %v1501, %v1529
    %v1545 = vadd.f32 %v1502, %v1529
    %v1546 = vadd.f32 %v1503, %v1529
    %v1547 = vadd.f32 %v1504, %v1529
    %v1548 = vadd.f32 %v1505, %v1529
    %v1549 = vadd.f32 %v1506, %v1529
    %v1550 = vadd.f32 %v1507, %v1529
    %v1551 = vadd.f32 %v1508, %v1529
    %v1552 = vadd.f32 %v1509, %v1529
    %v1553 = vadd.f32 %v1510, %v1529
    %v1554 = vadd.f32 %v1511, %v1529
    %v1555 = vadd.f32 %v1512, %v1529
    %v1556 = vadd.f32 %v1513, %v1529
    %v1557 = vadd.f32 %v1514, %v1529
    %v1558 = vadd.f32 %v1515, %v1529
    %v1559 = vadd.f32 %v1516, %v1529
    %v1560 = vadd.f32 %v1517, %v1529
    %v1561 = vadd.f32 %v1518, %v1529
    %v1562 = vadd.f32 %v1519, %v1529
    %v1563 = vadd.f32 %v1520, %v1529
    %v1564 = vadd.f32 %v1521, %v1529
    %v1565 = vadd.f32 %v1522, %v1529
    %v1566 = vadd.f32 %v1523, %v1529
    %v1567 = vmax.f32 %v1531, 0.0
    %v1568 = vmax.f32 %v1532, 0.0
    %v1569 = vmax.f32 %v1533, 0.0
    %v1570 = vmax.f32 %v1534, 0.0
    %v1571 = vmax.f32 %v1535, 0.0
    %v1572 = vmax.f32 %v1536, 0.0
    %v1573 = vmax.f32 %v1537, 0.0
    %v1574 = vmax.f32 %v1538, 0.0
    %v1575 = vmax.f32 %v1539, 0.0
    %v1576 = vmax.f32 %v1540, 0.0
    %v1577 = vmax.f32 %v1541, 0.0
    %v1578 = vmax.f32 %v1542, 0.0
    %v1579 = vmax.f32 %v1543, 0.0
    %v1580 = vmax.f32 %v1544, 0.0
    %v1581 = vmax.f32 %v1545, 0.0
    %v1582 = vmax.f32 %v1546, 0.0
    %v1583 = vmax.f32 %v1547, 0.0
    %v1584 = vmax.f32 %v1548, 0.0
    %v1585 = vmax.f32 %v1549, 0.0
    %v1586 = vmax.f32 %v1550, 0.0
    %v1587 = vmax.f32 %v1551, 0.0
    %v1588 = vmax.f32 %v1552, 0.0
    %v1589 = vmax.f32 %v1553, 0.0
    %v1590 = vmax.f32 %v1554, 0.0
    %v1591 = vmax.f32 %v1555, 0.0
    %v1592 = vmax.f32 %v1556, 0.0
    %v1593 = vmax.f32 %v1557, 0.0
    %v1594 = vmax.f32 %v1558, 0.0
    %v1595 = vmax.f32 %v1559, 0.0
    %v1596 = vmax.f32 %v1560, 0.0
    %v1597 = vmax.f32 %v1561, 0.0
    %v1598 = vmax.f32 %v1562, 0.0
    %v1599 = vmax.f32 %v1563, 0.0
    %v1600 = vmax.f32 %v1564, 0.0
    %v1601 = vmax.f32 %v1565, 0.0
    %v1602 = vmax.f32 %v1566, 0.0
    %v1603 = vld [vmem:[%s3] sm:$0xff]
    %v1604 = vld [vmem:[%s3 + $0x8] sm:$0xff]
    %v1605 = vld [vmem:[%s3 + $0x10] sm:$0xff]
    %v1606 = vld [vmem:[%s3 + $0x18] sm:$0xff]
    %v1607 = vld [vmem:[%s3 + $0x20] sm:$0xff]
    %v1608 = vld [vmem:[%s3 + $0x28] sm:$0xff]
    %v1609 = vld [vmem:[%s3 + $0x30] sm:$0xff]
    %v1610 = vld [vmem:[%s3 + $0x38] sm:$0xff]
    %vm1611 = vcmask 523264
    %v1613 = vsel %vm1611, %v1567, 0
    %v1616 = vsel %vm1611, %v1568, 0
    %v1619 = vsel %vm1611, %v1569, 0
    %v1622 = vsel %vm1611, %v1570, 0
    %v1625 = vsel %vm1611, %v1571, 0
    %v1628 = vsel %vm1611, %v1572, 0
    %v1631 = vsel %vm1611, %v1573, 0
    %v1634 = vsel %vm1611, %v1574, 0
    %v1637 = vsel %vm1611, %v1575, 0
    %v1640 = vsel %vm1611, %v1576, 0
    %v1643 = vsel %vm1611, %v1577, 0
    %v1646 = vsel %vm1611, %v1578, 0
    %v1649 = vsel %vm1611, %v1579, 0
    %v1652 = vsel %vm1611, %v1580, 0
    %v1655 = vsel %vm1611, %v1581, 0
    %v1658 = vsel %vm1611, %v1582, 0
    %v1661 = vsel %vm1611, %v1583, 0
    %v1664 = vsel %vm1611, %v1584, 0
    %v1667 = vsel %vm1611, %v1585, 0
    %v1670 = vsel %vm1611, %v1586, 0
    %v1673 = vsel %vm1611, %v1587, 0
    %v1676 = vsel %vm1611, %v1588, 0
    %v1679 = vsel %vm1611, %v1589, 0
    %v1682 = vsel %vm1611, %v1590, 0
    %1684 = vmatprep.subr.mxu0 0.0
    %1685 = vmatpush1.msra.mxu0 0.0
    %1686 = vmatprep.subr.mxu0 0.0
    %1687 = vmatpush1.msra.mxu0 0.0
    %1688 = vmatprep.subr.mxu0 0.0
    %1689 = vmatpush1.msra.mxu0 0.0
    %1690 = vmatprep.subr.mxu0 0.0
    %1691 = vmatpush1.msra.mxu0 0.0
    %1692 = vmatprep.subr.mxu0 0.0
    %1693 = vmatpush1.msra.mxu0 0.0
    %1694 = vmatprep.subr.mxu0 0.0
    %1695 = vmatpush1.msra.mxu0 0.0
    %1696 = vmatprep.subr.mxu0 0.0
    %1697 = vmatpush1.msra.mxu0 0.0
    %1698 = vmatprep.subr.mxu0 0.0
    %1699 = vmatpush1.msra.mxu0 0.0
    %1700 = vmatprep.subr.mxu0 0.0
    %1701 = vmatpush1.msra.mxu0 %v1610
    %1702 = vmatprep.subr.mxu0 0.0
    %1703 = vmatpush1.msra.mxu0 %v1609
    %1704 = vmatprep.subr.mxu0 0.0
    %1705 = vmatpush1.msra.mxu0 %v1608
    %1706 = vmatprep.subr.mxu0 0.0
    %1707 = vmatpush1.msra.mxu0 %v1607
    %1708 = vmatprep.subr.mxu0 0.0
    %1709 = vmatpush1.msra.mxu0 %v1606
    %1710 = vmatprep.subr.mxu0 0.0
    %1711 = vmatpush1.msra.mxu0 %v1605
    %1712 = vmatprep.subr.mxu0 0.0
    %1713 = vmatpush1.msra.mxu0 %v1604
    %1714 = vmatprep.subr.mxu0 0.0
    %1715 = vmatpush1.msra.mxu0 %v1603
    %1716 = vmatprep.subr.mxu0 0.0
    %1717 = vmatpush2.msra.mxu0 0.0
    %1718 = vmatprep.subr.mxu0 0.0
    %1719 = vmatpush2.msra.mxu0 0.0
    %1720 = vmatprep.subr.mxu0 0.0
    %1721 = vmatpush2.msra.mxu0 0.0
    %1722 = vmatprep.subr.mxu0 0.0
    %1723 = vmatpush2.msra.mxu0 0.0
    %1724 = vmatprep.subr.mxu0 0.0
    %1725 = vmatpush2.msra.mxu0 0.0
    %1726 = vmatprep.subr.mxu0 0.0
    %1727 = vmatpush2.msra.mxu0 0.0
    %1728 = vmatprep.subr.mxu0 0.0
    %1729 = vmatpush2.msra.mxu0 0.0
    %1730 = vmatprep.subr.mxu0 0.0
    %1731 = vmatpush2.msra.mxu0 0.0
    %1732 = vmatprep.subr.mxu0 0.0
    %1733 = vmatpush2.msra.mxu0 0.0
    %1734 = vmatprep.subr.mxu0 0.0
    %1735 = vmatpush2.msra.mxu0 0.0
    %1736 = vmatprep.subr.mxu0 0.0
    %1737 = vmatpush2.msra.mxu0 0.0
    %1738 = vmatprep.subr.mxu0 0.0
    %1739 = vmatpush2.msra.mxu0 0.0
    %1740 = vmatprep.subr.mxu0 0.0
    %1741 = vmatpush2.msra.mxu0 0.0
    %1742 = vmatprep.subr.mxu0 0.0
    %1743 = vmatpush2.msra.mxu0 0.0
    %1744 = vmatprep.subr.mxu0 0.0
    %1745 = vmatpush2.msra.mxu0 0.0
    %1746 = vmatprep.subr.mxu0 0.0
    %1747 = vmatpush2.msra.mxu0 0.0
    %1748 = vmatprep.mubr.f32.mxu0 0.0
    %1749 = vmatmul.mubr.f32.gmra.mxu0 %v1613
    %v1750 = vpop.f32.mrf.mxu0
    %v1751 = vadd.f32 0.0, %v1750
    %v1752 = vpop.f32.mrf.mxu0
    %1753 = vmatprep.mubr.f32.mxu0 0.0
    %1754 = vmatmul.mubr.f32.gmra.mxu0 %v1616
    %v1755 = vpop.f32.mrf.mxu0
    %v1756 = vadd.f32 0.0, %v1755
    %v1757 = vpop.f32.mrf.mxu0
    %1758 = vmatprep.mubr.f32.mxu0 0.0
    %1759 = vmatmul.mubr.f32.gmra.mxu0 %v1619
    %v1760 = vpop.f32.mrf.mxu0
    %v1761 = vadd.f32 0.0, %v1760
    %v1762 = vpop.f32.mrf.mxu0
    %1763 = vmatprep.mubr.f32.mxu0 0.0
    %1764 = vmatmul.mubr.f32.gmra.mxu0 %v1622
    %v1765 = vpop.f32.mrf.mxu0
    %v1766 = vadd.f32 0.0, %v1765
    %v1767 = vpop.f32.mrf.mxu0
    %1768 = vmatprep.mubr.f32.mxu0 0.0
    %1769 = vmatmul.mubr.f32.gmra.mxu0 %v1625
    %v1770 = vpop.f32.mrf.mxu0
    %v1771 = vpop.f32.mrf.mxu0
    %1772 = vmatprep.mubr.f32.mxu0 0.0
    %1773 = vmatmul.mubr.f32.gmra.mxu0 %v1628
    %v1774 = vpop.f32.mrf.mxu0
    %v1775 = vpop.f32.mrf.mxu0
    %1776 = vmatprep.mubr.f32.mxu0 0.0
    %1777 = vmatmul.mubr.f32.gmra.mxu0 %v1631
    %v1778 = vpop.f32.mrf.mxu0
    %v1779 = vadd.f32 0.0, %v1778
    %v1780 = vpop.f32.mrf.mxu0
    %1781 = vmatprep.mubr.f32.mxu0 0.0
    %1782 = vmatmul.mubr.f32.gmra.mxu0 %v1634
    %v1783 = vpop.f32.mrf.mxu0
    %v1784 = vadd.f32 0.0, %v1783
    %v1785 = vpop.f32.mrf.mxu0
    %1786 = vmatprep.mubr.f32.mxu0 0.0
    %1787 = vmatmul.mubr.f32.gmra.mxu0 %v1637
    %v1788 = vpop.f32.mrf.mxu0
    %v1789 = vadd.f32 0.0, %v1788
    %v1790 = vpop.f32.mrf.mxu0
    %1791 = vmatprep.mubr.f32.mxu0 0.0
    %1792 = vmatmul.mubr.f32.gmra.mxu0 %v1640
    %v1793 = vpop.f32.mrf.mxu0
    %v1794 = vadd.f32 0.0, %v1793
    %v1795 = vpop.f32.mrf.mxu0
    %1796 = vmatprep.mubr.f32.mxu0 0.0
    %1797 = vmatmul.mubr.f32.gmra.mxu0 %v1643
    %v1798 = vpop.f32.mrf.mxu0
    %v1799 = vpop.f32.mrf.mxu0
    %1800 = vmatprep.mubr.f32.mxu0 0.0
    %1801 = vmatmul.mubr.f32.gmra.mxu0 %v1646
    %v1802 = vpop.f32.mrf.mxu0
    %v1803 = vpop.f32.mrf.mxu0
    %1804 = vmatprep.mubr.f32.mxu0 0.0
    %1805 = vmatmul.mubr.f32.gmra.mxu0 %v1649
    %v1806 = vpop.f32.mrf.mxu0
    %v1807 = vadd.f32 0.0, %v1806
    %v1808 = vpop.f32.mrf.mxu0
    %1809 = vmatprep.mubr.f32.mxu0 0.0
    %1810 = vmatmul.mubr.f32.gmra.mxu0 %v1652
    %v1811 = vpop.f32.mrf.mxu0
    %v1812 = vadd.f32 0.0, %v1811
    %v1813 = vpop.f32.mrf.mxu0
    %1814 = vmatprep.mubr.f32.mxu0 0.0
    %1815 = vmatmul.mubr.f32.gmra.mxu0 %v1655
    %v1816 = vpop.f32.mrf.mxu0
    %v1817 = vadd.f32 0.0, %v1816
    %v1818 = vpop.f32.mrf.mxu0
    %1819 = vmatprep.mubr.f32.mxu0 0.0
    %1820 = vmatmul.mubr.f32.gmra.mxu0 %v1658
    %v1821 = vpop.f32.mrf.mxu0
    %v1822 = vadd.f32 0.0, %v1821
    %v1823 = vpop.f32.mrf.mxu0
    %1824 = vmatprep.mubr.f32.mxu0 0.0
    %1825 = vmatmul.mubr.f32.gmra.mxu0 %v1661
    %v1826 = vpop.f32.mrf.mxu0
    %v1827 = vpop.f32.mrf.mxu0
    %1828 = vmatprep.mubr.f32.mxu0 0.0
    %1829 = vmatmul.mubr.f32.gmra.mxu0 %v1664
    %v1830 = vpop.f32.mrf.mxu0
    %v1831 = vpop.f32.mrf.mxu0
    %1832 = vmatprep.mubr.f32.mxu0 0.0
    %1833 = vmatmul.mubr.f32.gmra.mxu0 %v1667
    %v1834 = vpop.f32.mrf.mxu0
    %v1835 = vadd.f32 0.0, %v1834
    %v1836 = vpop.f32.mrf.mxu0
    %1837 = vmatprep.mubr.f32.mxu0 0.0
    %1838 = vmatmul.mubr.f32.gmra.mxu0 %v1670
    %v1839 = vpop.f32.mrf.mxu0
    %v1840 = vadd.f32 0.0, %v1839
    %v1841 = vpop.f32.mrf.mxu0
    %1842 = vmatprep.mubr.f32.mxu0 0.0
    %1843 = vmatmul.mubr.f32.gmra.mxu0 %v1673
    %v1844 = vpop.f32.mrf.mxu0
    %v1845 = vadd.f32 0.0, %v1844
    %v1846 = vpop.f32.mrf.mxu0
    %1847 = vmatprep.mubr.f32.mxu0 0.0
    %1848 = vmatmul.mubr.f32.gmra.mxu0 %v1676
    %v1849 = vpop.f32.mrf.mxu0
    %v1850 = vadd.f32 0.0, %v1849
    %v1851 = vpop.f32.mrf.mxu0
    %1852 = vmatprep.mubr.f32.mxu0 0.0
    %1853 = vmatmul.mubr.f32.gmra.mxu0 %v1679
    %v1854 = vpop.f32.mrf.mxu0
    %v1855 = vpop.f32.mrf.mxu0
    %1856 = vmatprep.mubr.f32.mxu0 0.0
    %1857 = vmatmul.mubr.f32.gmra.mxu0 %v1682
    %v1858 = vpop.f32.mrf.mxu0
    %v1859 = vpop.f32.mrf.mxu0
    %1860 = vdwg.mxu0
    %s1861 = scalar_lea.vmem %s3, 64
    %v1862 = vld [vmem:[%s1861] sm:$0xff]
    %v1863 = vld [vmem:[%s1861 + $0x8] sm:$0xff]
    %v1864 = vld [vmem:[%s1861 + $0x10] sm:$0xff]
    %v1865 = vld [vmem:[%s1861 + $0x18] sm:$0xff]
    %v1866 = vld [vmem:[%s1861 + $0x20] sm:$0xff]
    %v1867 = vld [vmem:[%s1861 + $0x28] sm:$0xff]
    %v1868 = vld [vmem:[%s1861 + $0x30] sm:$0xff]
    %v1869 = vld [vmem:[%s1861 + $0x38] sm:$0xff]
    %1870 = vmatprep.subr.mxu0 0.0
    %1871 = vmatpush1.msra.mxu0 0.0
    %1872 = vmatprep.subr.mxu0 0.0
    %1873 = vmatpush1.msra.mxu0 0.0
    %1874 = vmatprep.subr.mxu0 0.0
    %1875 = vmatpush1.msra.mxu0 0.0
    %1876 = vmatprep.subr.mxu0 0.0
    %1877 = vmatpush1.msra.mxu0 0.0
    %1878 = vmatprep.subr.mxu0 0.0
    %1879 = vmatpush1.msra.mxu0 0.0
    %1880 = vmatprep.subr.mxu0 0.0
    %1881 = vmatpush1.msra.mxu0 0.0
    %1882 = vmatprep.subr.mxu0 0.0
    %1883 = vmatpush1.msra.mxu0 0.0
    %1884 = vmatprep.subr.mxu0 0.0
    %1885 = vmatpush1.msra.mxu0 0.0
    %1886 = vmatprep.subr.mxu0 0.0
    %1887 = vmatpush1.msra.mxu0 %v1869
    %1888 = vmatprep.subr.mxu0 0.0
    %1889 = vmatpush1.msra.mxu0 %v1868
    %1890 = vmatprep.subr.mxu0 0.0
    %1891 = vmatpush1.msra.mxu0 %v1867
    %1892 = vmatprep.subr.mxu0 0.0
    %1893 = vmatpush1.msra.mxu0 %v1866
    %1894 = vmatprep.subr.mxu0 0.0
    %1895 = vmatpush1.msra.mxu0 %v1865
    %1896 = vmatprep.subr.mxu0 0.0
    %1897 = vmatpush1.msra.mxu0 %v1864
    %1898 = vmatprep.subr.mxu0 0.0
    %1899 = vmatpush1.msra.mxu0 %v1863
    %1900 = vmatprep.subr.mxu0 0.0
    %1901 = vmatpush1.msra.mxu0 %v1862
    %1902 = vmatprep.subr.mxu0 0.0
    %1903 = vmatpush2.msra.mxu0 0.0
    %1904 = vmatprep.subr.mxu0 0.0
    %1905 = vmatpush2.msra.mxu0 0.0
    %1906 = vmatprep.subr.mxu0 0.0
    %1907 = vmatpush2.msra.mxu0 0.0
    %1908 = vmatprep.subr.mxu0 0.0
    %1909 = vmatpush2.msra.mxu0 0.0
    %1910 = vmatprep.subr.mxu0 0.0
    %1911 = vmatpush2.msra.mxu0 0.0
    %1912 = vmatprep.subr.mxu0 0.0
    %1913 = vmatpush2.msra.mxu0 0.0
    %1914 = vmatprep.subr.mxu0 0.0
    %1915 = vmatpush2.msra.mxu0 0.0
    %1916 = vmatprep.subr.mxu0 0.0
    %1917 = vmatpush2.msra.mxu0 0.0
    %1918 = vmatprep.subr.mxu0 0.0
    %1919 = vmatpush2.msra.mxu0 0.0
    %1920 = vmatprep.subr.mxu0 0.0
    %1921 = vmatpush2.msra.mxu0 0.0
    %1922 = vmatprep.subr.mxu0 0.0
    %1923 = vmatpush2.msra.mxu0 0.0
    %1924 = vmatprep.subr.mxu0 0.0
    %1925 = vmatpush2.msra.mxu0 0.0
    %1926 = vmatprep.subr.mxu0 0.0
    %1927 = vmatpush2.msra.mxu0 0.0
    %1928 = vmatprep.subr.mxu0 0.0
    %1929 = vmatpush2.msra.mxu0 0.0
    %1930 = vmatprep.subr.mxu0 0.0
    %1931 = vmatpush2.msra.mxu0 0.0
    %1932 = vmatprep.subr.mxu0 0.0
    %1933 = vmatpush2.msra.mxu0 0.0
    %1934 = vmatprep.mubr.f32.mxu0 0.0
    %1935 = vmatmul.mubr.f32.gmra.mxu0 %v1613
    %v1936 = vpop.f32.mrf.mxu0
    %v1937 = vpop.f32.mrf.mxu0
    %1938 = vmatprep.mubr.f32.mxu0 0.0
    %1939 = vmatmul.mubr.f32.gmra.mxu0 %v1616
    %v1940 = vpop.f32.mrf.mxu0
    %v1941 = vadd.f32 0.0, %v1940
    %v1942 = vpop.f32.mrf.mxu0
    %1943 = vmatprep.mubr.f32.mxu0 0.0
    %1944 = vmatmul.mubr.f32.gmra.mxu0 %v1619
    %v1945 = vpop.f32.mrf.mxu0
    %v1946 = vadd.f32 0.0, %v1945
    %v1947 = vpop.f32.mrf.mxu0
    %1948 = vmatprep.mubr.f32.mxu0 0.0
    %1949 = vmatmul.mubr.f32.gmra.mxu0 %v1622
    %v1950 = vpop.f32.mrf.mxu0
    %v1951 = vadd.f32 0.0, %v1950
    %v1952 = vpop.f32.mrf.mxu0
    %1953 = vmatprep.mubr.f32.mxu0 0.0
    %1954 = vmatmul.mubr.f32.gmra.mxu0 %v1625
    %v1955 = vpop.f32.mrf.mxu0
    %v1956 = vadd.f32 0.0, %v1955
    %v1957 = vpop.f32.mrf.mxu0
    %1958 = vmatprep.mubr.f32.mxu0 0.0
    %1959 = vmatmul.mubr.f32.gmra.mxu0 %v1628
    %v1960 = vpop.f32.mrf.mxu0
    %v1961 = vpop.f32.mrf.mxu0
    %1962 = vmatprep.mubr.f32.mxu0 0.0
    %1963 = vmatmul.mubr.f32.gmra.mxu0 %v1631
    %v1964 = vpop.f32.mrf.mxu0
    %v1965 = vpop.f32.mrf.mxu0
    %1966 = vmatprep.mubr.f32.mxu0 0.0
    %1967 = vmatmul.mubr.f32.gmra.mxu0 %v1634
    %v1968 = vpop.f32.mrf.mxu0
    %v1969 = vadd.f32 0.0, %v1968
    %v1970 = vpop.f32.mrf.mxu0
    %1971 = vmatprep.mubr.f32.mxu0 0.0
    %1972 = vmatmul.mubr.f32.gmra.mxu0 %v1637
    %v1973 = vpop.f32.mrf.mxu0
    %v1974 = vadd.f32 0.0, %v1973
    %v1975 = vpop.f32.mrf.mxu0
    %1976 = vmatprep.mubr.f32.mxu0 0.0
    %1977 = vmatmul.mubr.f32.gmra.mxu0 %v1640
    %v1978 = vpop.f32.mrf.mxu0
    %v1979 = vadd.f32 0.0, %v1978
    %v1980 = vpop.f32.mrf.mxu0
    %1981 = vmatprep.mubr.f32.mxu0 0.0
    %1982 = vmatmul.mubr.f32.gmra.mxu0 %v1643
    %v1983 = vpop.f32.mrf.mxu0
    %v1984 = vadd.f32 0.0, %v1983
    %v1985 = vpop.f32.mrf.mxu0
    %1986 = vmatprep.mubr.f32.mxu0 0.0
    %1987 = vmatmul.mubr.f32.gmra.mxu0 %v1646
    %v1988 = vpop.f32.mrf.mxu0
    %v1989 = vpop.f32.mrf.mxu0
    %1990 = vmatprep.mubr.f32.mxu0 0.0
    %1991 = vmatmul.mubr.f32.gmra.mxu0 %v1649
    %v1992 = vpop.f32.mrf.mxu0
    %v1993 = vpop.f32.mrf.mxu0
    %1994 = vmatprep.mubr.f32.mxu0 0.0
    %1995 = vmatmul.mubr.f32.gmra.mxu0 %v1652
    %v1996 = vpop.f32.mrf.mxu0
    %v1997 = vadd.f32 0.0, %v1996
    %v1998 = vpop.f32.mrf.mxu0
    %1999 = vmatprep.mubr.f32.mxu0 0.0
    %2000 = vmatmul.mubr.f32.gmra.mxu0 %v1655
    %v2001 = vpop.f32.mrf.mxu0
    %v2002 = vadd.f32 0.0, %v2001
    %v2003 = vpop.f32.mrf.mxu0
    %2004 = vmatprep.mubr.f32.mxu0 0.0
    %2005 = vmatmul.mubr.f32.gmra.mxu0 %v1658
    %v2006 = vpop.f32.mrf.mxu0
    %v2007 = vadd.f32 0.0, %v2006
    %v2008 = vpop.f32.mrf.mxu0
    %2009 = vmatprep.mubr.f32.mxu0 0.0
    %2010 = vmatmul.mubr.f32.gmra.mxu0 %v1661
    %v2011 = vpop.f32.mrf.mxu0
    %v2012 = vadd.f32 0.0, %v2011
    %v2013 = vpop.f32.mrf.mxu0
    %2014 = vmatprep.mubr.f32.mxu0 0.0
    %2015 = vmatmul.mubr.f32.gmra.mxu0 %v1664
    %v2016 = vpop.f32.mrf.mxu0
    %v2017 = vpop.f32.mrf.mxu0
    %2018 = vmatprep.mubr.f32.mxu0 0.0
    %2019 = vmatmul.mubr.f32.gmra.mxu0 %v1667
    %v2020 = vpop.f32.mrf.mxu0
    %v2021 = vpop.f32.mrf.mxu0
    %2022 = vmatprep.mubr.f32.mxu0 0.0
    %2023 = vmatmul.mubr.f32.gmra.mxu0 %v1670
    %v2024 = vpop.f32.mrf.mxu0
    %v2025 = vadd.f32 0.0, %v2024
    %v2026 = vpop.f32.mrf.mxu0
    %2027 = vmatprep.mubr.f32.mxu0 0.0
    %2028 = vmatmul.mubr.f32.gmra.mxu0 %v1673
    %v2029 = vpop.f32.mrf.mxu0
    %v2030 = vadd.f32 0.0, %v2029
    %v2031 = vpop.f32.mrf.mxu0
    %2032 = vmatprep.mubr.f32.mxu0 0.0
    %2033 = vmatmul.mubr.f32.gmra.mxu0 %v1676
    %v2034 = vpop.f32.mrf.mxu0
    %v2035 = vadd.f32 0.0, %v2034
    %v2036 = vpop.f32.mrf.mxu0
    %2037 = vmatprep.mubr.f32.mxu0 0.0
    %2038 = vmatmul.mubr.f32.gmra.mxu0 %v1679
    %v2039 = vpop.f32.mrf.mxu0
    %v2040 = vadd.f32 0.0, %v2039
    %v2041 = vpop.f32.mrf.mxu0
    %2042 = vmatprep.mubr.f32.mxu0 0.0
    %2043 = vmatmul.mubr.f32.gmra.mxu0 %v1682
    %v2044 = vpop.f32.mrf.mxu0
    %v2045 = vpop.f32.mrf.mxu0
    %2046 = vdwg.mxu0
    %v2047 = vadd.f32 %v1751, %v1941
    %v2048 = vadd.f32 %v1756, %v1946
    %v2049 = vadd.f32 %v1761, %v1951
    %v2050 = vadd.f32 %v1766, %v1956
    %v2051 = vadd.f32 %v1779, %v1969
    %v2052 = vadd.f32 %v1784, %v1974
    %v2053 = vadd.f32 %v1789, %v1979
    %v2054 = vadd.f32 %v1794, %v1984
    %v2055 = vadd.f32 %v1807, %v1997
    %v2056 = vadd.f32 %v1812, %v2002
    %v2057 = vadd.f32 %v1817, %v2007
    %v2058 = vadd.f32 %v1822, %v2012
    %v2059 = vadd.f32 %v1835, %v2025
    %v2060 = vadd.f32 %v1840, %v2030
    %v2061 = vadd.f32 %v1845, %v2035
    %v2062 = vadd.f32 %v1850, %v2040
    %s2063 = scalar_lea.vmem %s3, 128
    %v2064 = vld [vmem:[%s2063] sm:$0xff]
    %v2065 = vld [vmem:[%s2063 + $0x8] sm:$0xff]
    %v2066 = vld [vmem:[%s2063 + $0x10] sm:$0xff]
    %v2067 = vld [vmem:[%s2063 + $0x18] sm:$0xff]
    %v2068 = vld [vmem:[%s2063 + $0x20] sm:$0xff]
    %v2069 = vld [vmem:[%s2063 + $0x28] sm:$0xff]
    %v2070 = vld [vmem:[%s2063 + $0x30] sm:$0xff]
    %v2071 = vld [vmem:[%s2063 + $0x38] sm:$0xff]
    %2072 = vmatprep.subr.mxu0 0.0
    %2073 = vmatpush1.msra.mxu0 0.0
    %2074 = vmatprep.subr.mxu0 0.0
    %2075 = vmatpush1.msra.mxu0 0.0
    %2076 = vmatprep.subr.mxu0 0.0
    %2077 = vmatpush1.msra.mxu0 0.0
    %2078 = vmatprep.subr.mxu0 0.0
    %2079 = vmatpush1.msra.mxu0 0.0
    %2080 = vmatprep.subr.mxu0 0.0
    %2081 = vmatpush1.msra.mxu0 0.0
    %2082 = vmatprep.subr.mxu0 0.0
    %2083 = vmatpush1.msra.mxu0 0.0
    %2084 = vmatprep.subr.mxu0 0.0
    %2085 = vmatpush1.msra.mxu0 0.0
    %2086 = vmatprep.subr.mxu0 0.0
    %2087 = vmatpush1.msra.mxu0 0.0
    %2088 = vmatprep.subr.mxu0 0.0
    %2089 = vmatpush1.msra.mxu0 %v2071
    %2090 = vmatprep.subr.mxu0 0.0
    %2091 = vmatpush1.msra.mxu0 %v2070
    %2092 = vmatprep.subr.mxu0 0.0
    %2093 = vmatpush1.msra.mxu0 %v2069
    %2094 = vmatprep.subr.mxu0 0.0
    %2095 = vmatpush1.msra.mxu0 %v2068
    %2096 = vmatprep.subr.mxu0 0.0
    %2097 = vmatpush1.msra.mxu0 %v2067
    %2098 = vmatprep.subr.mxu0 0.0
    %2099 = vmatpush1.msra.mxu0 %v2066
    %2100 = vmatprep.subr.mxu0 0.0
    %2101 = vmatpush1.msra.mxu0 %v2065
    %2102 = vmatprep.subr.mxu0 0.0
    %2103 = vmatpush1.msra.mxu0 %v2064
    %2104 = vmatprep.subr.mxu0 0.0
    %2105 = vmatpush2.msra.mxu0 0.0
    %2106 = vmatprep.subr.mxu0 0.0
    %2107 = vmatpush2.msra.mxu0 0.0
    %2108 = vmatprep.subr.mxu0 0.0
    %2109 = vmatpush2.msra.mxu0 0.0
    %2110 = vmatprep.subr.mxu0 0.0
    %2111 = vmatpush2.msra.mxu0 0.0
    %2112 = vmatprep.subr.mxu0 0.0
    %2113 = vmatpush2.msra.mxu0 0.0
    %2114 = vmatprep.subr.mxu0 0.0
    %2115 = vmatpush2.msra.mxu0 0.0
    %2116 = vmatprep.subr.mxu0 0.0
    %2117 = vmatpush2.msra.mxu0 0.0
    %2118 = vmatprep.subr.mxu0 0.0
    %2119 = vmatpush2.msra.mxu0 0.0
    %2120 = vmatprep.subr.mxu0 0.0
    %2121 = vmatpush2.msra.mxu0 0.0
    %2122 = vmatprep.subr.mxu0 0.0
    %2123 = vmatpush2.msra.mxu0 0.0
    %2124 = vmatprep.subr.mxu0 0.0
    %2125 = vmatpush2.msra.mxu0 0.0
    %2126 = vmatprep.subr.mxu0 0.0
    %2127 = vmatpush2.msra.mxu0 0.0
    %2128 = vmatprep.subr.mxu0 0.0
    %2129 = vmatpush2.msra.mxu0 0.0
    %2130 = vmatprep.subr.mxu0 0.0
    %2131 = vmatpush2.msra.mxu0 0.0
    %2132 = vmatprep.subr.mxu0 0.0
    %2133 = vmatpush2.msra.mxu0 0.0
    %2134 = vmatprep.subr.mxu0 0.0
    %2135 = vmatpush2.msra.mxu0 0.0
    %2136 = vmatprep.mubr.f32.mxu0 0.0
    %2137 = vmatmul.mubr.f32.gmra.mxu0 %v1613
    %v2138 = vpop.f32.mrf.mxu0
    %v2139 = vpop.f32.mrf.mxu0
    %2140 = vmatprep.mubr.f32.mxu0 0.0
    %2141 = vmatmul.mubr.f32.gmra.mxu0 %v1616
    %v2142 = vpop.f32.mrf.mxu0
    %v2143 = vpop.f32.mrf.mxu0
    %2144 = vmatprep.mubr.f32.mxu0 0.0
    %2145 = vmatmul.mubr.f32.gmra.mxu0 %v1619
    %v2146 = vpop.f32.mrf.mxu0
    %v2147 = vadd.f32 0.0, %v2146
    %v2148 = vpop.f32.mrf.mxu0
    %2149 = vmatprep.mubr.f32.mxu0 0.0
    %2150 = vmatmul.mubr.f32.gmra.mxu0 %v1622
    %v2151 = vpop.f32.mrf.mxu0
    %v2152 = vadd.f32 0.0, %v2151
    %v2153 = vpop.f32.mrf.mxu0
    %2154 = vmatprep.mubr.f32.mxu0 0.0
    %2155 = vmatmul.mubr.f32.gmra.mxu0 %v1625
    %v2156 = vpop.f32.mrf.mxu0
    %v2157 = vadd.f32 0.0, %v2156
    %v2158 = vpop.f32.mrf.mxu0
    %2159 = vmatprep.mubr.f32.mxu0 0.0
    %2160 = vmatmul.mubr.f32.gmra.mxu0 %v1628
    %v2161 = vpop.f32.mrf.mxu0
    %v2162 = vadd.f32 0.0, %v2161
    %v2163 = vpop.f32.mrf.mxu0
    %2164 = vmatprep.mubr.f32.mxu0 0.0
    %2165 = vmatmul.mubr.f32.gmra.mxu0 %v1631
    %v2166 = vpop.f32.mrf.mxu0
    %v2167 = vpop.f32.mrf.mxu0
    %2168 = vmatprep.mubr.f32.mxu0 0.0
    %2169 = vmatmul.mubr.f32.gmra.mxu0 %v1634
    %v2170 = vpop.f32.mrf.mxu0
    %v2171 = vpop.f32.mrf.mxu0
    %2172 = vmatprep.mubr.f32.mxu0 0.0
    %2173 = vmatmul.mubr.f32.gmra.mxu0 %v1637
    %v2174 = vpop.f32.mrf.mxu0
    %v2175 = vadd.f32 0.0, %v2174
    %v2176 = vpop.f32.mrf.mxu0
    %2177 = vmatprep.mubr.f32.mxu0 0.0
    %2178 = vmatmul.mubr.f32.gmra.mxu0 %v1640
    %v2179 = vpop.f32.mrf.mxu0
    %v2180 = vadd.f32 0.0, %v2179
    %v2181 = vpop.f32.mrf.mxu0
    %2182 = vmatprep.mubr.f32.mxu0 0.0
    %2183 = vmatmul.mubr.f32.gmra.mxu0 %v1643
    %v2184 = vpop.f32.mrf.mxu0
    %v2185 = vadd.f32 0.0, %v2184
    %v2186 = vpop.f32.mrf.mxu0
    %2187 = vmatprep.mubr.f32.mxu0 0.0
    %2188 = vmatmul.mubr.f32.gmra.mxu0 %v1646
    %v2189 = vpop.f32.mrf.mxu0
    %v2190 = vadd.f32 0.0, %v2189
    %v2191 = vpop.f32.mrf.mxu0
    %2192 = vmatprep.mubr.f32.mxu0 0.0
    %2193 = vmatmul.mubr.f32.gmra.mxu0 %v1649
    %v2194 = vpop.f32.mrf.mxu0
    %v2195 = vpop.f32.mrf.mxu0
    %2196 = vmatprep.mubr.f32.mxu0 0.0
    %2197 = vmatmul.mubr.f32.gmra.mxu0 %v1652
    %v2198 = vpop.f32.mrf.mxu0
    %v2199 = vpop.f32.mrf.mxu0
    %2200 = vmatprep.mubr.f32.mxu0 0.0
    %2201 = vmatmul.mubr.f32.gmra.mxu0 %v1655
    %v2202 = vpop.f32.mrf.mxu0
    %v2203 = vadd.f32 0.0, %v2202
    %v2204 = vpop.f32.mrf.mxu0
    %2205 = vmatprep.mubr.f32.mxu0 0.0
    %2206 = vmatmul.mubr.f32.gmra.mxu0 %v1658
    %v2207 = vpop.f32.mrf.mxu0
    %v2208 = vadd.f32 0.0, %v2207
    %v2209 = vpop.f32.mrf.mxu0
    %2210 = vmatprep.mubr.f32.mxu0 0.0
    %2211 = vmatmul.mubr.f32.gmra.mxu0 %v1661
    %v2212 = vpop.f32.mrf.mxu0
    %v2213 = vadd.f32 0.0, %v2212
    %v2214 = vpop.f32.mrf.mxu0
    %2215 = vmatprep.mubr.f32.mxu0 0.0
    %2216 = vmatmul.mubr.f32.gmra.mxu0 %v1664
    %v2217 = vpop.f32.mrf.mxu0
    %v2218 = vadd.f32 0.0, %v2217
    %v2219 = vpop.f32.mrf.mxu0
    %2220 = vmatprep.mubr.f32.mxu0 0.0
    %2221 = vmatmul.mubr.f32.gmra.mxu0 %v1667
    %v2222 = vpop.f32.mrf.mxu0
    %v2223 = vpop.f32.mrf.mxu0
    %2224 = vmatprep.mubr.f32.mxu0 0.0
    %2225 = vmatmul.mubr.f32.gmra.mxu0 %v1670
    %v2226 = vpop.f32.mrf.mxu0
    %v2227 = vpop.f32.mrf.mxu0
    %2228 = vmatprep.mubr.f32.mxu0 0.0
    %2229 = vmatmul.mubr.f32.gmra.mxu0 %v1673
    %v2230 = vpop.f32.mrf.mxu0
    %v2231 = vadd.f32 0.0, %v2230
    %v2232 = vpop.f32.mrf.mxu0
    %2233 = vmatprep.mubr.f32.mxu0 0.0
    %2234 = vmatmul.mubr.f32.gmra.mxu0 %v1676
    %v2235 = vpop.f32.mrf.mxu0
    %v2236 = vadd.f32 0.0, %v2235
    %v2237 = vpop.f32.mrf.mxu0
    %2238 = vmatprep.mubr.f32.mxu0 0.0
    %2239 = vmatmul.mubr.f32.gmra.mxu0 %v1679
    %v2240 = vpop.f32.mrf.mxu0
    %v2241 = vadd.f32 0.0, %v2240
    %v2242 = vpop.f32.mrf.mxu0
    %2243 = vmatprep.mubr.f32.mxu0 0.0
    %2244 = vmatmul.mubr.f32.gmra.mxu0 %v1682
    %v2245 = vpop.f32.mrf.mxu0
    %v2246 = vadd.f32 0.0, %v2245
    %v2247 = vpop.f32.mrf.mxu0
    %2248 = vdwg.mxu0
    %v2249 = vadd.f32 %v2047, %v2147
    %v2250 = vadd.f32 %v2048, %v2152
    %v2251 = vadd.f32 %v2049, %v2157
    %v2252 = vadd.f32 %v2050, %v2162
    %v2253 = vadd.f32 %v2051, %v2175
    %v2254 = vadd.f32 %v2052, %v2180
    %v2255 = vadd.f32 %v2053, %v2185
    %v2256 = vadd.f32 %v2054, %v2190
    %v2257 = vadd.f32 %v2055, %v2203
    %v2258 = vadd.f32 %v2056, %v2208
    %v2259 = vadd.f32 %v2057, %v2213
    %v2260 = vadd.f32 %v2058, %v2218
    %v2261 = vadd.f32 %v2059, %v2231
    %v2262 = vadd.f32 %v2060, %v2236
    %v2263 = vadd.f32 %v2061, %v2241
    %v2264 = vadd.f32 %v2062, %v2246
    %s2265 = scalar_lea.vmem %s3, 192
    %v2266 = vld [vmem:[%s2265] sm:$0xff]
    %v2267 = vld [vmem:[%s2265 + $0x8] sm:$0xff]
    %v2268 = vld [vmem:[%s2265 + $0x10] sm:$0xff]
    %v2269 = vld [vmem:[%s2265 + $0x18] sm:$0xff]
    %v2270 = vld [vmem:[%s2265 + $0x20] sm:$0xff]
    %v2271 = vld [vmem:[%s2265 + $0x28] sm:$0xff]
    %v2272 = vld [vmem:[%s2265 + $0x30] sm:$0xff]
    %v2273 = vld [vmem:[%s2265 + $0x38] sm:$0xff]
    %v2275 = vsel %vm1611, %v1591, 0
    %v2278 = vsel %vm1611, %v1592, 0
    %v2281 = vsel %vm1611, %v1593, 0
    %v2284 = vsel %vm1611, %v1594, 0
    %v2287 = vsel %vm1611, %v1595, 0
    %v2290 = vsel %vm1611, %v1596, 0
    %2292 = vmatprep.subr.mxu0 0.0
    %2293 = vmatpush1.msra.mxu0 0.0
    %2294 = vmatprep.subr.mxu0 0.0
    %2295 = vmatpush1.msra.mxu0 0.0
    %2296 = vmatprep.subr.mxu0 0.0
    %2297 = vmatpush1.msra.mxu0 0.0
    %2298 = vmatprep.subr.mxu0 0.0
    %2299 = vmatpush1.msra.mxu0 0.0
    %2300 = vmatprep.subr.mxu0 0.0
    %2301 = vmatpush1.msra.mxu0 0.0
    %2302 = vmatprep.subr.mxu0 0.0
    %2303 = vmatpush1.msra.mxu0 0.0
    %2304 = vmatprep.subr.mxu0 0.0
    %2305 = vmatpush1.msra.mxu0 0.0
    %2306 = vmatprep.subr.mxu0 0.0
    %2307 = vmatpush1.msra.mxu0 0.0
    %2308 = vmatprep.subr.mxu0 0.0
    %2309 = vmatpush1.msra.mxu0 %v2273
    %2310 = vmatprep.subr.mxu0 0.0
    %2311 = vmatpush1.msra.mxu0 %v2272
    %2312 = vmatprep.subr.mxu0 0.0
    %2313 = vmatpush1.msra.mxu0 %v2271
    %2314 = vmatprep.subr.mxu0 0.0
    %2315 = vmatpush1.msra.mxu0 %v2270
    %2316 = vmatprep.subr.mxu0 0.0
    %2317 = vmatpush1.msra.mxu0 %v2269
    %2318 = vmatprep.subr.mxu0 0.0
    %2319 = vmatpush1.msra.mxu0 %v2268
    %2320 = vmatprep.subr.mxu0 0.0
    %2321 = vmatpush1.msra.mxu0 %v2267
    %2322 = vmatprep.subr.mxu0 0.0
    %2323 = vmatpush1.msra.mxu0 %v2266
    %2324 = vmatprep.subr.mxu0 0.0
    %2325 = vmatpush2.msra.mxu0 0.0
    %2326 = vmatprep.subr.mxu0 0.0
    %2327 = vmatpush2.msra.mxu0 0.0
    %2328 = vmatprep.subr.mxu0 0.0
    %2329 = vmatpush2.msra.mxu0 0.0
    %2330 = vmatprep.subr.mxu0 0.0
    %2331 = vmatpush2.msra.mxu0 0.0
    %2332 = vmatprep.subr.mxu0 0.0
    %2333 = vmatpush2.msra.mxu0 0.0
    %2334 = vmatprep.subr.mxu0 0.0
    %2335 = vmatpush2.msra.mxu0 0.0
    %2336 = vmatprep.subr.mxu0 0.0
    %2337 = vmatpush2.msra.mxu0 0.0
    %2338 = vmatprep.subr.mxu0 0.0
    %2339 = vmatpush2.msra.mxu0 0.0
    %2340 = vmatprep.subr.mxu0 0.0
    %2341 = vmatpush2.msra.mxu0 0.0
    %2342 = vmatprep.subr.mxu0 0.0
    %2343 = vmatpush2.msra.mxu0 0.0
    %2344 = vmatprep.subr.mxu0 0.0
    %2345 = vmatpush2.msra.mxu0 0.0
    %2346 = vmatprep.subr.mxu0 0.0
    %2347 = vmatpush2.msra.mxu0 0.0
    %2348 = vmatprep.subr.mxu0 0.0
    %2349 = vmatpush2.msra.mxu0 0.0
    %2350 = vmatprep.subr.mxu0 0.0
    %2351 = vmatpush2.msra.mxu0 0.0
    %2352 = vmatprep.subr.mxu0 0.0
    %2353 = vmatpush2.msra.mxu0 0.0
    %2354 = vmatprep.subr.mxu0 0.0
    %2355 = vmatpush2.msra.mxu0 0.0
    %2356 = vmatprep.mubr.f32.mxu0 0.0
    %2357 = vmatmul.mubr.f32.gmra.mxu0 %v1631
    %v2358 = vpop.f32.mrf.mxu0
    %v2359 = vadd.f32 0.0, %v2358
    %v2360 = vpop.f32.mrf.mxu0
    %2361 = vmatprep.mubr.f32.mxu0 0.0
    %2362 = vmatmul.mubr.f32.gmra.mxu0 %v1634
    %v2363 = vpop.f32.mrf.mxu0
    %v2364 = vadd.f32 0.0, %v2363
    %v2365 = vpop.f32.mrf.mxu0
    %2366 = vmatprep.mubr.f32.mxu0 0.0
    %2367 = vmatmul.mubr.f32.gmra.mxu0 %v1637
    %v2368 = vpop.f32.mrf.mxu0
    %v2369 = vadd.f32 0.0, %v2368
    %v2370 = vpop.f32.mrf.mxu0
    %2371 = vmatprep.mubr.f32.mxu0 0.0
    %2372 = vmatmul.mubr.f32.gmra.mxu0 %v1640
    %v2373 = vpop.f32.mrf.mxu0
    %v2374 = vadd.f32 0.0, %v2373
    %v2375 = vpop.f32.mrf.mxu0
    %2376 = vmatprep.mubr.f32.mxu0 0.0
    %2377 = vmatmul.mubr.f32.gmra.mxu0 %v1643
    %v2378 = vpop.f32.mrf.mxu0
    %v2379 = vpop.f32.mrf.mxu0
    %2380 = vmatprep.mubr.f32.mxu0 0.0
    %2381 = vmatmul.mubr.f32.gmra.mxu0 %v1646
    %v2382 = vpop.f32.mrf.mxu0
    %v2383 = vpop.f32.mrf.mxu0
    %2384 = vmatprep.mubr.f32.mxu0 0.0
    %2385 = vmatmul.mubr.f32.gmra.mxu0 %v1649
    %v2386 = vpop.f32.mrf.mxu0
    %v2387 = vadd.f32 0.0, %v2386
    %v2388 = vpop.f32.mrf.mxu0
    %2389 = vmatprep.mubr.f32.mxu0 0.0
    %2390 = vmatmul.mubr.f32.gmra.mxu0 %v1652
    %v2391 = vpop.f32.mrf.mxu0
    %v2392 = vadd.f32 0.0, %v2391
    %v2393 = vpop.f32.mrf.mxu0
    %2394 = vmatprep.mubr.f32.mxu0 0.0
    %2395 = vmatmul.mubr.f32.gmra.mxu0 %v1655
    %v2396 = vpop.f32.mrf.mxu0
    %v2397 = vadd.f32 0.0, %v2396
    %v2398 = vpop.f32.mrf.mxu0
    %2399 = vmatprep.mubr.f32.mxu0 0.0
    %2400 = vmatmul.mubr.f32.gmra.mxu0 %v1658
    %v2401 = vpop.f32.mrf.mxu0
    %v2402 = vadd.f32 0.0, %v2401
    %v2403 = vpop.f32.mrf.mxu0
    %2404 = vmatprep.mubr.f32.mxu0 0.0
    %2405 = vmatmul.mubr.f32.gmra.mxu0 %v1661
    %v2406 = vpop.f32.mrf.mxu0
    %v2407 = vpop.f32.mrf.mxu0
    %2408 = vmatprep.mubr.f32.mxu0 0.0
    %2409 = vmatmul.mubr.f32.gmra.mxu0 %v1664
    %v2410 = vpop.f32.mrf.mxu0
    %v2411 = vpop.f32.mrf.mxu0
    %2412 = vmatprep.mubr.f32.mxu0 0.0
    %2413 = vmatmul.mubr.f32.gmra.mxu0 %v1667
    %v2414 = vpop.f32.mrf.mxu0
    %v2415 = vadd.f32 0.0, %v2414
    %v2416 = vpop.f32.mrf.mxu0
    %2417 = vmatprep.mubr.f32.mxu0 0.0
    %2418 = vmatmul.mubr.f32.gmra.mxu0 %v1670
    %v2419 = vpop.f32.mrf.mxu0
    %v2420 = vadd.f32 0.0, %v2419
    %v2421 = vpop.f32.mrf.mxu0
    %2422 = vmatprep.mubr.f32.mxu0 0.0
    %2423 = vmatmul.mubr.f32.gmra.mxu0 %v1673
    %v2424 = vpop.f32.mrf.mxu0
    %v2425 = vadd.f32 0.0, %v2424
    %v2426 = vpop.f32.mrf.mxu0
    %2427 = vmatprep.mubr.f32.mxu0 0.0
    %2428 = vmatmul.mubr.f32.gmra.mxu0 %v1676
    %v2429 = vpop.f32.mrf.mxu0
    %v2430 = vadd.f32 0.0, %v2429
    %v2431 = vpop.f32.mrf.mxu0
    %2432 = vmatprep.mubr.f32.mxu0 0.0
    %2433 = vmatmul.mubr.f32.gmra.mxu0 %v1679
    %v2434 = vpop.f32.mrf.mxu0
    %v2435 = vpop.f32.mrf.mxu0
    %2436 = vmatprep.mubr.f32.mxu0 0.0
    %2437 = vmatmul.mubr.f32.gmra.mxu0 %v1682
    %v2438 = vpop.f32.mrf.mxu0
    %v2439 = vpop.f32.mrf.mxu0
    %2440 = vmatprep.mubr.f32.mxu0 0.0
    %2441 = vmatmul.mubr.f32.gmra.mxu0 %v2275
    %v2442 = vpop.f32.mrf.mxu0
    %v2443 = vadd.f32 0.0, %v2442
    %v2444 = vpop.f32.mrf.mxu0
    %2445 = vmatprep.mubr.f32.mxu0 0.0
    %2446 = vmatmul.mubr.f32.gmra.mxu0 %v2278
    %v2447 = vpop.f32.mrf.mxu0
    %v2448 = vadd.f32 0.0, %v2447
    %v2449 = vpop.f32.mrf.mxu0
    %2450 = vmatprep.mubr.f32.mxu0 0.0
    %2451 = vmatmul.mubr.f32.gmra.mxu0 %v2281
    %v2452 = vpop.f32.mrf.mxu0
    %v2453 = vadd.f32 0.0, %v2452
    %v2454 = vpop.f32.mrf.mxu0
    %2455 = vmatprep.mubr.f32.mxu0 0.0
    %2456 = vmatmul.mubr.f32.gmra.mxu0 %v2284
    %v2457 = vpop.f32.mrf.mxu0
    %v2458 = vadd.f32 0.0, %v2457
    %v2459 = vpop.f32.mrf.mxu0
    %2460 = vmatprep.mubr.f32.mxu0 0.0
    %2461 = vmatmul.mubr.f32.gmra.mxu0 %v2287
    %v2462 = vpop.f32.mrf.mxu0
    %v2463 = vpop.f32.mrf.mxu0
    %2464 = vmatprep.mubr.f32.mxu0 0.0
    %2465 = vmatmul.mubr.f32.gmra.mxu0 %v2290
    %v2466 = vpop.f32.mrf.mxu0
    %v2467 = vpop.f32.mrf.mxu0
    %2468 = vdwg.mxu0
    %v2469 = vadd.f32 %v2249, %v2359
    %v2470 = vadd.f32 %v2250, %v2364
    %v2471 = vadd.f32 %v2251, %v2369
    %v2472 = vadd.f32 %v2252, %v2374
    %v2473 = vadd.f32 %v2253, %v2387
    %v2474 = vadd.f32 %v2254, %v2392
    %v2475 = vadd.f32 %v2255, %v2397
    %v2476 = vadd.f32 %v2256, %v2402
    %v2477 = vadd.f32 %v2257, %v2415
    %v2478 = vadd.f32 %v2258, %v2420
    %v2479 = vadd.f32 %v2259, %v2425
    %v2480 = vadd.f32 %v2260, %v2430
    %v2481 = vadd.f32 %v2261, %v2443
    %v2482 = vadd.f32 %v2262, %v2448
    %v2483 = vadd.f32 %v2263, %v2453
    %v2484 = vadd.f32 %v2264, %v2458
    %s2485 = scalar_lea.vmem %s3, 256
    %v2486 = vld [vmem:[%s2485] sm:$0xff]
    %v2487 = vld [vmem:[%s2485 + $0x8] sm:$0xff]
    %v2488 = vld [vmem:[%s2485 + $0x10] sm:$0xff]
    %v2489 = vld [vmem:[%s2485 + $0x18] sm:$0xff]
    %v2490 = vld [vmem:[%s2485 + $0x20] sm:$0xff]
    %v2491 = vld [vmem:[%s2485 + $0x28] sm:$0xff]
    %v2492 = vld [vmem:[%s2485 + $0x30] sm:$0xff]
    %v2493 = vld [vmem:[%s2485 + $0x38] sm:$0xff]
    %2494 = vmatprep.subr.mxu0 0.0
    %2495 = vmatpush1.msra.mxu0 0.0
    %2496 = vmatprep.subr.mxu0 0.0
    %2497 = vmatpush1.msra.mxu0 0.0
    %2498 = vmatprep.subr.mxu0 0.0
    %2499 = vmatpush1.msra.mxu0 0.0
    %2500 = vmatprep.subr.mxu0 0.0
    %2501 = vmatpush1.msra.mxu0 0.0
    %2502 = vmatprep.subr.mxu0 0.0
    %2503 = vmatpush1.msra.mxu0 0.0
    %2504 = vmatprep.subr.mxu0 0.0
    %2505 = vmatpush1.msra.mxu0 0.0
    %2506 = vmatprep.subr.mxu0 0.0
    %2507 = vmatpush1.msra.mxu0 0.0
    %2508 = vmatprep.subr.mxu0 0.0
    %2509 = vmatpush1.msra.mxu0 0.0
    %2510 = vmatprep.subr.mxu0 0.0
    %2511 = vmatpush1.msra.mxu0 %v2493
    %2512 = vmatprep.subr.mxu0 0.0
    %2513 = vmatpush1.msra.mxu0 %v2492
    %2514 = vmatprep.subr.mxu0 0.0
    %2515 = vmatpush1.msra.mxu0 %v2491
    %2516 = vmatprep.subr.mxu0 0.0
    %2517 = vmatpush1.msra.mxu0 %v2490
    %2518 = vmatprep.subr.mxu0 0.0
    %2519 = vmatpush1.msra.mxu0 %v2489
    %2520 = vmatprep.subr.mxu0 0.0
    %2521 = vmatpush1.msra.mxu0 %v2488
    %2522 = vmatprep.subr.mxu0 0.0
    %2523 = vmatpush1.msra.mxu0 %v2487
    %2524 = vmatprep.subr.mxu0 0.0
    %2525 = vmatpush1.msra.mxu0 %v2486
    %2526 = vmatprep.subr.mxu0 0.0
    %2527 = vmatpush2.msra.mxu0 0.0
    %2528 = vmatprep.subr.mxu0 0.0
    %2529 = vmatpush2.msra.mxu0 0.0
    %2530 = vmatprep.subr.mxu0 0.0
    %2531 = vmatpush2.msra.mxu0 0.0
    %2532 = vmatprep.subr.mxu0 0.0
    %2533 = vmatpush2.msra.mxu0 0.0
    %2534 = vmatprep.subr.mxu0 0.0
    %2535 = vmatpush2.msra.mxu0 0.0
    %2536 = vmatprep.subr.mxu0 0.0
    %2537 = vmatpush2.msra.mxu0 0.0
    %2538 = vmatprep.subr.mxu0 0.0
    %2539 = vmatpush2.msra.mxu0 0.0
    %2540 = vmatprep.subr.mxu0 0.0
    %2541 = vmatpush2.msra.mxu0 0.0
    %2542 = vmatprep.subr.mxu0 0.0
    %2543 = vmatpush2.msra.mxu0 0.0
    %2544 = vmatprep.subr.mxu0 0.0
    %2545 = vmatpush2.msra.mxu0 0.0
    %2546 = vmatprep.subr.mxu0 0.0
    %2547 = vmatpush2.msra.mxu0 0.0
    %2548 = vmatprep.subr.mxu0 0.0
    %2549 = vmatpush2.msra.mxu0 0.0
    %2550 = vmatprep.subr.mxu0 0.0
    %2551 = vmatpush2.msra.mxu0 0.0
    %2552 = vmatprep.subr.mxu0 0.0
    %2553 = vmatpush2.msra.mxu0 0.0
    %2554 = vmatprep.subr.mxu0 0.0
    %2555 = vmatpush2.msra.mxu0 0.0
    %2556 = vmatprep.subr.mxu0 0.0
    %2557 = vmatpush2.msra.mxu0 0.0
    %2558 = vmatprep.mubr.f32.mxu0 0.0
    %2559 = vmatmul.mubr.f32.gmra.mxu0 %v1631
    %v2560 = vpop.f32.mrf.mxu0
    %v2561 = vpop.f32.mrf.mxu0
    %2562 = vmatprep.mubr.f32.mxu0 0.0
    %2563 = vmatmul.mubr.f32.gmra.mxu0 %v1634
    %v2564 = vpop.f32.mrf.mxu0
    %v2565 = vadd.f32 0.0, %v2564
    %v2566 = vpop.f32.mrf.mxu0
    %2567 = vmatprep.mubr.f32.mxu0 0.0
    %2568 = vmatmul.mubr.f32.gmra.mxu0 %v1637
    %v2569 = vpop.f32.mrf.mxu0
    %v2570 = vadd.f32 0.0, %v2569
    %v2571 = vpop.f32.mrf.mxu0
    %2572 = vmatprep.mubr.f32.mxu0 0.0
    %2573 = vmatmul.mubr.f32.gmra.mxu0 %v1640
    %v2574 = vpop.f32.mrf.mxu0
    %v2575 = vadd.f32 0.0, %v2574
    %v2576 = vpop.f32.mrf.mxu0
    %2577 = vmatprep.mubr.f32.mxu0 0.0
    %2578 = vmatmul.mubr.f32.gmra.mxu0 %v1643
    %v2579 = vpop.f32.mrf.mxu0
    %v2580 = vadd.f32 0.0, %v2579
    %v2581 = vpop.f32.mrf.mxu0
    %2582 = vmatprep.mubr.f32.mxu0 0.0
    %2583 = vmatmul.mubr.f32.gmra.mxu0 %v1646
    %v2584 = vpop.f32.mrf.mxu0
    %v2585 = vpop.f32.mrf.mxu0
    %2586 = vmatprep.mubr.f32.mxu0 0.0
    %2587 = vmatmul.mubr.f32.gmra.mxu0 %v1649
    %v2588 = vpop.f32.mrf.mxu0
    %v2589 = vpop.f32.mrf.mxu0
    %2590 = vmatprep.mubr.f32.mxu0 0.0
    %2591 = vmatmul.mubr.f32.gmra.mxu0 %v1652
    %v2592 = vpop.f32.mrf.mxu0
    %v2593 = vadd.f32 0.0, %v2592
    %v2594 = vpop.f32.mrf.mxu0
    %2595 = vmatprep.mubr.f32.mxu0 0.0
    %2596 = vmatmul.mubr.f32.gmra.mxu0 %v1655
    %v2597 = vpop.f32.mrf.mxu0
    %v2598 = vadd.f32 0.0, %v2597
    %v2599 = vpop.f32.mrf.mxu0
    %2600 = vmatprep.mubr.f32.mxu0 0.0
    %2601 = vmatmul.mubr.f32.gmra.mxu0 %v1658
    %v2602 = vpop.f32.mrf.mxu0
    %v2603 = vadd.f32 0.0, %v2602
    %v2604 = vpop.f32.mrf.mxu0
    %2605 = vmatprep.mubr.f32.mxu0 0.0
    %2606 = vmatmul.mubr.f32.gmra.mxu0 %v1661
    %v2607 = vpop.f32.mrf.mxu0
    %v2608 = vadd.f32 0.0, %v2607
    %v2609 = vpop.f32.mrf.mxu0
    %2610 = vmatprep.mubr.f32.mxu0 0.0
    %2611 = vmatmul.mubr.f32.gmra.mxu0 %v1664
    %v2612 = vpop.f32.mrf.mxu0
    %v2613 = vpop.f32.mrf.mxu0
    %2614 = vmatprep.mubr.f32.mxu0 0.0
    %2615 = vmatmul.mubr.f32.gmra.mxu0 %v1667
    %v2616 = vpop.f32.mrf.mxu0
    %v2617 = vpop.f32.mrf.mxu0
    %2618 = vmatprep.mubr.f32.mxu0 0.0
    %2619 = vmatmul.mubr.f32.gmra.mxu0 %v1670
    %v2620 = vpop.f32.mrf.mxu0
    %v2621 = vadd.f32 0.0, %v2620
    %v2622 = vpop.f32.mrf.mxu0
    %2623 = vmatprep.mubr.f32.mxu0 0.0
    %2624 = vmatmul.mubr.f32.gmra.mxu0 %v1673
    %v2625 = vpop.f32.mrf.mxu0
    %v2626 = vadd.f32 0.0, %v2625
    %v2627 = vpop.f32.mrf.mxu0
    %2628 = vmatprep.mubr.f32.mxu0 0.0
    %2629 = vmatmul.mubr.f32.gmra.mxu0 %v1676
    %v2630 = vpop.f32.mrf.mxu0
    %v2631 = vadd.f32 0.0, %v2630
    %v2632 = vpop.f32.mrf.mxu0
    %2633 = vmatprep.mubr.f32.mxu0 0.0
    %2634 = vmatmul.mubr.f32.gmra.mxu0 %v1679
    %v2635 = vpop.f32.mrf.mxu0
    %v2636 = vadd.f32 0.0, %v2635
    %v2637 = vpop.f32.mrf.mxu0
    %2638 = vmatprep.mubr.f32.mxu0 0.0
    %2639 = vmatmul.mubr.f32.gmra.mxu0 %v1682
    %v2640 = vpop.f32.mrf.mxu0
    %v2641 = vpop.f32.mrf.mxu0
    %2642 = vmatprep.mubr.f32.mxu0 0.0
    %2643 = vmatmul.mubr.f32.gmra.mxu0 %v2275
    %v2644 = vpop.f32.mrf.mxu0
    %v2645 = vpop.f32.mrf.mxu0
    %2646 = vmatprep.mubr.f32.mxu0 0.0
    %2647 = vmatmul.mubr.f32.gmra.mxu0 %v2278
    %v2648 = vpop.f32.mrf.mxu0
    %v2649 = vadd.f32 0.0, %v2648
    %v2650 = vpop.f32.mrf.mxu0
    %2651 = vmatprep.mubr.f32.mxu0 0.0
    %2652 = vmatmul.mubr.f32.gmra.mxu0 %v2281
    %v2653 = vpop.f32.mrf.mxu0
    %v2654 = vadd.f32 0.0, %v2653
    %v2655 = vpop.f32.mrf.mxu0
    %2656 = vmatprep.mubr.f32.mxu0 0.0
    %2657 = vmatmul.mubr.f32.gmra.mxu0 %v2284
    %v2658 = vpop.f32.mrf.mxu0
    %v2659 = vadd.f32 0.0, %v2658
    %v2660 = vpop.f32.mrf.mxu0
    %2661 = vmatprep.mubr.f32.mxu0 0.0
    %2662 = vmatmul.mubr.f32.gmra.mxu0 %v2287
    %v2663 = vpop.f32.mrf.mxu0
    %v2664 = vadd.f32 0.0, %v2663
    %v2665 = vpop.f32.mrf.mxu0
    %2666 = vmatprep.mubr.f32.mxu0 0.0
    %2667 = vmatmul.mubr.f32.gmra.mxu0 %v2290
    %v2668 = vpop.f32.mrf.mxu0
    %v2669 = vpop.f32.mrf.mxu0
    %2670 = vdwg.mxu0
    %v2671 = vadd.f32 %v2469, %v2565
    %v2672 = vadd.f32 %v2470, %v2570
    %v2673 = vadd.f32 %v2471, %v2575
    %v2674 = vadd.f32 %v2472, %v2580
    %v2675 = vadd.f32 %v2473, %v2593
    %v2676 = vadd.f32 %v2474, %v2598
    %v2677 = vadd.f32 %v2475, %v2603
    %v2678 = vadd.f32 %v2476, %v2608
    %v2679 = vadd.f32 %v2477, %v2621
    %v2680 = vadd.f32 %v2478, %v2626
    %v2681 = vadd.f32 %v2479, %v2631
    %v2682 = vadd.f32 %v2480, %v2636
    %v2683 = vadd.f32 %v2481, %v2649
    %v2684 = vadd.f32 %v2482, %v2654
    %v2685 = vadd.f32 %v2483, %v2659
    %v2686 = vadd.f32 %v2484, %v2664
    %s2687 = scalar_lea.vmem %s3, 320
    %v2688 = vld [vmem:[%s2687] sm:$0xff]
    %v2689 = vld [vmem:[%s2687 + $0x8] sm:$0xff]
    %v2690 = vld [vmem:[%s2687 + $0x10] sm:$0xff]
    %v2691 = vld [vmem:[%s2687 + $0x18] sm:$0xff]
    %v2692 = vld [vmem:[%s2687 + $0x20] sm:$0xff]
    %v2693 = vld [vmem:[%s2687 + $0x28] sm:$0xff]
    %v2694 = vld [vmem:[%s2687 + $0x30] sm:$0xff]
    %v2695 = vld [vmem:[%s2687 + $0x38] sm:$0xff]
    %2696 = vmatprep.subr.mxu0 0.0
    %2697 = vmatpush1.msra.mxu0 0.0
    %2698 = vmatprep.subr.mxu0 0.0
    %2699 = vmatpush1.msra.mxu0 0.0
    %2700 = vmatprep.subr.mxu0 0.0
    %2701 = vmatpush1.msra.mxu0 0.0
    %2702 = vmatprep.subr.mxu0 0.0
    %2703 = vmatpush1.msra.mxu0 0.0
    %2704 = vmatprep.subr.mxu0 0.0
    %2705 = vmatpush1.msra.mxu0 0.0
    %2706 = vmatprep.subr.mxu0 0.0
    %2707 = vmatpush1.msra.mxu0 0.0
    %2708 = vmatprep.subr.mxu0 0.0
    %2709 = vmatpush1.msra.mxu0 0.0
    %2710 = vmatprep.subr.mxu0 0.0
    %2711 = vmatpush1.msra.mxu0 0.0
    %2712 = vmatprep.subr.mxu0 0.0
    %2713 = vmatpush1.msra.mxu0 %v2695
    %2714 = vmatprep.subr.mxu0 0.0
    %2715 = vmatpush1.msra.mxu0 %v2694
    %2716 = vmatprep.subr.mxu0 0.0
    %2717 = vmatpush1.msra.mxu0 %v2693
    %2718 = vmatprep.subr.mxu0 0.0
    %2719 = vmatpush1.msra.mxu0 %v2692
    %2720 = vmatprep.subr.mxu0 0.0
    %2721 = vmatpush1.msra.mxu0 %v2691
    %2722 = vmatprep.subr.mxu0 0.0
    %2723 = vmatpush1.msra.mxu0 %v2690
    %2724 = vmatprep.subr.mxu0 0.0
    %2725 = vmatpush1.msra.mxu0 %v2689
    %2726 = vmatprep.subr.mxu0 0.0
    %2727 = vmatpush1.msra.mxu0 %v2688
    %2728 = vmatprep.subr.mxu0 0.0
    %2729 = vmatpush2.msra.mxu0 0.0
    %2730 = vmatprep.subr.mxu0 0.0
    %2731 = vmatpush2.msra.mxu0 0.0
    %2732 = vmatprep.subr.mxu0 0.0
    %2733 = vmatpush2.msra.mxu0 0.0
    %2734 = vmatprep.subr.mxu0 0.0
    %2735 = vmatpush2.msra.mxu0 0.0
    %2736 = vmatprep.subr.mxu0 0.0
    %2737 = vmatpush2.msra.mxu0 0.0
    %2738 = vmatprep.subr.mxu0 0.0
    %2739 = vmatpush2.msra.mxu0 0.0
    %2740 = vmatprep.subr.mxu0 0.0
    %2741 = vmatpush2.msra.mxu0 0.0
    %2742 = vmatprep.subr.mxu0 0.0
    %2743 = vmatpush2.msra.mxu0 0.0
    %2744 = vmatprep.subr.mxu0 0.0
    %2745 = vmatpush2.msra.mxu0 0.0
    %2746 = vmatprep.subr.mxu0 0.0
    %2747 = vmatpush2.msra.mxu0 0.0
    %2748 = vmatprep.subr.mxu0 0.0
    %2749 = vmatpush2.msra.mxu0 0.0
    %2750 = vmatprep.subr.mxu0 0.0
    %2751 = vmatpush2.msra.mxu0 0.0
    %2752 = vmatprep.subr.mxu0 0.0
    %2753 = vmatpush2.msra.mxu0 0.0
    %2754 = vmatprep.subr.mxu0 0.0
    %2755 = vmatpush2.msra.mxu0 0.0
    %2756 = vmatprep.subr.mxu0 0.0
    %2757 = vmatpush2.msra.mxu0 0.0
    %2758 = vmatprep.subr.mxu0 0.0
    %2759 = vmatpush2.msra.mxu0 0.0
    %2760 = vmatprep.mubr.f32.mxu0 0.0
    %2761 = vmatmul.mubr.f32.gmra.mxu0 %v1631
    %v2762 = vpop.f32.mrf.mxu0
    %v2763 = vpop.f32.mrf.mxu0
    %2764 = vmatprep.mubr.f32.mxu0 0.0
    %2765 = vmatmul.mubr.f32.gmra.mxu0 %v1634
    %v2766 = vpop.f32.mrf.mxu0
    %v2767 = vpop.f32.mrf.mxu0
    %2768 = vmatprep.mubr.f32.mxu0 0.0
    %2769 = vmatmul.mubr.f32.gmra.mxu0 %v1637
    %v2770 = vpop.f32.mrf.mxu0
    %v2771 = vadd.f32 0.0, %v2770
    %v2772 = vpop.f32.mrf.mxu0
    %2773 = vmatprep.mubr.f32.mxu0 0.0
    %2774 = vmatmul.mubr.f32.gmra.mxu0 %v1640
    %v2775 = vpop.f32.mrf.mxu0
    %v2776 = vadd.f32 0.0, %v2775
    %v2777 = vpop.f32.mrf.mxu0
    %2778 = vmatprep.mubr.f32.mxu0 0.0
    %2779 = vmatmul.mubr.f32.gmra.mxu0 %v1643
    %v2780 = vpop.f32.mrf.mxu0
    %v2781 = vadd.f32 0.0, %v2780
    %v2782 = vpop.f32.mrf.mxu0
    %2783 = vmatprep.mubr.f32.mxu0 0.0
    %2784 = vmatmul.mubr.f32.gmra.mxu0 %v1646
    %v2785 = vpop.f32.mrf.mxu0
    %v2786 = vadd.f32 0.0, %v2785
    %v2787 = vpop.f32.mrf.mxu0
    %2788 = vmatprep.mubr.f32.mxu0 0.0
    %2789 = vmatmul.mubr.f32.gmra.mxu0 %v1649
    %v2790 = vpop.f32.mrf.mxu0
    %v2791 = vpop.f32.mrf.mxu0
    %2792 = vmatprep.mubr.f32.mxu0 0.0
    %2793 = vmatmul.mubr.f32.gmra.mxu0 %v1652
    %v2794 = vpop.f32.mrf.mxu0
    %v2795 = vpop.f32.mrf.mxu0
    %2796 = vmatprep.mubr.f32.mxu0 0.0
    %2797 = vmatmul.mubr.f32.gmra.mxu0 %v1655
    %v2798 = vpop.f32.mrf.mxu0
    %v2799 = vadd.f32 0.0, %v2798
    %v2800 = vpop.f32.mrf.mxu0
    %2801 = vmatprep.mubr.f32.mxu0 0.0
    %2802 = vmatmul.mubr.f32.gmra.mxu0 %v1658
    %v2803 = vpop.f32.mrf.mxu0
    %v2804 = vadd.f32 0.0, %v2803
    %v2805 = vpop.f32.mrf.mxu0
    %2806 = vmatprep.mubr.f32.mxu0 0.0
    %2807 = vmatmul.mubr.f32.gmra.mxu0 %v1661
    %v2808 = vpop.f32.mrf.mxu0
    %v2809 = vadd.f32 0.0, %v2808
    %v2810 = vpop.f32.mrf.mxu0
    %2811 = vmatprep.mubr.f32.mxu0 0.0
    %2812 = vmatmul.mubr.f32.gmra.mxu0 %v1664
    %v2813 = vpop.f32.mrf.mxu0
    %v2814 = vadd.f32 0.0, %v2813
    %v2815 = vpop.f32.mrf.mxu0
    %2816 = vmatprep.mubr.f32.mxu0 0.0
    %2817 = vmatmul.mubr.f32.gmra.mxu0 %v1667
    %v2818 = vpop.f32.mrf.mxu0
    %v2819 = vpop.f32.mrf.mxu0
    %2820 = vmatprep.mubr.f32.mxu0 0.0
    %2821 = vmatmul.mubr.f32.gmra.mxu0 %v1670
    %v2822 = vpop.f32.mrf.mxu0
    %v2823 = vpop.f32.mrf.mxu0
    %2824 = vmatprep.mubr.f32.mxu0 0.0
    %2825 = vmatmul.mubr.f32.gmra.mxu0 %v1673
    %v2826 = vpop.f32.mrf.mxu0
    %v2827 = vadd.f32 0.0, %v2826
    %v2828 = vpop.f32.mrf.mxu0
    %2829 = vmatprep.mubr.f32.mxu0 0.0
    %2830 = vmatmul.mubr.f32.gmra.mxu0 %v1676
    %v2831 = vpop.f32.mrf.mxu0
    %v2832 = vadd.f32 0.0, %v2831
    %v2833 = vpop.f32.mrf.mxu0
    %2834 = vmatprep.mubr.f32.mxu0 0.0
    %2835 = vmatmul.mubr.f32.gmra.mxu0 %v1679
    %v2836 = vpop.f32.mrf.mxu0
    %v2837 = vadd.f32 0.0, %v2836
    %v2838 = vpop.f32.mrf.mxu0
    %2839 = vmatprep.mubr.f32.mxu0 0.0
    %2840 = vmatmul.mubr.f32.gmra.mxu0 %v1682
    %v2841 = vpop.f32.mrf.mxu0
    %v2842 = vadd.f32 0.0, %v2841
    %v2843 = vpop.f32.mrf.mxu0
    %2844 = vmatprep.mubr.f32.mxu0 0.0
    %2845 = vmatmul.mubr.f32.gmra.mxu0 %v2275
    %v2846 = vpop.f32.mrf.mxu0
    %v2847 = vpop.f32.mrf.mxu0
    %2848 = vmatprep.mubr.f32.mxu0 0.0
    %2849 = vmatmul.mubr.f32.gmra.mxu0 %v2278
    %v2850 = vpop.f32.mrf.mxu0
    %v2851 = vpop.f32.mrf.mxu0
    %2852 = vmatprep.mubr.f32.mxu0 0.0
    %2853 = vmatmul.mubr.f32.gmra.mxu0 %v2281
    %v2854 = vpop.f32.mrf.mxu0
    %v2855 = vadd.f32 0.0, %v2854
    %v2856 = vpop.f32.mrf.mxu0
    %2857 = vmatprep.mubr.f32.mxu0 0.0
    %2858 = vmatmul.mubr.f32.gmra.mxu0 %v2284
    %v2859 = vpop.f32.mrf.mxu0
    %v2860 = vadd.f32 0.0, %v2859
    %v2861 = vpop.f32.mrf.mxu0
    %2862 = vmatprep.mubr.f32.mxu0 0.0
    %2863 = vmatmul.mubr.f32.gmra.mxu0 %v2287
    %v2864 = vpop.f32.mrf.mxu0
    %v2865 = vadd.f32 0.0, %v2864
    %v2866 = vpop.f32.mrf.mxu0
    %2867 = vmatprep.mubr.f32.mxu0 0.0
    %2868 = vmatmul.mubr.f32.gmra.mxu0 %v2290
    %v2869 = vpop.f32.mrf.mxu0
    %v2870 = vadd.f32 0.0, %v2869
    %v2871 = vpop.f32.mrf.mxu0
    %2872 = vdwg.mxu0
    %v2873 = vadd.f32 %v2671, %v2771
    %v2874 = vadd.f32 %v2672, %v2776
    %v2875 = vadd.f32 %v2673, %v2781
    %v2876 = vadd.f32 %v2674, %v2786
    %v2877 = vadd.f32 %v2675, %v2799
    %v2878 = vadd.f32 %v2676, %v2804
    %v2879 = vadd.f32 %v2677, %v2809
    %v2880 = vadd.f32 %v2678, %v2814
    %v2881 = vadd.f32 %v2679, %v2827
    %v2882 = vadd.f32 %v2680, %v2832
    %v2883 = vadd.f32 %v2681, %v2837
    %v2884 = vadd.f32 %v2682, %v2842
    %v2885 = vadd.f32 %v2683, %v2855
    %v2886 = vadd.f32 %v2684, %v2860
    %v2887 = vadd.f32 %v2685, %v2865
    %v2888 = vadd.f32 %v2686, %v2870
    %s2889 = scalar_lea.vmem %s3, 384
    %v2890 = vld [vmem:[%s2889] sm:$0xff]
    %v2891 = vld [vmem:[%s2889 + $0x8] sm:$0xff]
    %v2892 = vld [vmem:[%s2889 + $0x10] sm:$0xff]
    %v2893 = vld [vmem:[%s2889 + $0x18] sm:$0xff]
    %v2894 = vld [vmem:[%s2889 + $0x20] sm:$0xff]
    %v2895 = vld [vmem:[%s2889 + $0x28] sm:$0xff]
    %v2896 = vld [vmem:[%s2889 + $0x30] sm:$0xff]
    %v2897 = vld [vmem:[%s2889 + $0x38] sm:$0xff]
    %v2899 = vsel %vm1611, %v1597, 0
    %v2902 = vsel %vm1611, %v1598, 0
    %v2905 = vsel %vm1611, %v1599, 0
    %v2908 = vsel %vm1611, %v1600, 0
    %v2911 = vsel %vm1611, %v1601, 0
    %v2914 = vsel %vm1611, %v1602, 0
    %2916 = vmatprep.subr.mxu0 0.0
    %2917 = vmatpush1.msra.mxu0 0.0
    %2918 = vmatprep.subr.mxu0 0.0
    %2919 = vmatpush1.msra.mxu0 0.0
    %2920 = vmatprep.subr.mxu0 0.0
    %2921 = vmatpush1.msra.mxu0 0.0
    %2922 = vmatprep.subr.mxu0 0.0
    %2923 = vmatpush1.msra.mxu0 0.0
    %2924 = vmatprep.subr.mxu0 0.0
    %2925 = vmatpush1.msra.mxu0 0.0
    %2926 = vmatprep.subr.mxu0 0.0
    %2927 = vmatpush1.msra.mxu0 0.0
    %2928 = vmatprep.subr.mxu0 0.0
    %2929 = vmatpush1.msra.mxu0 0.0
    %2930 = vmatprep.subr.mxu0 0.0
    %2931 = vmatpush1.msra.mxu0 0.0
    %2932 = vmatprep.subr.mxu0 0.0
    %2933 = vmatpush1.msra.mxu0 %v2897
    %2934 = vmatprep.subr.mxu0 0.0
    %2935 = vmatpush1.msra.mxu0 %v2896
    %2936 = vmatprep.subr.mxu0 0.0
    %2937 = vmatpush1.msra.mxu0 %v2895
    %2938 = vmatprep.subr.mxu0 0.0
    %2939 = vmatpush1.msra.mxu0 %v2894
    %2940 = vmatprep.subr.mxu0 0.0
    %2941 = vmatpush1.msra.mxu0 %v2893
    %2942 = vmatprep.subr.mxu0 0.0
    %2943 = vmatpush1.msra.mxu0 %v2892
    %2944 = vmatprep.subr.mxu0 0.0
    %2945 = vmatpush1.msra.mxu0 %v2891
    %2946 = vmatprep.subr.mxu0 0.0
    %2947 = vmatpush1.msra.mxu0 %v2890
    %2948 = vmatprep.subr.mxu0 0.0
    %2949 = vmatpush2.msra.mxu0 0.0
    %2950 = vmatprep.subr.mxu0 0.0
    %2951 = vmatpush2.msra.mxu0 0.0
    %2952 = vmatprep.subr.mxu0 0.0
    %2953 = vmatpush2.msra.mxu0 0.0
    %2954 = vmatprep.subr.mxu0 0.0
    %2955 = vmatpush2.msra.mxu0 0.0
    %2956 = vmatprep.subr.mxu0 0.0
    %2957 = vmatpush2.msra.mxu0 0.0
    %2958 = vmatprep.subr.mxu0 0.0
    %2959 = vmatpush2.msra.mxu0 0.0
    %2960 = vmatprep.subr.mxu0 0.0
    %2961 = vmatpush2.msra.mxu0 0.0
    %2962 = vmatprep.subr.mxu0 0.0
    %2963 = vmatpush2.msra.mxu0 0.0
    %2964 = vmatprep.subr.mxu0 0.0
    %2965 = vmatpush2.msra.mxu0 0.0
    %2966 = vmatprep.subr.mxu0 0.0
    %2967 = vmatpush2.msra.mxu0 0.0
    %2968 = vmatprep.subr.mxu0 0.0
    %2969 = vmatpush2.msra.mxu0 0.0
    %2970 = vmatprep.subr.mxu0 0.0
    %2971 = vmatpush2.msra.mxu0 0.0
    %2972 = vmatprep.subr.mxu0 0.0
    %2973 = vmatpush2.msra.mxu0 0.0
    %2974 = vmatprep.subr.mxu0 0.0
    %2975 = vmatpush2.msra.mxu0 0.0
    %2976 = vmatprep.subr.mxu0 0.0
    %2977 = vmatpush2.msra.mxu0 0.0
    %2978 = vmatprep.subr.mxu0 0.0
    %2979 = vmatpush2.msra.mxu0 0.0
    %2980 = vmatprep.mubr.f32.mxu0 0.0
    %2981 = vmatmul.mubr.f32.gmra.mxu0 %v1649
    %v2982 = vpop.f32.mrf.mxu0
    %v2983 = vadd.f32 0.0, %v2982
    %v2984 = vpop.f32.mrf.mxu0
    %2985 = vmatprep.mubr.f32.mxu0 0.0
    %2986 = vmatmul.mubr.f32.gmra.mxu0 %v1652
    %v2987 = vpop.f32.mrf.mxu0
    %v2988 = vadd.f32 0.0, %v2987
    %v2989 = vpop.f32.mrf.mxu0
    %2990 = vmatprep.mubr.f32.mxu0 0.0
    %2991 = vmatmul.mubr.f32.gmra.mxu0 %v1655
    %v2992 = vpop.f32.mrf.mxu0
    %v2993 = vadd.f32 0.0, %v2992
    %v2994 = vpop.f32.mrf.mxu0
    %2995 = vmatprep.mubr.f32.mxu0 0.0
    %2996 = vmatmul.mubr.f32.gmra.mxu0 %v1658
    %v2997 = vpop.f32.mrf.mxu0
    %v2998 = vadd.f32 0.0, %v2997
    %v2999 = vpop.f32.mrf.mxu0
    %3000 = vmatprep.mubr.f32.mxu0 0.0
    %3001 = vmatmul.mubr.f32.gmra.mxu0 %v1661
    %v3002 = vpop.f32.mrf.mxu0
    %v3003 = vpop.f32.mrf.mxu0
    %3004 = vmatprep.mubr.f32.mxu0 0.0
    %3005 = vmatmul.mubr.f32.gmra.mxu0 %v1664
    %v3006 = vpop.f32.mrf.mxu0
    %v3007 = vpop.f32.mrf.mxu0
    %3008 = vmatprep.mubr.f32.mxu0 0.0
    %3009 = vmatmul.mubr.f32.gmra.mxu0 %v1667
    %v3010 = vpop.f32.mrf.mxu0
    %v3011 = vadd.f32 0.0, %v3010
    %v3012 = vpop.f32.mrf.mxu0
    %3013 = vmatprep.mubr.f32.mxu0 0.0
    %3014 = vmatmul.mubr.f32.gmra.mxu0 %v1670
    %v3015 = vpop.f32.mrf.mxu0
    %v3016 = vadd.f32 0.0, %v3015
    %v3017 = vpop.f32.mrf.mxu0
    %3018 = vmatprep.mubr.f32.mxu0 0.0
    %3019 = vmatmul.mubr.f32.gmra.mxu0 %v1673
    %v3020 = vpop.f32.mrf.mxu0
    %v3021 = vadd.f32 0.0, %v3020
    %v3022 = vpop.f32.mrf.mxu0
    %3023 = vmatprep.mubr.f32.mxu0 0.0
    %3024 = vmatmul.mubr.f32.gmra.mxu0 %v1676
    %v3025 = vpop.f32.mrf.mxu0
    %v3026 = vadd.f32 0.0, %v3025
    %v3027 = vpop.f32.mrf.mxu0
    %3028 = vmatprep.mubr.f32.mxu0 0.0
    %3029 = vmatmul.mubr.f32.gmra.mxu0 %v1679
    %v3030 = vpop.f32.mrf.mxu0
    %v3031 = vpop.f32.mrf.mxu0
    %3032 = vmatprep.mubr.f32.mxu0 0.0
    %3033 = vmatmul.mubr.f32.gmra.mxu0 %v1682
    %v3034 = vpop.f32.mrf.mxu0
    %v3035 = vpop.f32.mrf.mxu0
    %3036 = vmatprep.mubr.f32.mxu0 0.0
    %3037 = vmatmul.mubr.f32.gmra.mxu0 %v2275
    %v3038 = vpop.f32.mrf.mxu0
    %v3039 = vadd.f32 0.0, %v3038
    %v3040 = vpop.f32.mrf.mxu0
    %3041 = vmatprep.mubr.f32.mxu0 0.0
    %3042 = vmatmul.mubr.f32.gmra.mxu0 %v2278
    %v3043 = vpop.f32.mrf.mxu0
    %v3044 = vadd.f32 0.0, %v3043
    %v3045 = vpop.f32.mrf.mxu0
    %3046 = vmatprep.mubr.f32.mxu0 0.0
    %3047 = vmatmul.mubr.f32.gmra.mxu0 %v2281
    %v3048 = vpop.f32.mrf.mxu0
    %v3049 = vadd.f32 0.0, %v3048
    %v3050 = vpop.f32.mrf.mxu0
    %3051 = vmatprep.mubr.f32.mxu0 0.0
    %3052 = vmatmul.mubr.f32.gmra.mxu0 %v2284
    %v3053 = vpop.f32.mrf.mxu0
    %v3054 = vadd.f32 0.0, %v3053
    %v3055 = vpop.f32.mrf.mxu0
    %3056 = vmatprep.mubr.f32.mxu0 0.0
    %3057 = vmatmul.mubr.f32.gmra.mxu0 %v2287
    %v3058 = vpop.f32.mrf.mxu0
    %v3059 = vpop.f32.mrf.mxu0
    %3060 = vmatprep.mubr.f32.mxu0 0.0
    %3061 = vmatmul.mubr.f32.gmra.mxu0 %v2290
    %v3062 = vpop.f32.mrf.mxu0
    %v3063 = vpop.f32.mrf.mxu0
    %3064 = vmatprep.mubr.f32.mxu0 0.0
    %3065 = vmatmul.mubr.f32.gmra.mxu0 %v2899
    %v3066 = vpop.f32.mrf.mxu0
    %v3067 = vadd.f32 0.0, %v3066
    %v3068 = vpop.f32.mrf.mxu0
    %3069 = vmatprep.mubr.f32.mxu0 0.0
    %3070 = vmatmul.mubr.f32.gmra.mxu0 %v2902
    %v3071 = vpop.f32.mrf.mxu0
    %v3072 = vadd.f32 0.0, %v3071
    %v3073 = vpop.f32.mrf.mxu0
    %3074 = vmatprep.mubr.f32.mxu0 0.0
    %3075 = vmatmul.mubr.f32.gmra.mxu0 %v2905
    %v3076 = vpop.f32.mrf.mxu0
    %v3077 = vadd.f32 0.0, %v3076
    %v3078 = vpop.f32.mrf.mxu0
    %3079 = vmatprep.mubr.f32.mxu0 0.0
    %3080 = vmatmul.mubr.f32.gmra.mxu0 %v2908
    %v3081 = vpop.f32.mrf.mxu0
    %v3082 = vadd.f32 0.0, %v3081
    %v3083 = vpop.f32.mrf.mxu0
    %3084 = vmatprep.mubr.f32.mxu0 0.0
    %3085 = vmatmul.mubr.f32.gmra.mxu0 %v2911
    %v3086 = vpop.f32.mrf.mxu0
    %v3087 = vpop.f32.mrf.mxu0
    %3088 = vmatprep.mubr.f32.mxu0 0.0
    %3089 = vmatmul.mubr.f32.gmra.mxu0 %v2914
    %v3090 = vpop.f32.mrf.mxu0
    %v3091 = vpop.f32.mrf.mxu0
    %3092 = vdwg.mxu0
    %v3093 = vadd.f32 %v2873, %v2983
    %v3094 = vadd.f32 %v2874, %v2988
    %v3095 = vadd.f32 %v2875, %v2993
    %v3096 = vadd.f32 %v2876, %v2998
    %v3097 = vadd.f32 %v2877, %v3011
    %v3098 = vadd.f32 %v2878, %v3016
    %v3099 = vadd.f32 %v2879, %v3021
    %v3100 = vadd.f32 %v2880, %v3026
    %v3101 = vadd.f32 %v2881, %v3039
    %v3102 = vadd.f32 %v2882, %v3044
    %v3103 = vadd.f32 %v2883, %v3049
    %v3104 = vadd.f32 %v2884, %v3054
    %v3105 = vadd.f32 %v2885, %v3067
    %v3106 = vadd.f32 %v2886, %v3072
    %v3107 = vadd.f32 %v2887, %v3077
    %v3108 = vadd.f32 %v2888, %v3082
    %s3109 = scalar_lea.vmem %s3, 448
    %v3110 = vld [vmem:[%s3109] sm:$0xff]
    %v3111 = vld [vmem:[%s3109 + $0x8] sm:$0xff]
    %v3112 = vld [vmem:[%s3109 + $0x10] sm:$0xff]
    %v3113 = vld [vmem:[%s3109 + $0x18] sm:$0xff]
    %v3114 = vld [vmem:[%s3109 + $0x20] sm:$0xff]
    %v3115 = vld [vmem:[%s3109 + $0x28] sm:$0xff]
    %v3116 = vld [vmem:[%s3109 + $0x30] sm:$0xff]
    %v3117 = vld [vmem:[%s3109 + $0x38] sm:$0xff]
    %3118 = vmatprep.subr.mxu0 0.0
    %3119 = vmatpush1.msra.mxu0 0.0
    %3120 = vmatprep.subr.mxu0 0.0
    %3121 = vmatpush1.msra.mxu0 0.0
    %3122 = vmatprep.subr.mxu0 0.0
    %3123 = vmatpush1.msra.mxu0 0.0
    %3124 = vmatprep.subr.mxu0 0.0
    %3125 = vmatpush1.msra.mxu0 0.0
    %3126 = vmatprep.subr.mxu0 0.0
    %3127 = vmatpush1.msra.mxu0 0.0
    %3128 = vmatprep.subr.mxu0 0.0
    %3129 = vmatpush1.msra.mxu0 0.0
    %3130 = vmatprep.subr.mxu0 0.0
    %3131 = vmatpush1.msra.mxu0 0.0
    %3132 = vmatprep.subr.mxu0 0.0
    %3133 = vmatpush1.msra.mxu0 0.0
    %3134 = vmatprep.subr.mxu0 0.0
    %3135 = vmatpush1.msra.mxu0 %v3117
    %3136 = vmatprep.subr.mxu0 0.0
    %3137 = vmatpush1.msra.mxu0 %v3116
    %3138 = vmatprep.subr.mxu0 0.0
    %3139 = vmatpush1.msra.mxu0 %v3115
    %3140 = vmatprep.subr.mxu0 0.0
    %3141 = vmatpush1.msra.mxu0 %v3114
    %3142 = vmatprep.subr.mxu0 0.0
    %3143 = vmatpush1.msra.mxu0 %v3113
    %3144 = vmatprep.subr.mxu0 0.0
    %3145 = vmatpush1.msra.mxu0 %v3112
    %3146 = vmatprep.subr.mxu0 0.0
    %3147 = vmatpush1.msra.mxu0 %v3111
    %3148 = vmatprep.subr.mxu0 0.0
    %3149 = vmatpush1.msra.mxu0 %v3110
    %3150 = vmatprep.subr.mxu0 0.0
    %3151 = vmatpush2.msra.mxu0 0.0
    %3152 = vmatprep.subr.mxu0 0.0
    %3153 = vmatpush2.msra.mxu0 0.0
    %3154 = vmatprep.subr.mxu0 0.0
    %3155 = vmatpush2.msra.mxu0 0.0
    %3156 = vmatprep.subr.mxu0 0.0
    %3157 = vmatpush2.msra.mxu0 0.0
    %3158 = vmatprep.subr.mxu0 0.0
    %3159 = vmatpush2.msra.mxu0 0.0
    %3160 = vmatprep.subr.mxu0 0.0
    %3161 = vmatpush2.msra.mxu0 0.0
    %3162 = vmatprep.subr.mxu0 0.0
    %3163 = vmatpush2.msra.mxu0 0.0
    %3164 = vmatprep.subr.mxu0 0.0
    %3165 = vmatpush2.msra.mxu0 0.0
    %3166 = vmatprep.subr.mxu0 0.0
    %3167 = vmatpush2.msra.mxu0 0.0
    %3168 = vmatprep.subr.mxu0 0.0
    %3169 = vmatpush2.msra.mxu0 0.0
    %3170 = vmatprep.subr.mxu0 0.0
    %3171 = vmatpush2.msra.mxu0 0.0
    %3172 = vmatprep.subr.mxu0 0.0
    %3173 = vmatpush2.msra.mxu0 0.0
    %3174 = vmatprep.subr.mxu0 0.0
    %3175 = vmatpush2.msra.mxu0 0.0
    %3176 = vmatprep.subr.mxu0 0.0
    %3177 = vmatpush2.msra.mxu0 0.0
    %3178 = vmatprep.subr.mxu0 0.0
    %3179 = vmatpush2.msra.mxu0 0.0
    %3180 = vmatprep.subr.mxu0 0.0
    %3181 = vmatpush2.msra.mxu0 0.0
    %3182 = vmatprep.mubr.f32.mxu0 0.0
    %3183 = vmatmul.mubr.f32.gmra.mxu0 %v1649
    %v3184 = vpop.f32.mrf.mxu0
    %v3185 = vpop.f32.mrf.mxu0
    %3186 = vmatprep.mubr.f32.mxu0 0.0
    %3187 = vmatmul.mubr.f32.gmra.mxu0 %v1652
    %v3188 = vpop.f32.mrf.mxu0
    %v3189 = vadd.f32 0.0, %v3188
    %v3190 = vpop.f32.mrf.mxu0
    %3191 = vmatprep.mubr.f32.mxu0 0.0
    %3192 = vmatmul.mubr.f32.gmra.mxu0 %v1655
    %v3193 = vpop.f32.mrf.mxu0
    %v3194 = vadd.f32 0.0, %v3193
    %v3195 = vpop.f32.mrf.mxu0
    %3196 = vmatprep.mubr.f32.mxu0 0.0
    %3197 = vmatmul.mubr.f32.gmra.mxu0 %v1658
    %v3198 = vpop.f32.mrf.mxu0
    %v3199 = vadd.f32 0.0, %v3198
    %v3200 = vpop.f32.mrf.mxu0
    %3201 = vmatprep.mubr.f32.mxu0 0.0
    %3202 = vmatmul.mubr.f32.gmra.mxu0 %v1661
    %v3203 = vpop.f32.mrf.mxu0
    %v3204 = vadd.f32 0.0, %v3203
    %v3205 = vpop.f32.mrf.mxu0
    %3206 = vmatprep.mubr.f32.mxu0 0.0
    %3207 = vmatmul.mubr.f32.gmra.mxu0 %v1664
    %v3208 = vpop.f32.mrf.mxu0
    %v3209 = vpop.f32.mrf.mxu0
    %3210 = vmatprep.mubr.f32.mxu0 0.0
    %3211 = vmatmul.mubr.f32.gmra.mxu0 %v1667
    %v3212 = vpop.f32.mrf.mxu0
    %v3213 = vpop.f32.mrf.mxu0
    %3214 = vmatprep.mubr.f32.mxu0 0.0
    %3215 = vmatmul.mubr.f32.gmra.mxu0 %v1670
    %v3216 = vpop.f32.mrf.mxu0
    %v3217 = vadd.f32 0.0, %v3216
    %v3218 = vpop.f32.mrf.mxu0
    %3219 = vmatprep.mubr.f32.mxu0 0.0
    %3220 = vmatmul.mubr.f32.gmra.mxu0 %v1673
    %v3221 = vpop.f32.mrf.mxu0
    %v3222 = vadd.f32 0.0, %v3221
    %v3223 = vpop.f32.mrf.mxu0
    %3224 = vmatprep.mubr.f32.mxu0 0.0
    %3225 = vmatmul.mubr.f32.gmra.mxu0 %v1676
    %v3226 = vpop.f32.mrf.mxu0
    %v3227 = vadd.f32 0.0, %v3226
    %v3228 = vpop.f32.mrf.mxu0
    %3229 = vmatprep.mubr.f32.mxu0 0.0
    %3230 = vmatmul.mubr.f32.gmra.mxu0 %v1679
    %v3231 = vpop.f32.mrf.mxu0
    %v3232 = vadd.f32 0.0, %v3231
    %v3233 = vpop.f32.mrf.mxu0
    %3234 = vmatprep.mubr.f32.mxu0 0.0
    %3235 = vmatmul.mubr.f32.gmra.mxu0 %v1682
    %v3236 = vpop.f32.mrf.mxu0
    %v3237 = vpop.f32.mrf.mxu0
    %3238 = vmatprep.mubr.f32.mxu0 0.0
    %3239 = vmatmul.mubr.f32.gmra.mxu0 %v2275
    %v3240 = vpop.f32.mrf.mxu0
    %v3241 = vpop.f32.mrf.mxu0
    %3242 = vmatprep.mubr.f32.mxu0 0.0
    %3243 = vmatmul.mubr.f32.gmra.mxu0 %v2278
    %v3244 = vpop.f32.mrf.mxu0
    %v3245 = vadd.f32 0.0, %v3244
    %v3246 = vpop.f32.mrf.mxu0
    %3247 = vmatprep.mubr.f32.mxu0 0.0
    %3248 = vmatmul.mubr.f32.gmra.mxu0 %v2281
    %v3249 = vpop.f32.mrf.mxu0
    %v3250 = vadd.f32 0.0, %v3249
    %v3251 = vpop.f32.mrf.mxu0
    %3252 = vmatprep.mubr.f32.mxu0 0.0
    %3253 = vmatmul.mubr.f32.gmra.mxu0 %v2284
    %v3254 = vpop.f32.mrf.mxu0
    %v3255 = vadd.f32 0.0, %v3254
    %v3256 = vpop.f32.mrf.mxu0
    %3257 = vmatprep.mubr.f32.mxu0 0.0
    %3258 = vmatmul.mubr.f32.gmra.mxu0 %v2287
    %v3259 = vpop.f32.mrf.mxu0
    %v3260 = vadd.f32 0.0, %v3259
    %v3261 = vpop.f32.mrf.mxu0
    %3262 = vmatprep.mubr.f32.mxu0 0.0
    %3263 = vmatmul.mubr.f32.gmra.mxu0 %v2290
    %v3264 = vpop.f32.mrf.mxu0
    %v3265 = vpop.f32.mrf.mxu0
    %3266 = vmatprep.mubr.f32.mxu0 0.0
    %3267 = vmatmul.mubr.f32.gmra.mxu0 %v2899
    %v3268 = vpop.f32.mrf.mxu0
    %v3269 = vpop.f32.mrf.mxu0
    %3270 = vmatprep.mubr.f32.mxu0 0.0
    %3271 = vmatmul.mubr.f32.gmra.mxu0 %v2902
    %v3272 = vpop.f32.mrf.mxu0
    %v3273 = vadd.f32 0.0, %v3272
    %v3274 = vpop.f32.mrf.mxu0
    %3275 = vmatprep.mubr.f32.mxu0 0.0
    %3276 = vmatmul.mubr.f32.gmra.mxu0 %v2905
    %v3277 = vpop.f32.mrf.mxu0
    %v3278 = vadd.f32 0.0, %v3277
    %v3279 = vpop.f32.mrf.mxu0
    %3280 = vmatprep.mubr.f32.mxu0 0.0
    %3281 = vmatmul.mubr.f32.gmra.mxu0 %v2908
    %v3282 = vpop.f32.mrf.mxu0
    %v3283 = vadd.f32 0.0, %v3282
    %v3284 = vpop.f32.mrf.mxu0
    %3285 = vmatprep.mubr.f32.mxu0 0.0
    %3286 = vmatmul.mubr.f32.gmra.mxu0 %v2911
    %v3287 = vpop.f32.mrf.mxu0
    %v3288 = vadd.f32 0.0, %v3287
    %v3289 = vpop.f32.mrf.mxu0
    %3290 = vmatprep.mubr.f32.mxu0 0.0
    %3291 = vmatmul.mubr.f32.gmra.mxu0 %v2914
    %v3292 = vpop.f32.mrf.mxu0
    %v3293 = vpop.f32.mrf.mxu0
    %3294 = vdwg.mxu0
    %v3295 = vadd.f32 %v3093, %v3189
    %v3296 = vadd.f32 %v3094, %v3194
    %v3297 = vadd.f32 %v3095, %v3199
    %v3298 = vadd.f32 %v3096, %v3204
    %v3299 = vadd.f32 %v3097, %v3217
    %v3300 = vadd.f32 %v3098, %v3222
    %v3301 = vadd.f32 %v3099, %v3227
    %v3302 = vadd.f32 %v3100, %v3232
    %v3303 = vadd.f32 %v3101, %v3245
    %v3304 = vadd.f32 %v3102, %v3250
    %v3305 = vadd.f32 %v3103, %v3255
    %v3306 = vadd.f32 %v3104, %v3260
    %v3307 = vadd.f32 %v3105, %v3273
    %v3308 = vadd.f32 %v3106, %v3278
    %v3309 = vadd.f32 %v3107, %v3283
    %v3310 = vadd.f32 %v3108, %v3288
    %s3311 = scalar_lea.vmem %s3, 512
    %v3312 = vld [vmem:[%s3311] sm:$0xff]
    %v3313 = vld [vmem:[%s3311 + $0x8] sm:$0xff]
    %v3314 = vld [vmem:[%s3311 + $0x10] sm:$0xff]
    %v3315 = vld [vmem:[%s3311 + $0x18] sm:$0xff]
    %v3316 = vld [vmem:[%s3311 + $0x20] sm:$0xff]
    %v3317 = vld [vmem:[%s3311 + $0x28] sm:$0xff]
    %v3318 = vld [vmem:[%s3311 + $0x30] sm:$0xff]
    %v3319 = vld [vmem:[%s3311 + $0x38] sm:$0xff]
    %3320 = vmatprep.subr.mxu0 0.0
    %3321 = vmatpush1.msra.mxu0 0.0
    %3322 = vmatprep.subr.mxu0 0.0
    %3323 = vmatpush1.msra.mxu0 0.0
    %3324 = vmatprep.subr.mxu0 0.0
    %3325 = vmatpush1.msra.mxu0 0.0
    %3326 = vmatprep.subr.mxu0 0.0
    %3327 = vmatpush1.msra.mxu0 0.0
    %3328 = vmatprep.subr.mxu0 0.0
    %3329 = vmatpush1.msra.mxu0 0.0
    %3330 = vmatprep.subr.mxu0 0.0
    %3331 = vmatpush1.msra.mxu0 0.0
    %3332 = vmatprep.subr.mxu0 0.0
    %3333 = vmatpush1.msra.mxu0 0.0
    %3334 = vmatprep.subr.mxu0 0.0
    %3335 = vmatpush1.msra.mxu0 0.0
    %3336 = vmatprep.subr.mxu0 0.0
    %3337 = vmatpush1.msra.mxu0 %v3319
    %3338 = vmatprep.subr.mxu0 0.0
    %3339 = vmatpush1.msra.mxu0 %v3318
    %3340 = vmatprep.subr.mxu0 0.0
    %3341 = vmatpush1.msra.mxu0 %v3317
    %3342 = vmatprep.subr.mxu0 0.0
    %3343 = vmatpush1.msra.mxu0 %v3316
    %3344 = vmatprep.subr.mxu0 0.0
    %3345 = vmatpush1.msra.mxu0 %v3315
    %3346 = vmatprep.subr.mxu0 0.0
    %3347 = vmatpush1.msra.mxu0 %v3314
    %3348 = vmatprep.subr.mxu0 0.0
    %3349 = vmatpush1.msra.mxu0 %v3313
    %3350 = vmatprep.subr.mxu0 0.0
    %3351 = vmatpush1.msra.mxu0 %v3312
    %3352 = vmatprep.subr.mxu0 0.0
    %3353 = vmatpush2.msra.mxu0 0.0
    %3354 = vmatprep.subr.mxu0 0.0
    %3355 = vmatpush2.msra.mxu0 0.0
    %3356 = vmatprep.subr.mxu0 0.0
    %3357 = vmatpush2.msra.mxu0 0.0
    %3358 = vmatprep.subr.mxu0 0.0
    %3359 = vmatpush2.msra.mxu0 0.0
    %3360 = vmatprep.subr.mxu0 0.0
    %3361 = vmatpush2.msra.mxu0 0.0
    %3362 = vmatprep.subr.mxu0 0.0
    %3363 = vmatpush2.msra.mxu0 0.0
    %3364 = vmatprep.subr.mxu0 0.0
    %3365 = vmatpush2.msra.mxu0 0.0
    %3366 = vmatprep.subr.mxu0 0.0
    %3367 = vmatpush2.msra.mxu0 0.0
    %3368 = vmatprep.subr.mxu0 0.0
    %3369 = vmatpush2.msra.mxu0 0.0
    %3370 = vmatprep.subr.mxu0 0.0
    %3371 = vmatpush2.msra.mxu0 0.0
    %3372 = vmatprep.subr.mxu0 0.0
    %3373 = vmatpush2.msra.mxu0 0.0
    %3374 = vmatprep.subr.mxu0 0.0
    %3375 = vmatpush2.msra.mxu0 0.0
    %3376 = vmatprep.subr.mxu0 0.0
    %3377 = vmatpush2.msra.mxu0 0.0
    %3378 = vmatprep.subr.mxu0 0.0
    %3379 = vmatpush2.msra.mxu0 0.0
    %3380 = vmatprep.subr.mxu0 0.0
    %3381 = vmatpush2.msra.mxu0 0.0
    %3382 = vmatprep.subr.mxu0 0.0
    %3383 = vmatpush2.msra.mxu0 0.0
    %3384 = vmatprep.mubr.f32.mxu0 0.0
    %3385 = vmatmul.mubr.f32.gmra.mxu0 %v1649
    %v3386 = vpop.f32.mrf.mxu0
    %v3387 = vpop.f32.mrf.mxu0
    %3388 = vmatprep.mubr.f32.mxu0 0.0
    %3389 = vmatmul.mubr.f32.gmra.mxu0 %v1652
    %v3390 = vpop.f32.mrf.mxu0
    %v3391 = vpop.f32.mrf.mxu0
    %3392 = vmatprep.mubr.f32.mxu0 0.0
    %3393 = vmatmul.mubr.f32.gmra.mxu0 %v1655
    %v3394 = vpop.f32.mrf.mxu0
    %v3395 = vadd.f32 0.0, %v3394
    %v3396 = vpop.f32.mrf.mxu0
    %3397 = vmatprep.mubr.f32.mxu0 0.0
    %3398 = vmatmul.mubr.f32.gmra.mxu0 %v1658
    %v3399 = vpop.f32.mrf.mxu0
    %v3400 = vadd.f32 0.0, %v3399
    %v3401 = vpop.f32.mrf.mxu0
    %3402 = vmatprep.mubr.f32.mxu0 0.0
    %3403 = vmatmul.mubr.f32.gmra.mxu0 %v1661
    %v3404 = vpop.f32.mrf.mxu0
    %v3405 = vadd.f32 0.0, %v3404
    %v3406 = vpop.f32.mrf.mxu0
    %3407 = vmatprep.mubr.f32.mxu0 0.0
    %3408 = vmatmul.mubr.f32.gmra.mxu0 %v1664
    %v3409 = vpop.f32.mrf.mxu0
    %v3410 = vadd.f32 0.0, %v3409
    %v3411 = vpop.f32.mrf.mxu0
    %3412 = vmatprep.mubr.f32.mxu0 0.0
    %3413 = vmatmul.mubr.f32.gmra.mxu0 %v1667
    %v3414 = vpop.f32.mrf.mxu0
    %v3415 = vpop.f32.mrf.mxu0
    %3416 = vmatprep.mubr.f32.mxu0 0.0
    %3417 = vmatmul.mubr.f32.gmra.mxu0 %v1670
    %v3418 = vpop.f32.mrf.mxu0
    %v3419 = vpop.f32.mrf.mxu0
    %3420 = vmatprep.mubr.f32.mxu0 0.0
    %3421 = vmatmul.mubr.f32.gmra.mxu0 %v1673
    %v3422 = vpop.f32.mrf.mxu0
    %v3423 = vadd.f32 0.0, %v3422
    %v3424 = vpop.f32.mrf.mxu0
    %3425 = vmatprep.mubr.f32.mxu0 0.0
    %3426 = vmatmul.mubr.f32.gmra.mxu0 %v1676
    %v3427 = vpop.f32.mrf.mxu0
    %v3428 = vadd.f32 0.0, %v3427
    %v3429 = vpop.f32.mrf.mxu0
    %3430 = vmatprep.mubr.f32.mxu0 0.0
    %3431 = vmatmul.mubr.f32.gmra.mxu0 %v1679
    %v3432 = vpop.f32.mrf.mxu0
    %v3433 = vadd.f32 0.0, %v3432
    %v3434 = vpop.f32.mrf.mxu0
    %3435 = vmatprep.mubr.f32.mxu0 0.0
    %3436 = vmatmul.mubr.f32.gmra.mxu0 %v1682
    %v3437 = vpop.f32.mrf.mxu0
    %v3438 = vadd.f32 0.0, %v3437
    %v3439 = vpop.f32.mrf.mxu0
    %3440 = vmatprep.mubr.f32.mxu0 0.0
    %3441 = vmatmul.mubr.f32.gmra.mxu0 %v2275
    %v3442 = vpop.f32.mrf.mxu0
    %v3443 = vpop.f32.mrf.mxu0
    %3444 = vmatprep.mubr.f32.mxu0 0.0
    %3445 = vmatmul.mubr.f32.gmra.mxu0 %v2278
    %v3446 = vpop.f32.mrf.mxu0
    %v3447 = vpop.f32.mrf.mxu0
    %3448 = vmatprep.mubr.f32.mxu0 0.0
    %3449 = vmatmul.mubr.f32.gmra.mxu0 %v2281
    %v3450 = vpop.f32.mrf.mxu0
    %v3451 = vadd.f32 0.0, %v3450
    %v3452 = vpop.f32.mrf.mxu0
    %3453 = vmatprep.mubr.f32.mxu0 0.0
    %3454 = vmatmul.mubr.f32.gmra.mxu0 %v2284
    %v3455 = vpop.f32.mrf.mxu0
    %v3456 = vadd.f32 0.0, %v3455
    %v3457 = vpop.f32.mrf.mxu0
    %3458 = vmatprep.mubr.f32.mxu0 0.0
    %3459 = vmatmul.mubr.f32.gmra.mxu0 %v2287
    %v3460 = vpop.f32.mrf.mxu0
    %v3461 = vadd.f32 0.0, %v3460
    %v3462 = vpop.f32.mrf.mxu0
    %3463 = vmatprep.mubr.f32.mxu0 0.0
    %3464 = vmatmul.mubr.f32.gmra.mxu0 %v2290
    %v3465 = vpop.f32.mrf.mxu0
    %v3466 = vadd.f32 0.0, %v3465
    %v3467 = vpop.f32.mrf.mxu0
    %3468 = vmatprep.mubr.f32.mxu0 0.0
    %3469 = vmatmul.mubr.f32.gmra.mxu0 %v2899
    %v3470 = vpop.f32.mrf.mxu0
    %v3471 = vpop.f32.mrf.mxu0
    %3472 = vmatprep.mubr.f32.mxu0 0.0
    %3473 = vmatmul.mubr.f32.gmra.mxu0 %v2902
    %v3474 = vpop.f32.mrf.mxu0
    %v3475 = vpop.f32.mrf.mxu0
    %3476 = vmatprep.mubr.f32.mxu0 0.0
    %3477 = vmatmul.mubr.f32.gmra.mxu0 %v2905
    %v3478 = vpop.f32.mrf.mxu0
    %v3479 = vadd.f32 0.0, %v3478
    %v3480 = vpop.f32.mrf.mxu0
    %3481 = vmatprep.mubr.f32.mxu0 0.0
    %3482 = vmatmul.mubr.f32.gmra.mxu0 %v2908
    %v3483 = vpop.f32.mrf.mxu0
    %v3484 = vadd.f32 0.0, %v3483
    %v3485 = vpop.f32.mrf.mxu0
    %3486 = vmatprep.mubr.f32.mxu0 0.0
    %3487 = vmatmul.mubr.f32.gmra.mxu0 %v2911
    %v3488 = vpop.f32.mrf.mxu0
    %v3489 = vadd.f32 0.0, %v3488
    %v3490 = vpop.f32.mrf.mxu0
    %3491 = vmatprep.mubr.f32.mxu0 0.0
    %3492 = vmatmul.mubr.f32.gmra.mxu0 %v2914
    %v3493 = vpop.f32.mrf.mxu0
    %v3494 = vadd.f32 0.0, %v3493
    %v3495 = vpop.f32.mrf.mxu0
    %3496 = vdwg.mxu0
    %v3497 = vadd.f32 %v3295, %v3395
    %v3498 = vadd.f32 %v3296, %v3400
    %v3499 = vadd.f32 %v3297, %v3405
    %v3500 = vadd.f32 %v3298, %v3410
    %v3501 = vadd.f32 %v3299, %v3423
    %v3502 = vadd.f32 %v3300, %v3428
    %v3503 = vadd.f32 %v3301, %v3433
    %v3504 = vadd.f32 %v3302, %v3438
    %v3505 = vadd.f32 %v3303, %v3451
    %v3506 = vadd.f32 %v3304, %v3456
    %v3507 = vadd.f32 %v3305, %v3461
    %v3508 = vadd.f32 %v3306, %v3466
    %v3509 = vadd.f32 %v3307, %v3479
    %v3510 = vadd.f32 %v3308, %v3484
    %v3511 = vadd.f32 %v3309, %v3489
    %v3512 = vadd.f32 %v3310, %v3494
    %v3513 = vld [vmem:[%s4] sm:$0x1]
    %v3514 = vmax.f32 %v3497, %v3498
    %v3515 = vmax.f32 %v3501, %v3502
    %v3516 = vmax.f32 %v3514, %v3515
    %v3518 = vlaneseq
    %v3519 = vshrl.u32 %v3518, 7
    %v3520 = vsub.s32 0, %v3519
    %v3521 = vrot.slane %v3513, %v3520
    %v3523 = vadd.f32 %v3516, %v3521
    %v3524 = vmax.f32 %v3523, 0.0
    %v3525 = vmax.f32 %v3499, %v3500
    %v3526 = vmax.f32 %v3503, %v3504
    %v3527 = vmax.f32 %v3525, %v3526
    %v3528 = vadd.f32 %v3527, %v3521
    %v3529 = vmax.f32 %v3528, 0.0
    %v3530 = vmax.f32 %v3505, %v3506
    %v3531 = vmax.f32 %v3509, %v3510
    %v3532 = vmax.f32 %v3530, %v3531
    %v3533 = vadd.f32 %v3532, %v3521
    %v3534 = vmax.f32 %v3533, 0.0
    %v3535 = vmax.f32 %v3507, %v3508
    %v3536 = vmax.f32 %v3511, %v3512
    %v3537 = vmax.f32 %v3535, %v3536
    %v3538 = vadd.f32 %v3537, %v3521
    %v3539 = vmax.f32 %v3538, 0.0
    %v3540 = vld [vmem:[%s5] sm:$0xff]
    %v3541 = vld [vmem:[%s5 + $0x8] sm:$0xff]
    %v3542 = vld [vmem:[%s5 + $0x10] sm:$0xff]
    %v3543 = vld [vmem:[%s5 + $0x18] sm:$0xff]
    %v3544 = vld [vmem:[%s5 + $0x20] sm:$0xff]
    %v3545 = vld [vmem:[%s5 + $0x28] sm:$0xff]
    %v3546 = vld [vmem:[%s5 + $0x30] sm:$0xff]
    %v3547 = vld [vmem:[%s5 + $0x38] sm:$0xff]
    %v3548 = vld [vmem:[%s5 + $0x40] sm:$0xff]
    %v3549 = vld [vmem:[%s5 + $0x48] sm:$0xff]
    %v3550 = vld [vmem:[%s5 + $0x50] sm:$0xff]
    %v3551 = vld [vmem:[%s5 + $0x58] sm:$0xff]
    %v3552 = vld [vmem:[%s5 + $0x60] sm:$0xff]
    %v3553 = vld [vmem:[%s5 + $0x68] sm:$0xff]
    %v3554 = vld [vmem:[%s5 + $0x70] sm:$0xff]
    %v3555 = vld [vmem:[%s5 + $0x78] sm:$0xff]
    %v3556 = vld [vmem:[%s5 + $0x80] sm:$0xff]
    %v3557 = vld [vmem:[%s5 + $0x88] sm:$0xff]
    %v3558 = vld [vmem:[%s5 + $0x90] sm:$0xff]
    %v3559 = vld [vmem:[%s5 + $0x98] sm:$0xff]
    %v3560 = vld [vmem:[%s5 + $0xa0] sm:$0xff]
    %v3561 = vld [vmem:[%s5 + $0xa8] sm:$0xff]
    %v3562 = vld [vmem:[%s5 + $0xb0] sm:$0xff]
    %v3563 = vld [vmem:[%s5 + $0xb8] sm:$0xff]
    %v3564 = vld [vmem:[%s5 + $0xc0] sm:$0xff]
    %v3565 = vld [vmem:[%s5 + $0xc8] sm:$0xff]
    %v3566 = vld [vmem:[%s5 + $0xd0] sm:$0xff]
    %v3567 = vld [vmem:[%s5 + $0xd8] sm:$0xff]
    %v3568 = vld [vmem:[%s5 + $0xe0] sm:$0xff]
    %v3569 = vld [vmem:[%s5 + $0xe8] sm:$0xff]
    %v3570 = vld [vmem:[%s5 + $0xf0] sm:$0xff]
    %v3571 = vld [vmem:[%s5 + $0xf8] sm:$0xff]
    %s3572 = scalar_lea.vmem %s5, 256
    %v3573 = vld [vmem:[%s3572] sm:$0xff]
    %v3574 = vld [vmem:[%s3572 + $0x8] sm:$0xff]
    %v3575 = vld [vmem:[%s3572 + $0x10] sm:$0xff]
    %v3576 = vld [vmem:[%s3572 + $0x18] sm:$0xff]
    %v3577 = vld [vmem:[%s3572 + $0x20] sm:$0xff]
    %v3578 = vld [vmem:[%s3572 + $0x28] sm:$0xff]
    %v3579 = vld [vmem:[%s3572 + $0x30] sm:$0xff]
    %v3580 = vld [vmem:[%s3572 + $0x38] sm:$0xff]
    %v3581 = vld [vmem:[%s3572 + $0x40] sm:$0xff]
    %v3582 = vld [vmem:[%s3572 + $0x48] sm:$0xff]
    %v3583 = vld [vmem:[%s3572 + $0x50] sm:$0xff]
    %v3584 = vld [vmem:[%s3572 + $0x58] sm:$0xff]
    %v3585 = vld [vmem:[%s3572 + $0x60] sm:$0xff]
    %v3586 = vld [vmem:[%s3572 + $0x68] sm:$0xff]
    %v3587 = vld [vmem:[%s3572 + $0x70] sm:$0xff]
    %v3588 = vld [vmem:[%s3572 + $0x78] sm:$0xff]
    %v3589 = vld [vmem:[%s3572 + $0x80] sm:$0xff]
    %v3590 = vld [vmem:[%s3572 + $0x88] sm:$0xff]
    %v3591 = vld [vmem:[%s3572 + $0x90] sm:$0xff]
    %v3592 = vld [vmem:[%s3572 + $0x98] sm:$0xff]
    %v3593 = vld [vmem:[%s3572 + $0xa0] sm:$0xff]
    %v3594 = vld [vmem:[%s3572 + $0xa8] sm:$0xff]
    %v3595 = vld [vmem:[%s3572 + $0xb0] sm:$0xff]
    %v3596 = vld [vmem:[%s3572 + $0xb8] sm:$0xff]
    %v3597 = vld [vmem:[%s3572 + $0xc0] sm:$0xff]
    %v3598 = vld [vmem:[%s3572 + $0xc8] sm:$0xff]
    %v3599 = vld [vmem:[%s3572 + $0xd0] sm:$0xff]
    %v3600 = vld [vmem:[%s3572 + $0xd8] sm:$0xff]
    %v3601 = vld [vmem:[%s3572 + $0xe0] sm:$0xff]
    %v3602 = vld [vmem:[%s3572 + $0xe8] sm:$0xff]
    %v3603 = vld [vmem:[%s3572 + $0xf0] sm:$0xff]
    %v3604 = vld [vmem:[%s3572 + $0xf8] sm:$0xff]
    %3605 = vmatprep.subr.mxu0 %v3604
    %3606 = vmatpush1.msra.mxu0 %v3603
    %3607 = vmatprep.subr.mxu0 %v3602
    %3608 = vmatpush1.msra.mxu0 %v3601
    %3609 = vmatprep.subr.mxu0 %v3600
    %3610 = vmatpush1.msra.mxu0 %v3599
    %3611 = vmatprep.subr.mxu0 %v3598
    %3612 = vmatpush1.msra.mxu0 %v3597
    %3613 = vmatprep.subr.mxu0 %v3596
    %3614 = vmatpush1.msra.mxu0 %v3595
    %3615 = vmatprep.subr.mxu0 %v3594
    %3616 = vmatpush1.msra.mxu0 %v3593
    %3617 = vmatprep.subr.mxu0 %v3592
    %3618 = vmatpush1.msra.mxu0 %v3591
    %3619 = vmatprep.subr.mxu0 %v3590
    %3620 = vmatpush1.msra.mxu0 %v3589
    %3621 = vmatprep.subr.mxu0 %v3588
    %3622 = vmatpush1.msra.mxu0 %v3587
    %3623 = vmatprep.subr.mxu0 %v3586
    %3624 = vmatpush1.msra.mxu0 %v3585
    %3625 = vmatprep.subr.mxu0 %v3584
    %3626 = vmatpush1.msra.mxu0 %v3583
    %3627 = vmatprep.subr.mxu0 %v3582
    %3628 = vmatpush1.msra.mxu0 %v3581
    %3629 = vmatprep.subr.mxu0 %v3580
    %3630 = vmatpush1.msra.mxu0 %v3579
    %3631 = vmatprep.subr.mxu0 %v3578
    %3632 = vmatpush1.msra.mxu0 %v3577
    %3633 = vmatprep.subr.mxu0 %v3576
    %3634 = vmatpush1.msra.mxu0 %v3575
    %3635 = vmatprep.subr.mxu0 %v3574
    %3636 = vmatpush1.msra.mxu0 %v3573
    %3637 = vmatprep.subr.mxu0 0.0
    %3638 = vmatpush2.msra.mxu0 0.0
    %3639 = vmatprep.subr.mxu0 0.0
    %3640 = vmatpush2.msra.mxu0 0.0
    %3641 = vmatprep.subr.mxu0 0.0
    %3642 = vmatpush2.msra.mxu0 0.0
    %3643 = vmatprep.subr.mxu0 0.0
    %3644 = vmatpush2.msra.mxu0 0.0
    %3645 = vmatprep.subr.mxu0 0.0
    %3646 = vmatpush2.msra.mxu0 0.0
    %3647 = vmatprep.subr.mxu0 0.0
    %3648 = vmatpush2.msra.mxu0 0.0
    %3649 = vmatprep.subr.mxu0 0.0
    %3650 = vmatpush2.msra.mxu0 0.0
    %3651 = vmatprep.subr.mxu0 0.0
    %3652 = vmatpush2.msra.mxu0 0.0
    %3653 = vmatprep.subr.mxu0 0.0
    %3654 = vmatpush2.msra.mxu0 0.0
    %3655 = vmatprep.subr.mxu0 0.0
    %3656 = vmatpush2.msra.mxu0 0.0
    %3657 = vmatprep.subr.mxu0 0.0
    %3658 = vmatpush2.msra.mxu0 0.0
    %3659 = vmatprep.subr.mxu0 0.0
    %3660 = vmatpush2.msra.mxu0 0.0
    %3661 = vmatprep.subr.mxu0 0.0
    %3662 = vmatpush2.msra.mxu0 0.0
    %3663 = vmatprep.subr.mxu0 0.0
    %3664 = vmatpush2.msra.mxu0 0.0
    %3665 = vmatprep.subr.mxu0 0.0
    %3666 = vmatpush2.msra.mxu0 0.0
    %3667 = vmatprep.subr.mxu0 0.0
    %3668 = vmatpush2.msra.mxu0 0.0
    %3669 = vmatprep.mubr.f32.mxu0 0.0
    %3670 = vmatmul.mubr.f32.gmra.mxu0 %v3529
    %v3671 = vpop.f32.mrf.mxu0
    %v3672 = vadd.f32 0.0, %v3671
    %v3673 = vpop.f32.mrf.mxu0
    %v3674 = vadd.f32 0.0, %v3673
    %3675 = vdwg.mxu0
    %3676 = vmatprep.subr.mxu0 %v3571
    %3677 = vmatpush1.msra.mxu0 %v3570
    %3678 = vmatprep.subr.mxu0 %v3569
    %3679 = vmatpush1.msra.mxu0 %v3568
    %3680 = vmatprep.subr.mxu0 %v3567
    %3681 = vmatpush1.msra.mxu0 %v3566
    %3682 = vmatprep.subr.mxu0 %v3565
    %3683 = vmatpush1.msra.mxu0 %v3564
    %3684 = vmatprep.subr.mxu0 %v3563
    %3685 = vmatpush1.msra.mxu0 %v3562
    %3686 = vmatprep.subr.mxu0 %v3561
    %3687 = vmatpush1.msra.mxu0 %v3560
    %3688 = vmatprep.subr.mxu0 %v3559
    %3689 = vmatpush1.msra.mxu0 %v3558
    %3690 = vmatprep.subr.mxu0 %v3557
    %3691 = vmatpush1.msra.mxu0 %v3556
    %3692 = vmatprep.subr.mxu0 %v3555
    %3693 = vmatpush1.msra.mxu0 %v3554
    %3694 = vmatprep.subr.mxu0 %v3553
    %3695 = vmatpush1.msra.mxu0 %v3552
    %3696 = vmatprep.subr.mxu0 %v3551
    %3697 = vmatpush1.msra.mxu0 %v3550
    %3698 = vmatprep.subr.mxu0 %v3549
    %3699 = vmatpush1.msra.mxu0 %v3548
    %3700 = vmatprep.subr.mxu0 %v3547
    %3701 = vmatpush1.msra.mxu0 %v3546
    %3702 = vmatprep.subr.mxu0 %v3545
    %3703 = vmatpush1.msra.mxu0 %v3544
    %3704 = vmatprep.subr.mxu0 %v3543
    %3705 = vmatpush1.msra.mxu0 %v3542
    %3706 = vmatprep.subr.mxu0 %v3541
    %3707 = vmatpush1.msra.mxu0 %v3540
    %3708 = vmatprep.subr.mxu0 0.0
    %3709 = vmatpush2.msra.mxu0 0.0
    %3710 = vmatprep.subr.mxu0 0.0
    %3711 = vmatpush2.msra.mxu0 0.0
    %3712 = vmatprep.subr.mxu0 0.0
    %3713 = vmatpush2.msra.mxu0 0.0
    %3714 = vmatprep.subr.mxu0 0.0
    %3715 = vmatpush2.msra.mxu0 0.0
    %3716 = vmatprep.subr.mxu0 0.0
    %3717 = vmatpush2.msra.mxu0 0.0
    %3718 = vmatprep.subr.mxu0 0.0
    %3719 = vmatpush2.msra.mxu0 0.0
    %3720 = vmatprep.subr.mxu0 0.0
    %3721 = vmatpush2.msra.mxu0 0.0
    %3722 = vmatprep.subr.mxu0 0.0
    %3723 = vmatpush2.msra.mxu0 0.0
    %3724 = vmatprep.subr.mxu0 0.0
    %3725 = vmatpush2.msra.mxu0 0.0
    %3726 = vmatprep.subr.mxu0 0.0
    %3727 = vmatpush2.msra.mxu0 0.0
    %3728 = vmatprep.subr.mxu0 0.0
    %3729 = vmatpush2.msra.mxu0 0.0
    %3730 = vmatprep.subr.mxu0 0.0
    %3731 = vmatpush2.msra.mxu0 0.0
    %3732 = vmatprep.subr.mxu0 0.0
    %3733 = vmatpush2.msra.mxu0 0.0
    %3734 = vmatprep.subr.mxu0 0.0
    %3735 = vmatpush2.msra.mxu0 0.0
    %3736 = vmatprep.subr.mxu0 0.0
    %3737 = vmatpush2.msra.mxu0 0.0
    %3738 = vmatprep.subr.mxu0 0.0
    %3739 = vmatpush2.msra.mxu0 0.0
    %3740 = vmatprep.mubr.f32.mxu0 0.0
    %3741 = vmatmul.mubr.f32.gmra.mxu0 %v3524
    %v3742 = vpop.f32.mrf.mxu0
    %v3743 = vadd.f32 %v3672, %v3742
    %v3744 = vpop.f32.mrf.mxu0
    %v3745 = vadd.f32 %v3674, %v3744
    %3746 = vdwg.mxu0
    %s3747 = scalar_lea.vmem %s5, 512
    %v3748 = vld [vmem:[%s3747] sm:$0xff]
    %v3749 = vld [vmem:[%s3747 + $0x8] sm:$0xff]
    %v3750 = vld [vmem:[%s3747 + $0x10] sm:$0xff]
    %v3751 = vld [vmem:[%s3747 + $0x18] sm:$0xff]
    %v3752 = vld [vmem:[%s3747 + $0x20] sm:$0xff]
    %v3753 = vld [vmem:[%s3747 + $0x28] sm:$0xff]
    %v3754 = vld [vmem:[%s3747 + $0x30] sm:$0xff]
    %v3755 = vld [vmem:[%s3747 + $0x38] sm:$0xff]
    %v3756 = vld [vmem:[%s3747 + $0x40] sm:$0xff]
    %v3757 = vld [vmem:[%s3747 + $0x48] sm:$0xff]
    %v3758 = vld [vmem:[%s3747 + $0x50] sm:$0xff]
    %v3759 = vld [vmem:[%s3747 + $0x58] sm:$0xff]
    %v3760 = vld [vmem:[%s3747 + $0x60] sm:$0xff]
    %v3761 = vld [vmem:[%s3747 + $0x68] sm:$0xff]
    %v3762 = vld [vmem:[%s3747 + $0x70] sm:$0xff]
    %v3763 = vld [vmem:[%s3747 + $0x78] sm:$0xff]
    %v3764 = vld [vmem:[%s3747 + $0x80] sm:$0xff]
    %v3765 = vld [vmem:[%s3747 + $0x88] sm:$0xff]
    %v3766 = vld [vmem:[%s3747 + $0x90] sm:$0xff]
    %v3767 = vld [vmem:[%s3747 + $0x98] sm:$0xff]
    %v3768 = vld [vmem:[%s3747 + $0xa0] sm:$0xff]
    %v3769 = vld [vmem:[%s3747 + $0xa8] sm:$0xff]
    %v3770 = vld [vmem:[%s3747 + $0xb0] sm:$0xff]
    %v3771 = vld [vmem:[%s3747 + $0xb8] sm:$0xff]
    %v3772 = vld [vmem:[%s3747 + $0xc0] sm:$0xff]
    %v3773 = vld [vmem:[%s3747 + $0xc8] sm:$0xff]
    %v3774 = vld [vmem:[%s3747 + $0xd0] sm:$0xff]
    %v3775 = vld [vmem:[%s3747 + $0xd8] sm:$0xff]
    %v3776 = vld [vmem:[%s3747 + $0xe0] sm:$0xff]
    %v3777 = vld [vmem:[%s3747 + $0xe8] sm:$0xff]
    %v3778 = vld [vmem:[%s3747 + $0xf0] sm:$0xff]
    %v3779 = vld [vmem:[%s3747 + $0xf8] sm:$0xff]
    %3780 = vmatprep.subr.mxu0 %v3779
    %3781 = vmatpush1.msra.mxu0 %v3778
    %3782 = vmatprep.subr.mxu0 %v3777
    %3783 = vmatpush1.msra.mxu0 %v3776
    %3784 = vmatprep.subr.mxu0 %v3775
    %3785 = vmatpush1.msra.mxu0 %v3774
    %3786 = vmatprep.subr.mxu0 %v3773
    %3787 = vmatpush1.msra.mxu0 %v3772
    %3788 = vmatprep.subr.mxu0 %v3771
    %3789 = vmatpush1.msra.mxu0 %v3770
    %3790 = vmatprep.subr.mxu0 %v3769
    %3791 = vmatpush1.msra.mxu0 %v3768
    %3792 = vmatprep.subr.mxu0 %v3767
    %3793 = vmatpush1.msra.mxu0 %v3766
    %3794 = vmatprep.subr.mxu0 %v3765
    %3795 = vmatpush1.msra.mxu0 %v3764
    %3796 = vmatprep.subr.mxu0 %v3763
    %3797 = vmatpush1.msra.mxu0 %v3762
    %3798 = vmatprep.subr.mxu0 %v3761
    %3799 = vmatpush1.msra.mxu0 %v3760
    %3800 = vmatprep.subr.mxu0 %v3759
    %3801 = vmatpush1.msra.mxu0 %v3758
    %3802 = vmatprep.subr.mxu0 %v3757
    %3803 = vmatpush1.msra.mxu0 %v3756
    %3804 = vmatprep.subr.mxu0 %v3755
    %3805 = vmatpush1.msra.mxu0 %v3754
    %3806 = vmatprep.subr.mxu0 %v3753
    %3807 = vmatpush1.msra.mxu0 %v3752
    %3808 = vmatprep.subr.mxu0 %v3751
    %3809 = vmatpush1.msra.mxu0 %v3750
    %3810 = vmatprep.subr.mxu0 %v3749
    %3811 = vmatpush1.msra.mxu0 %v3748
    %3812 = vmatprep.subr.mxu0 0.0
    %3813 = vmatpush2.msra.mxu0 0.0
    %3814 = vmatprep.subr.mxu0 0.0
    %3815 = vmatpush2.msra.mxu0 0.0
    %3816 = vmatprep.subr.mxu0 0.0
    %3817 = vmatpush2.msra.mxu0 0.0
    %3818 = vmatprep.subr.mxu0 0.0
    %3819 = vmatpush2.msra.mxu0 0.0
    %3820 = vmatprep.subr.mxu0 0.0
    %3821 = vmatpush2.msra.mxu0 0.0
    %3822 = vmatprep.subr.mxu0 0.0
    %3823 = vmatpush2.msra.mxu0 0.0
    %3824 = vmatprep.subr.mxu0 0.0
    %3825 = vmatpush2.msra.mxu0 0.0
    %3826 = vmatprep.subr.mxu0 0.0
    %3827 = vmatpush2.msra.mxu0 0.0
    %3828 = vmatprep.subr.mxu0 0.0
    %3829 = vmatpush2.msra.mxu0 0.0
    %3830 = vmatprep.subr.mxu0 0.0
    %3831 = vmatpush2.msra.mxu0 0.0
    %3832 = vmatprep.subr.mxu0 0.0
    %3833 = vmatpush2.msra.mxu0 0.0
    %3834 = vmatprep.subr.mxu0 0.0
    %3835 = vmatpush2.msra.mxu0 0.0
    %3836 = vmatprep.subr.mxu0 0.0
    %3837 = vmatpush2.msra.mxu0 0.0
    %3838 = vmatprep.subr.mxu0 0.0
    %3839 = vmatpush2.msra.mxu0 0.0
    %3840 = vmatprep.subr.mxu0 0.0
    %3841 = vmatpush2.msra.mxu0 0.0
    %3842 = vmatprep.subr.mxu0 0.0
    %3843 = vmatpush2.msra.mxu0 0.0
    %3844 = vmatprep.mubr.f32.mxu0 0.0
    %3845 = vmatmul.mubr.f32.gmra.mxu0 %v3534
    %v3846 = vpop.f32.mrf.mxu0
    %v3847 = vadd.f32 0.0, %v3846
    %v3848 = vpop.f32.mrf.mxu0
    %v3849 = vadd.f32 0.0, %v3848
    %3850 = vdwg.mxu0
    %v3851 = vadd.f32 %v3743, %v3847
    %v3852 = vadd.f32 %v3745, %v3849
    %s3853 = scalar_lea.vmem %s5, 768
    %v3854 = vld [vmem:[%s3853] sm:$0xff]
    %v3855 = vld [vmem:[%s3853 + $0x8] sm:$0xff]
    %v3856 = vld [vmem:[%s3853 + $0x10] sm:$0xff]
    %v3857 = vld [vmem:[%s3853 + $0x18] sm:$0xff]
    %v3858 = vld [vmem:[%s3853 + $0x20] sm:$0xff]
    %v3859 = vld [vmem:[%s3853 + $0x28] sm:$0xff]
    %v3860 = vld [vmem:[%s3853 + $0x30] sm:$0xff]
    %v3861 = vld [vmem:[%s3853 + $0x38] sm:$0xff]
    %v3862 = vld [vmem:[%s3853 + $0x40] sm:$0xff]
    %v3863 = vld [vmem:[%s3853 + $0x48] sm:$0xff]
    %v3864 = vld [vmem:[%s3853 + $0x50] sm:$0xff]
    %v3865 = vld [vmem:[%s3853 + $0x58] sm:$0xff]
    %v3866 = vld [vmem:[%s3853 + $0x60] sm:$0xff]
    %v3867 = vld [vmem:[%s3853 + $0x68] sm:$0xff]
    %v3868 = vld [vmem:[%s3853 + $0x70] sm:$0xff]
    %v3869 = vld [vmem:[%s3853 + $0x78] sm:$0xff]
    %v3870 = vld [vmem:[%s3853 + $0x80] sm:$0xff]
    %v3871 = vld [vmem:[%s3853 + $0x88] sm:$0xff]
    %v3872 = vld [vmem:[%s3853 + $0x90] sm:$0xff]
    %v3873 = vld [vmem:[%s3853 + $0x98] sm:$0xff]
    %v3874 = vld [vmem:[%s3853 + $0xa0] sm:$0xff]
    %v3875 = vld [vmem:[%s3853 + $0xa8] sm:$0xff]
    %v3876 = vld [vmem:[%s3853 + $0xb0] sm:$0xff]
    %v3877 = vld [vmem:[%s3853 + $0xb8] sm:$0xff]
    %v3878 = vld [vmem:[%s3853 + $0xc0] sm:$0xff]
    %v3879 = vld [vmem:[%s3853 + $0xc8] sm:$0xff]
    %v3880 = vld [vmem:[%s3853 + $0xd0] sm:$0xff]
    %v3881 = vld [vmem:[%s3853 + $0xd8] sm:$0xff]
    %v3882 = vld [vmem:[%s3853 + $0xe0] sm:$0xff]
    %v3883 = vld [vmem:[%s3853 + $0xe8] sm:$0xff]
    %v3884 = vld [vmem:[%s3853 + $0xf0] sm:$0xff]
    %v3885 = vld [vmem:[%s3853 + $0xf8] sm:$0xff]
    %3886 = vmatprep.subr.mxu0 %v3885
    %3887 = vmatpush1.msra.mxu0 %v3884
    %3888 = vmatprep.subr.mxu0 %v3883
    %3889 = vmatpush1.msra.mxu0 %v3882
    %3890 = vmatprep.subr.mxu0 %v3881
    %3891 = vmatpush1.msra.mxu0 %v3880
    %3892 = vmatprep.subr.mxu0 %v3879
    %3893 = vmatpush1.msra.mxu0 %v3878
    %3894 = vmatprep.subr.mxu0 %v3877
    %3895 = vmatpush1.msra.mxu0 %v3876
    %3896 = vmatprep.subr.mxu0 %v3875
    %3897 = vmatpush1.msra.mxu0 %v3874
    %3898 = vmatprep.subr.mxu0 %v3873
    %3899 = vmatpush1.msra.mxu0 %v3872
    %3900 = vmatprep.subr.mxu0 %v3871
    %3901 = vmatpush1.msra.mxu0 %v3870
    %3902 = vmatprep.subr.mxu0 %v3869
    %3903 = vmatpush1.msra.mxu0 %v3868
    %3904 = vmatprep.subr.mxu0 %v3867
    %3905 = vmatpush1.msra.mxu0 %v3866
    %3906 = vmatprep.subr.mxu0 %v3865
    %3907 = vmatpush1.msra.mxu0 %v3864
    %3908 = vmatprep.subr.mxu0 %v3863
    %3909 = vmatpush1.msra.mxu0 %v3862
    %3910 = vmatprep.subr.mxu0 %v3861
    %3911 = vmatpush1.msra.mxu0 %v3860
    %3912 = vmatprep.subr.mxu0 %v3859
    %3913 = vmatpush1.msra.mxu0 %v3858
    %3914 = vmatprep.subr.mxu0 %v3857
    %3915 = vmatpush1.msra.mxu0 %v3856
    %3916 = vmatprep.subr.mxu0 %v3855
    %3917 = vmatpush1.msra.mxu0 %v3854
    %3918 = vmatprep.subr.mxu0 0.0
    %3919 = vmatpush2.msra.mxu0 0.0
    %3920 = vmatprep.subr.mxu0 0.0
    %3921 = vmatpush2.msra.mxu0 0.0
    %3922 = vmatprep.subr.mxu0 0.0
    %3923 = vmatpush2.msra.mxu0 0.0
    %3924 = vmatprep.subr.mxu0 0.0
    %3925 = vmatpush2.msra.mxu0 0.0
    %3926 = vmatprep.subr.mxu0 0.0
    %3927 = vmatpush2.msra.mxu0 0.0
    %3928 = vmatprep.subr.mxu0 0.0
    %3929 = vmatpush2.msra.mxu0 0.0
    %3930 = vmatprep.subr.mxu0 0.0
    %3931 = vmatpush2.msra.mxu0 0.0
    %3932 = vmatprep.subr.mxu0 0.0
    %3933 = vmatpush2.msra.mxu0 0.0
    %3934 = vmatprep.subr.mxu0 0.0
    %3935 = vmatpush2.msra.mxu0 0.0
    %3936 = vmatprep.subr.mxu0 0.0
    %3937 = vmatpush2.msra.mxu0 0.0
    %3938 = vmatprep.subr.mxu0 0.0
    %3939 = vmatpush2.msra.mxu0 0.0
    %3940 = vmatprep.subr.mxu0 0.0
    %3941 = vmatpush2.msra.mxu0 0.0
    %3942 = vmatprep.subr.mxu0 0.0
    %3943 = vmatpush2.msra.mxu0 0.0
    %3944 = vmatprep.subr.mxu0 0.0
    %3945 = vmatpush2.msra.mxu0 0.0
    %3946 = vmatprep.subr.mxu0 0.0
    %3947 = vmatpush2.msra.mxu0 0.0
    %3948 = vmatprep.subr.mxu0 0.0
    %3949 = vmatpush2.msra.mxu0 0.0
    %3950 = vmatprep.mubr.f32.mxu0 0.0
    %3951 = vmatmul.mubr.f32.gmra.mxu0 %v3539
    %v3952 = vpop.f32.mrf.mxu0
    %v3953 = vadd.f32 0.0, %v3952
    %v3954 = vpop.f32.mrf.mxu0
    %v3955 = vadd.f32 0.0, %v3954
    %3956 = vdwg.mxu0
    %v3957 = vadd.f32 %v3851, %v3953
    %v3958 = vadd.f32 %v3852, %v3955
    %v3959 = vld [vmem:[%s6] sm:$0x3]
    %v3961 = vlaneseq
    %v3962 = vshrl.u32 %v3961, 7
    %v3963 = vsub.s32 0, %v3962
    %v3964 = vrot.slane %v3959, %v3963
    %v3965 = vlaneseq
    %v3966 = vshrl.u32 %v3965, 7
    %v3967 = vsub.s32 1, %v3966
    %v3968 = vrot.slane %v3959, %v3967
    %v3971 = vadd.f32 %v3957, %v3964
    %v3972 = vadd.f32 %v3958, %v3968
    %v3973 = vmax.f32 %v3971, 0.0
    %v3974 = vmax.f32 %v3972, 0.0
    %v3975 = vld [vmem:[%s7] sm:$0xff]
    %v3976 = vld [vmem:[%s7 + $0x8] sm:$0xff]
    %v3977 = vld [vmem:[%s7 + $0x10] sm:$0xff]
    %v3978 = vld [vmem:[%s7 + $0x18] sm:$0xff]
    %v3979 = vld [vmem:[%s7 + $0x20] sm:$0xff]
    %v3980 = vld [vmem:[%s7 + $0x28] sm:$0xff]
    %v3981 = vld [vmem:[%s7 + $0x30] sm:$0xff]
    %v3982 = vld [vmem:[%s7 + $0x38] sm:$0xff]
    %v3983 = vld [vmem:[%s7 + $0x40] sm:$0xff]
    %v3984 = vld [vmem:[%s7 + $0x48] sm:$0xff]
    %v3985 = vld [vmem:[%s7 + $0x50] sm:$0xff]
    %v3986 = vld [vmem:[%s7 + $0x58] sm:$0xff]
    %v3987 = vld [vmem:[%s7 + $0x60] sm:$0xff]
    %v3988 = vld [vmem:[%s7 + $0x68] sm:$0xff]
    %v3989 = vld [vmem:[%s7 + $0x70] sm:$0xff]
    %v3990 = vld [vmem:[%s7 + $0x78] sm:$0xff]
    %v3991 = vld [vmem:[%s7 + $0x80] sm:$0xff]
    %v3992 = vld [vmem:[%s7 + $0x88] sm:$0xff]
    %v3993 = vld [vmem:[%s7 + $0x90] sm:$0xff]
    %v3994 = vld [vmem:[%s7 + $0x98] sm:$0xff]
    %v3995 = vld [vmem:[%s7 + $0xa0] sm:$0xff]
    %v3996 = vld [vmem:[%s7 + $0xa8] sm:$0xff]
    %v3997 = vld [vmem:[%s7 + $0xb0] sm:$0xff]
    %v3998 = vld [vmem:[%s7 + $0xb8] sm:$0xff]
    %v3999 = vld [vmem:[%s7 + $0xc0] sm:$0xff]
    %v4000 = vld [vmem:[%s7 + $0xc8] sm:$0xff]
    %v4001 = vld [vmem:[%s7 + $0xd0] sm:$0xff]
    %v4002 = vld [vmem:[%s7 + $0xd8] sm:$0xff]
    %v4003 = vld [vmem:[%s7 + $0xe0] sm:$0xff]
    %v4004 = vld [vmem:[%s7 + $0xe8] sm:$0xff]
    %v4005 = vld [vmem:[%s7 + $0xf0] sm:$0xff]
    %v4006 = vld [vmem:[%s7 + $0xf8] sm:$0xff]
    %v4007 = vld [vmem:[%s8] sm:$0x1]
    %v4009 = vlaneseq
    %v4010 = vshrl.u32 %v4009, 7
    %v4011 = vsub.s32 0, %v4010
    %v4012 = vrot.slane %v4007, %v4011
    %4014 = vmatprep.subr.mxu0 0.0
    %4015 = vmatpush1.msra.mxu0 %v3990
    %4016 = vmatprep.subr.mxu0 0.0
    %4017 = vmatpush1.msra.mxu0 %v3989
    %4018 = vmatprep.subr.mxu0 0.0
    %4019 = vmatpush1.msra.mxu0 %v3988
    %4020 = vmatprep.subr.mxu0 0.0
    %4021 = vmatpush1.msra.mxu0 %v3987
    %4022 = vmatprep.subr.mxu0 0.0
    %4023 = vmatpush1.msra.mxu0 %v3986
    %4024 = vmatprep.subr.mxu0 0.0
    %4025 = vmatpush1.msra.mxu0 %v3985
    %4026 = vmatprep.subr.mxu0 0.0
    %4027 = vmatpush1.msra.mxu0 %v3984
    %4028 = vmatprep.subr.mxu0 0.0
    %4029 = vmatpush1.msra.mxu0 %v3983
    %4030 = vmatprep.subr.mxu0 0.0
    %4031 = vmatpush1.msra.mxu0 %v3982
    %4032 = vmatprep.subr.mxu0 0.0
    %4033 = vmatpush1.msra.mxu0 %v3981
    %4034 = vmatprep.subr.mxu0 0.0
    %4035 = vmatpush1.msra.mxu0 %v3980
    %4036 = vmatprep.subr.mxu0 0.0
    %4037 = vmatpush1.msra.mxu0 %v3979
    %4038 = vmatprep.subr.mxu0 0.0
    %4039 = vmatpush1.msra.mxu0 %v3978
    %4040 = vmatprep.subr.mxu0 0.0
    %4041 = vmatpush1.msra.mxu0 %v3977
    %4042 = vmatprep.subr.mxu0 0.0
    %4043 = vmatpush1.msra.mxu0 %v3976
    %4044 = vmatprep.subr.mxu0 0.0
    %4045 = vmatpush1.msra.mxu0 %v3975
    %4046 = vmatprep.subr.mxu0 0.0
    %4047 = vmatpush2.msra.mxu0 %v4006
    %4048 = vmatprep.subr.mxu0 0.0
    %4049 = vmatpush2.msra.mxu0 %v4005
    %4050 = vmatprep.subr.mxu0 0.0
    %4051 = vmatpush2.msra.mxu0 %v4004
    %4052 = vmatprep.subr.mxu0 0.0
    %4053 = vmatpush2.msra.mxu0 %v4003
    %4054 = vmatprep.subr.mxu0 0.0
    %4055 = vmatpush2.msra.mxu0 %v4002
    %4056 = vmatprep.subr.mxu0 0.0
    %4057 = vmatpush2.msra.mxu0 %v4001
    %4058 = vmatprep.subr.mxu0 0.0
    %4059 = vmatpush2.msra.mxu0 %v4000
    %4060 = vmatprep.subr.mxu0 0.0
    %4061 = vmatpush2.msra.mxu0 %v3999
    %4062 = vmatprep.subr.mxu0 0.0
    %4063 = vmatpush2.msra.mxu0 %v3998
    %4064 = vmatprep.subr.mxu0 0.0
    %4065 = vmatpush2.msra.mxu0 %v3997
    %4066 = vmatprep.subr.mxu0 0.0
    %4067 = vmatpush2.msra.mxu0 %v3996
    %4068 = vmatprep.subr.mxu0 0.0
    %4069 = vmatpush2.msra.mxu0 %v3995
    %4070 = vmatprep.subr.mxu0 0.0
    %4071 = vmatpush2.msra.mxu0 %v3994
    %4072 = vmatprep.subr.mxu0 0.0
    %4073 = vmatpush2.msra.mxu0 %v3993
    %4074 = vmatprep.subr.mxu0 0.0
    %4075 = vmatpush2.msra.mxu0 %v3992
    %4076 = vmatprep.subr.mxu0 0.0
    %4077 = vmatpush2.msra.mxu0 %v3991
    %4078 = vmatprep.mubr.f32.mxu0 %v3974
    %4079 = vmatmul.mubr.f32.gmra.mxu0 %v3973
    %v4080 = vpop.f32.mrf.mxu0
    %v4081 = vadd.f32 %v4012, %v4080
    %v4082 = vpop.f32.mrf.mxu0
    %4083 = vdwg.mxu0
    %vm4084 = vcmask 156672
    %4085 = vst.msk [vmem:[%s14] sm:$0x3] %vm4084, %v4081
    %v4086 = vmax.f32 %v4081, 0.0
    %v4087 = vld [vmem:[%s9] sm:$0xff]
    %v4088 = vld [vmem:[%s9 + $0x8] sm:$0xff]
    %v4089 = vld [vmem:[%s9 + $0x10] sm:$0xf]
    %v4090 = vld [vmem:[%s10] sm:$0x1]
    %v4092 = vlaneseq
    %v4093 = vshrl.u32 %v4092, 7
    %v4094 = vsub.s32 0, %v4093
    %v4095 = vrot.slane %v4090, %v4094
    %vm4097 = vcmask 162816
    %v4099 = vsel %vm4097, %v4086, 0
    %vm4101 = vcmask 1043456
    %v4103 = vsel %vm4101, %v4089, 0
    %4105 = vmatprep.subr.mxu0 0.0
    %4106 = vmatpush1.msra.mxu0 0.0
    %4107 = vmatprep.subr.mxu0 0.0
    %4108 = vmatpush1.msra.mxu0 0.0
    %4109 = vmatprep.subr.mxu0 0.0
    %4110 = vmatpush1.msra.mxu0 0.0
    %4111 = vmatprep.subr.mxu0 0.0
    %4112 = vmatpush1.msra.mxu0 0.0
    %4113 = vmatprep.subr.mxu0 0.0
    %4114 = vmatpush1.msra.mxu0 0.0
    %4115 = vmatprep.subr.mxu0 0.0
    %4116 = vmatpush1.msra.mxu0 0.0
    %4117 = vmatprep.subr.mxu0 0.0
    %4118 = vmatpush1.msra.mxu0 0.0
    %4119 = vmatprep.subr.mxu0 0.0
    %4120 = vmatpush1.msra.mxu0 0.0
    %4121 = vmatprep.subr.mxu0 0.0
    %4122 = vmatpush1.msra.mxu0 0.0
    %4123 = vmatprep.subr.mxu0 0.0
    %4124 = vmatpush1.msra.mxu0 0.0
    %4125 = vmatprep.subr.mxu0 0.0
    %4126 = vmatpush1.msra.mxu0 0.0
    %4127 = vmatprep.subr.mxu0 0.0
    %4128 = vmatpush1.msra.mxu0 0.0
    %4129 = vmatprep.subr.mxu0 0.0
    %4130 = vmatpush1.msra.mxu0 0.0
    %4131 = vmatprep.subr.mxu0 0.0
    %4132 = vmatpush1.msra.mxu0 %v4103
    %4133 = vmatprep.subr.mxu0 0.0
    %4134 = vmatpush1.msra.mxu0 %v4088
    %4135 = vmatprep.subr.mxu0 0.0
    %4136 = vmatpush1.msra.mxu0 %v4087
    %4137 = vmatprep.subr.mxu0 0.0
    %4138 = vmatpush2.msra.mxu0 0.0
    %4139 = vmatprep.subr.mxu0 0.0
    %4140 = vmatpush2.msra.mxu0 0.0
    %4141 = vmatprep.subr.mxu0 0.0
    %4142 = vmatpush2.msra.mxu0 0.0
    %4143 = vmatprep.subr.mxu0 0.0
    %4144 = vmatpush2.msra.mxu0 0.0
    %4145 = vmatprep.subr.mxu0 0.0
    %4146 = vmatpush2.msra.mxu0 0.0
    %4147 = vmatprep.subr.mxu0 0.0
    %4148 = vmatpush2.msra.mxu0 0.0
    %4149 = vmatprep.subr.mxu0 0.0
    %4150 = vmatpush2.msra.mxu0 0.0
    %4151 = vmatprep.subr.mxu0 0.0
    %4152 = vmatpush2.msra.mxu0 0.0
    %4153 = vmatprep.subr.mxu0 0.0
    %4154 = vmatpush2.msra.mxu0 0.0
    %4155 = vmatprep.subr.mxu0 0.0
    %4156 = vmatpush2.msra.mxu0 0.0
    %4157 = vmatprep.subr.mxu0 0.0
    %4158 = vmatpush2.msra.mxu0 0.0
    %4159 = vmatprep.subr.mxu0 0.0
    %4160 = vmatpush2.msra.mxu0 0.0
    %4161 = vmatprep.subr.mxu0 0.0
    %4162 = vmatpush2.msra.mxu0 0.0
    %4163 = vmatprep.subr.mxu0 0.0
    %4164 = vmatpush2.msra.mxu0 0.0
    %4165 = vmatprep.subr.mxu0 0.0
    %4166 = vmatpush2.msra.mxu0 0.0
    %4167 = vmatprep.subr.mxu0 0.0
    %4168 = vmatpush2.msra.mxu0 0.0
    %4169 = vmatprep.mubr.f32.mxu0 0.0
    %4170 = vmatmul.mubr.f32.gmra.mxu0 %v4099
    %v4171 = vpop.f32.mrf.mxu0
    %v4172 = vadd.f32 %v4095, %v4171
    %v4173 = vpop.f32.mrf.mxu0
    %4174 = vdwg.mxu0
    %v4175 = vmax.f32 %v4172, 0.0
    %v4176 = vld [vmem:[%s11] sm:$0xff]
    %v4177 = vld [vmem:[%s11 + $0x8] sm:$0xff]
    %v4178 = vld [vmem:[%s11 + $0x10] sm:$0xff]
    %v4179 = vld [vmem:[%s11 + $0x18] sm:$0xff]
    %v4180 = vld [vmem:[%s11 + $0x20] sm:$0xff]
    %v4181 = vld [vmem:[%s11 + $0x28] sm:$0xff]
    %v4182 = vld [vmem:[%s11 + $0x30] sm:$0xff]
    %v4183 = vld [vmem:[%s11 + $0x38] sm:$0xff]
    %v4184 = vld [vmem:[%s11 + $0x40] sm:$0xff]
    %v4185 = vld [vmem:[%s11 + $0x48] sm:$0xff]
    %v4186 = vld [vmem:[%s11 + $0x50] sm:$0xff]
    %v4187 = vld [vmem:[%s11 + $0x58] sm:$0xff]
    %v4188 = vld [vmem:[%s11 + $0x60] sm:$0xff]
    %v4189 = vld [vmem:[%s11 + $0x68] sm:$0xff]
    %v4190 = vld [vmem:[%s11 + $0x70] sm:$0xff]
    %v4191 = vld [vmem:[%s11 + $0x78] sm:$0xff]
    %v4192 = vld [vmem:[%s12] sm:$0x1]
    %v4194 = vlaneseq
    %v4195 = vshrl.u32 %v4194, 7
    %v4196 = vsub.s32 0, %v4195
    %v4197 = vrot.slane %v4192, %v4196
    %4199 = vmatprep.subr.mxu0 0.0
    %4200 = vmatpush1.msra.mxu0 %v4191
    %4201 = vmatprep.subr.mxu0 0.0
    %4202 = vmatpush1.msra.mxu0 %v4190
    %4203 = vmatprep.subr.mxu0 0.0
    %4204 = vmatpush1.msra.mxu0 %v4189
    %4205 = vmatprep.subr.mxu0 0.0
    %4206 = vmatpush1.msra.mxu0 %v4188
    %4207 = vmatprep.subr.mxu0 0.0
    %4208 = vmatpush1.msra.mxu0 %v4187
    %4209 = vmatprep.subr.mxu0 0.0
    %4210 = vmatpush1.msra.mxu0 %v4186
    %4211 = vmatprep.subr.mxu0 0.0
    %4212 = vmatpush1.msra.mxu0 %v4185
    %4213 = vmatprep.subr.mxu0 0.0
    %4214 = vmatpush1.msra.mxu0 %v4184
    %4215 = vmatprep.subr.mxu0 0.0
    %4216 = vmatpush1.msra.mxu0 %v4183
    %4217 = vmatprep.subr.mxu0 0.0
    %4218 = vmatpush1.msra.mxu0 %v4182
    %4219 = vmatprep.subr.mxu0 0.0
    %4220 = vmatpush1.msra.mxu0 %v4181
    %4221 = vmatprep.subr.mxu0 0.0
    %4222 = vmatpush1.msra.mxu0 %v4180
    %4223 = vmatprep.subr.mxu0 0.0
    %4224 = vmatpush1.msra.mxu0 %v4179
    %4225 = vmatprep.subr.mxu0 0.0
    %4226 = vmatpush1.msra.mxu0 %v4178
    %4227 = vmatprep.subr.mxu0 0.0
    %4228 = vmatpush1.msra.mxu0 %v4177
    %4229 = vmatprep.subr.mxu0 0.0
    %4230 = vmatpush1.msra.mxu0 %v4176
    %4231 = vmatprep.subr.mxu0 0.0
    %4232 = vmatpush2.msra.mxu0 0.0
    %4233 = vmatprep.subr.mxu0 0.0
    %4234 = vmatpush2.msra.mxu0 0.0
    %4235 = vmatprep.subr.mxu0 0.0
    %4236 = vmatpush2.msra.mxu0 0.0
    %4237 = vmatprep.subr.mxu0 0.0
    %4238 = vmatpush2.msra.mxu0 0.0
    %4239 = vmatprep.subr.mxu0 0.0
    %4240 = vmatpush2.msra.mxu0 0.0
    %4241 = vmatprep.subr.mxu0 0.0
    %4242 = vmatpush2.msra.mxu0 0.0
    %4243 = vmatprep.subr.mxu0 0.0
    %4244 = vmatpush2.msra.mxu0 0.0
    %4245 = vmatprep.subr.mxu0 0.0
    %4246 = vmatpush2.msra.mxu0 0.0
    %4247 = vmatprep.subr.mxu0 0.0
    %4248 = vmatpush2.msra.mxu0 0.0
    %4249 = vmatprep.subr.mxu0 0.0
    %4250 = vmatpush2.msra.mxu0 0.0
    %4251 = vmatprep.subr.mxu0 0.0
    %4252 = vmatpush2.msra.mxu0 0.0
    %4253 = vmatprep.subr.mxu0 0.0
    %4254 = vmatpush2.msra.mxu0 0.0
    %4255 = vmatprep.subr.mxu0 0.0
    %4256 = vmatpush2.msra.mxu0 0.0
    %4257 = vmatprep.subr.mxu0 0.0
    %4258 = vmatpush2.msra.mxu0 0.0
    %4259 = vmatprep.subr.mxu0 0.0
    %4260 = vmatpush2.msra.mxu0 0.0
    %4261 = vmatprep.subr.mxu0 0.0
    %4262 = vmatpush2.msra.mxu0 0.0
    %4263 = vmatprep.mubr.f32.mxu0 0.0
    %4264 = vmatmul.mubr.f32.gmra.mxu0 %v4175
    %v4265 = vpop.f32.mrf.mxu0
    %v4266 = vadd.f32 %v4197, %v4265
    %v4267 = vpop.f32.mrf.mxu0
    %4268 = vdwg.mxu0
    %vm4269 = vcmask 9216
    %4270 = vst.msk [vmem:[#allocation2] sm:$0x3] %vm4269, %v4266
    // Predicated region
    $region54: #{net_al_forward.1} parent=1 // pred_check
      _
    $region55: #{net_al_forward.1} parent=1 // pred_check_branch
      %4272 = sbr.rel (0) target = $region57
    $region56: #{net_al_forward.1} parent=1 // pred_region
      %s4274 = ssub.s32 32, 32
      %4275 = vsyncadd [#allocation3], %s4274
      %s4277 = sshll.u32 [#allocation2], 4
      %s4278 = int_to_ptr.vmem [resolvable:$true] %s4277
      %4280 = dma.vmem_to_hbm [thread:$0]  %s4278, 32, %s13, [#allocation3]
    $region57: #{net_al_forward.1} parent=1 // pred_fallthru
      _
    // Predicated region
    $region58: #{net_al_forward.1} parent=1 // pred_check
      _
    $region59: #{net_al_forward.1} parent=1 // pred_check_branch
      %4282 = sbr.rel (0) target = $region61
    $region60: #{net_al_forward.1} parent=1 // pred_region
      _
    $region61: #{net_al_forward.1} parent=1 // pred_fallthru
      _
    // Predicated region
    $region62: #{net_al_forward.1} parent=1 // pred_check
      _
    $region63: #{net_al_forward.1} parent=1 // pred_check_branch
      %4284 = sbr.rel (0) target = $region65
    $region64: #{net_al_forward.1} parent=1 // pred_region
      %4285 = dma.done [#allocation3], 32
    $region65: #{net_al_forward.1} parent=1 // pred_fallthru
      _
    // Predicated region
    $region66: #{net_al_forward.1} parent=1 // pred_check
      _
    $region67: #{net_al_forward.1} parent=1 // pred_check_branch
      %4287 = sbr.rel (0) target = $region69
    $region68: #{net_al_forward.1} parent=1 // pred_region
      _
    $region69: #{net_al_forward.1} parent=1 // pred_fallthru
      _
    %4288 = vsyncpa [#allocation3], 1

</llo_original>
